<compile_context>
chip_gen: v7x
topology: tpu7x:2x2x1
jax: 0.10.0
libtpu: 0.0.40
codegen_flags: <defaults>
</compile_context>

<pallas_src>
import functools

import numpy as np
import jax
import jax.numpy as jnp
from jax import lax
from jax.experimental import pallas as pl
from jax.experimental.pallas import tpu as pltpu

# LeNet static dimensions (28x28x1 input, as implied by fc1: 16*5*5 = 400).
H_IN = 28        # input spatial size
C1, C2 = 6, 16   # conv channel counts
KS = 5           # conv kernel size
H1 = 28          # conv1 output spatial (padding = 2)
P1 = 14          # pool1 output spatial
H2 = 10          # conv2 output spatial (no padding)
P2 = 5           # pool2 output spatial
F1_IN, F1_OUT = 400, 120
F2_OUT = 84
NUM_CLASSES = 10
OUT_LANES = 128  # class dim padded to one full lane tile

S_IN = 32        # per-image row stride in padded input  (2 halo + 28 + 2 halo)
S_P1 = 16        # per-image row stride after pool1       (14 valid + 2 pad)
S_P2 = 8         # per-image row stride after pool2       (5 valid + 3 pad)


def _lenet_kernel(bb,
                  x_ref, m1_ref, b1_ref, s1_ref, m2_ref, b2_ref, s2_ref,
                  f1_ref, bf1_ref, w2_ref, bf2_ref, w3_ref, bf3_ref,
                  out_ref, w1s_ref, p1s_ref, w2s_ref, p2s_ref):
    f32 = jnp.float32
    bf16 = jnp.bfloat16
    dot = functools.partial(jnp.dot, preferred_element_type=f32)

    m1_rows = bb * S_IN - (KS - 1)   # covers every valid conv1 output row
    m2_rows = bb * S_P1 - (KS - 1)   # covers every valid conv2 output row

    # ---- conv1 (5x5, pad=2, 1->6) + relu: banded matmuls, batch in M --------
    def lhs1(kh):
        return x_ref[kh:kh + m1_rows, :].astype(bf16)
    acc1 = dot(lhs1(0), m1_ref[0])
    for kh in range(1, KS):
        acc1 = acc1 + dot(lhs1(kh), m1_ref[kh])
    a1 = jnp.maximum(acc1 + b1_ref[...], 0.0).astype(bf16)     # (B*32-4, 168)

    # ---- maxpool 2x2: lane pairs via 0/1 selection matmuls, row pairs via
    # ---- stride-2 sublane reads of a stage scratch ---------------------------
    wmax1 = jnp.maximum(dot(a1, s1_ref[0]), dot(a1, s1_ref[1]))  # (B*32-4, 84)
    w1s_ref[0:m1_rows, :] = wmax1
    # Tail rows (never written, only feed garbage pooled rows) kept finite.
    w1s_ref[m1_rows:bb * S_IN, :] = jnp.zeros((KS - 1, P1 * C1), f32)
    p1 = jnp.maximum(w1s_ref[pl.ds(0, bb * S_P1, stride=2), :],
                     w1s_ref[pl.ds(1, bb * S_P1, stride=2), :])
    p1s_ref[...] = p1                                            # (B*16, 84)

    # ---- conv2 (5x5, 6->16) + relu -------------------------------------------
    def lhs2(kh):
        return p1s_ref[kh:kh + m2_rows, :].astype(bf16)
    acc2 = dot(lhs2(0), m2_ref[0])
    for kh in range(1, KS):
        acc2 = acc2 + dot(lhs2(kh), m2_ref[kh])
    a2 = jnp.maximum(acc2 + b2_ref[...], 0.0).astype(bf16)      # (B*16-4, 160)

    # ---- maxpool 2x2 ----------------------------------------------------------
    wmax2 = jnp.maximum(dot(a2, s2_ref[0]), dot(a2, s2_ref[1]))  # (B*16-4, 80)
    w2s_ref[0:m2_rows, :] = wmax2
    w2s_ref[m2_rows:bb * S_P1, :] = jnp.zeros((KS - 1, P2 * C2), f32)
    p2 = jnp.maximum(w2s_ref[pl.ds(0, bb * S_P2, stride=2), :],
                     w2s_ref[pl.ds(1, bb * S_P2, stride=2), :])
    p2s_ref[...] = p2                                            # (B*8, 80)

    # ---- fc1 (+relu): one (B,80)x(80,120) dot per pooled row index -----------
    def p2_rows(hp):
        return p2s_ref[pl.ds(hp, bb, stride=S_P2), :].astype(bf16)
    z = dot(p2_rows(0), f1_ref[0:P2 * C2, :])
    for hp in range(1, P2):
        z = z + dot(p2_rows(hp), f1_ref[hp * P2 * C2:(hp + 1) * P2 * C2, :])
    z = jnp.maximum(z + bf1_ref[...], 0.0).astype(bf16)          # (B, 120)

    # ---- fc2 (+relu), fc3 -----------------------------------------------------
    z = jnp.maximum(dot(z, w2_ref[...]) + bf2_ref[...], 0.0).astype(bf16)
    out_ref[...] = dot(z, w3_ref[...]) + bf3_ref[...]            # (B, 128) f32


def pack_lenet_params(w_c1, b_c1, w_c2, b_c2, w_f1, b_f1, w_f2, b_f2, w_f3, b_f3):
    """Repack torch-layout LeNet parameters into the kernel's matrices (host side)."""
    w_c1 = np.asarray(w_c1, np.float32)   # (6, 1, 5, 5)
    w_c2 = np.asarray(w_c2, np.float32)   # (16, 6, 5, 5)
    w_f1 = np.asarray(w_f1, np.float32)   # (120, 400)
    w_f2 = np.asarray(w_f2, np.float32)   # (84, 120)
    w_f3 = np.asarray(w_f3, np.float32)   # (10, 84)

    # conv1 banded matrices, w-padding folded in:  m1[kh] : (28, 28*6)
    m1 = np.zeros((KS, H_IN, H1 * C1), np.float32)
    for kh in range(KS):
        for w in range(H1):
            for kw in range(KS):
                win = w + kw - 2
                if 0 <= win < H_IN:
                    m1[kh, win, w * C1:(w + 1) * C1] = w_c1[:, 0, kh, kw]
    b1_row = np.tile(np.asarray(b_c1, np.float32), H1)[None, :]        # (1, 168)

    # conv2 banded matrices:  m2[kh] : (14*6, 10*16)
    m2 = np.zeros((KS, P1 * C1, H2 * C2), np.float32)
    for kh in range(KS):
        for w in range(H2):
            for kw in range(KS):
                win = w + kw
                m2[kh, win * C1:(win + 1) * C1, w * C2:(w + 1) * C2] = \
                    w_c2[:, :, kh, kw].T
    b2_row = np.tile(np.asarray(b_c2, np.float32), H2)[None, :]        # (1, 160)

    # 2x2 max-pool 0/1 lane-selection matrices (even / odd column).
    def lane_select(w_out, c):
        se = np.zeros((2 * w_out * c, w_out * c), np.float32)
        so = np.zeros((2 * w_out * c, w_out * c), np.float32)
        for wp in range(w_out):
            for ch in range(c):
                se[(2 * wp) * c + ch, wp * c + ch] = 1.0
                so[(2 * wp + 1) * c + ch, wp * c + ch] = 1.0
        return np.stack([se, so])

    s1 = lane_select(P1, C1)    # (2, 168, 84)
    s2 = lane_select(P2, C2)    # (2, 160, 80)

    # fc1: fold torch's (c, h, w) flatten order into a row permutation.
    w_f1r = w_f1.reshape(F1_OUT, C2, P2, P2)                           # (120,16,5,5)
    f1 = np.zeros((F1_IN, F1_OUT), np.float32)                         # (400, 120)
    for hp in range(P2):
        for wp in range(P2):
            base = hp * P2 * C2 + wp * C2
            f1[base:base + C2, :] = w_f1r[:, :, hp, wp].T
    bf1_row = np.asarray(b_f1, np.float32)[None, :]                    # (1, 120)

    w2t = w_f2.T.copy()                                                # (120, 84)
    bf2_row = np.asarray(b_f2, np.float32)[None, :]                    # (1, 84)

    # fc3 padded to a full 128-lane output tile (sliced outside the kernel).
    w3t = np.zeros((F2_OUT, OUT_LANES), np.float32)                    # (84, 128)
    w3t[:, :NUM_CLASSES] = w_f3.T
    bf3_row = np.zeros((1, OUT_LANES), np.float32)
    bf3_row[0, :NUM_CLASSES] = np.asarray(b_f3, np.float32)

    bf = lambda a: jnp.asarray(a, dtype=jnp.bfloat16)
    f32 = lambda a: jnp.asarray(a, dtype=jnp.float32)
    return (bf(m1), f32(b1_row), bf(s1),
            bf(m2), f32(b2_row), bf(s2),
            bf(f1), f32(bf1_row),
            bf(w2t), f32(bf2_row),
            bf(w3t), f32(bf3_row))


def _round_up(x, m):
    return (x + m - 1) // m * m


def lenet_pallas(x_nchw, packed, block_b=128):
    """Batched LeNet forward. block_b images per grid step (multiple of 8)."""
    n = x_nchw.shape[0]
    assert x_nchw.shape[1:] == (1, H_IN, H_IN)

    bb = max(8, min(_round_up(n, 8), (block_b // 8) * 8))
    n_pad = _round_up(n, bb)
    n_blocks = n_pad // bb

    x = x_nchw.reshape(n, H_IN, H_IN).astype(jnp.float32)
    if n_pad != n:
        x = jnp.pad(x, ((0, n_pad - n), (0, 0), (0, 0)))
    # Per-image 2-row zero h-halo, flattened to a (N*32, 28) slab so the
    # conv1 LHS is the pipelined input block itself (no in-kernel copy/memset).
    xp = jnp.pad(x, ((0, 0), (2, 2), (0, 0)))
    x2d = xp.reshape(n_pad * S_IN, H_IN)

    def const_spec(arr):
        nd = arr.ndim
        return pl.BlockSpec(arr.shape, lambda i: (0,) * nd)

    in_specs = [pl.BlockSpec((bb * S_IN, H_IN), lambda i: (i, 0))]
    in_specs += [const_spec(p) for p in packed]
    out_spec = pl.BlockSpec((bb, OUT_LANES), lambda i: (i, 0))

    # VMEM budget from actual block sizes (double-buffered I/O + resident
    # weights + stage scratches + headroom for f32 accumulators), clamped so
    # it also fits v7x's 64 MiB physical VMEM.
    scratch_bytes = bb * 4 * (S_IN * P1 * C1 + S_P1 * P1 * C1 +
                              S_P1 * P2 * C2 + S_P2 * P2 * C2)
    weight_bytes = sum(int(np.prod(p.shape)) * p.dtype.itemsize for p in packed)
    io_bytes = bb * S_IN * H_IN * 4 + bb * OUT_LANES * 4
    est = 2 * io_bytes + 2 * weight_bytes + scratch_bytes + bb * 128 * 1024
    vmem_limit = int(min(48 * 1024 * 1024, max(32 * 1024 * 1024, est)))

    out = pl.pallas_call(
        functools.partial(_lenet_kernel, bb),
        grid=(n_blocks,),
        in_specs=in_specs,
        out_specs=out_spec,
        out_shape=jax.ShapeDtypeStruct((n_pad, OUT_LANES), jnp.float32),
        scratch_shapes=[
            pltpu.VMEM((bb * S_IN, P1 * C1), jnp.float32),   # pre-rowpool stage 1
            pltpu.VMEM((bb * S_P1, P1 * C1), jnp.float32),   # pooled stage 1
            pltpu.VMEM((bb * S_P1, P2 * C2), jnp.float32),   # pre-rowpool stage 2
            pltpu.VMEM((bb * S_P2, P2 * C2), jnp.float32),   # pooled stage 2
        ],
        compiler_params=pltpu.CompilerParams(
            dimension_semantics=("parallel",),
            vmem_limit_bytes=vmem_limit),
    )(x2d, *packed)
    return out[:n, :NUM_CLASSES]


# ------------------- pure-JAX reference (mirrors torch forward) --------------
def lenet_ref(x, params):
    w_c1, b_c1, w_c2, b_c2, w_f1, b_f1, w_f2, b_f2, w_f3, b_f3 = params

    def conv(x, w, b, pad):
        y = lax.conv_general_dilated(
            x, w, window_strides=(1, 1), padding=[(pad, pad), (pad, pad)],
            dimension_numbers=('NCHW', 'OIHW', 'NCHW'))
        return y + b.reshape(1, -1, 1, 1)

    def maxpool2(x):
        return lax.reduce_window(x, -jnp.inf, lax.max,
                                 (1, 1, 2, 2), (1, 1, 2, 2), 'VALID')

    out = maxpool2(jax.nn.relu(conv(x, w_c1, b_c1, 2)))
    out = maxpool2(jax.nn.relu(conv(out, w_c2, b_c2, 0)))
    out = out.reshape(out.shape[0], -1)
    out = jax.nn.relu(out @ w_f1.T + b_f1)
    out = jax.nn.relu(out @ w_f2.T + b_f2)
    return out @ w_f3.T + b_f3


if __name__ == "__main__":
    N = 16
    BLOCK_B = 8   # grid = 2 blocks -> both TensorCores are used on v7x
    key = jax.random.PRNGKey(0)
    keys = jax.random.split(key, 11)

    x = jax.random.normal(keys[0], (N, 1, H_IN, H_IN), dtype=jnp.float32)
    w_c1 = 0.1 * jax.random.normal(keys[1], (C1, 1, KS, KS), dtype=jnp.float32)
    b_c1 = 0.1 * jax.random.normal(keys[2], (C1,), dtype=jnp.float32)
    w_c2 = 0.1 * jax.random.normal(keys[3], (C2, C1, KS, KS), dtype=jnp.float32)
    b_c2 = 0.1 * jax.random.normal(keys[4], (C2,), dtype=jnp.float32)
    w_f1 = 0.05 * jax.random.normal(keys[5], (F1_OUT, F1_IN), dtype=jnp.float32)
    b_f1 = 0.1 * jax.random.normal(keys[6], (F1_OUT,), dtype=jnp.float32)
    w_f2 = 0.05 * jax.random.normal(keys[7], (F2_OUT, F1_OUT), dtype=jnp.float32)
    b_f2 = 0.1 * jax.random.normal(keys[8], (F2_OUT,), dtype=jnp.float32)
    w_f3 = 0.05 * jax.random.normal(keys[9], (NUM_CLASSES, F2_OUT), dtype=jnp.float32)
    b_f3 = 0.1 * jax.random.normal(keys[10], (NUM_CLASSES,), dtype=jnp.float32)

    params = (w_c1, b_c1, w_c2, b_c2, w_f1, b_f1, w_f2, b_f2, w_f3, b_f3)
    packed = pack_lenet_params(*[np.asarray(p) for p in params])

    out = lenet_pallas(x, packed, block_b=BLOCK_B)
    out = jax.block_until_ready(out)

    ref = lenet_ref(x, params)
    assert out.shape == (N, NUM_CLASSES)
    err = float(jnp.max(jnp.abs(out - ref)))
    # bf16 MXU operands with f32 accumulation -> ~1e-2 parity vs f32 reference.
    assert jnp.allclose(out, ref, atol=5e-2, rtol=5e-2), f"max abs err {err}"

    print("KERNEL_OK")
</pallas_src>

<mosaic_0001>
module attributes {stable_mosaic.version = 11 : i64} {
  func.func @_lenet_kernel(%arg0: i32, %arg1: memref<256x28xf32, #tpu.memory_space<vmem>>, %arg2: memref<5x28x168xbf16, #tpu.memory_space<vmem>>, %arg3: memref<1x168xf32, #tpu.memory_space<vmem>>, %arg4: memref<2x168x84xbf16, #tpu.memory_space<vmem>>, %arg5: memref<5x84x160xbf16, #tpu.memory_space<vmem>>, %arg6: memref<1x160xf32, #tpu.memory_space<vmem>>, %arg7: memref<2x160x80xbf16, #tpu.memory_space<vmem>>, %arg8: memref<400x120xbf16, #tpu.memory_space<vmem>>, %arg9: memref<1x120xf32, #tpu.memory_space<vmem>>, %arg10: memref<120x84xbf16, #tpu.memory_space<vmem>>, %arg11: memref<1x84xf32, #tpu.memory_space<vmem>>, %arg12: memref<84x128xbf16, #tpu.memory_space<vmem>>, %arg13: memref<1x128xf32, #tpu.memory_space<vmem>>, %arg14: memref<8x128xf32, #tpu.memory_space<vmem>>, %arg15: memref<256x84xf32, #tpu.memory_space<vmem>>, %arg16: memref<128x84xf32, #tpu.memory_space<vmem>>, %arg17: memref<128x80xf32, #tpu.memory_space<vmem>>, %arg18: memref<64x80xf32, #tpu.memory_space<vmem>>) attributes {dimension_semantics = [#tpu.dimension_semantics<parallel>], iteration_bounds = array<i64: 2>, scalar_prefetch = 0 : i64, scratch_operands = 4 : i64, tpu.core_type = #tpu.core_type<tc>, window_params = [{transform_indices = @transform_0, window_bounds = array<i64: 256, 28>}, {pipeline_mode = #tpu.pipeline_mode<synchronous>, transform_indices = @transform_1, window_bounds = array<i64: 5, 28, 168>}, {pipeline_mode = #tpu.pipeline_mode<synchronous>, transform_indices = @transform_2, window_bounds = array<i64: 1, 168>}, {pipeline_mode = #tpu.pipeline_mode<synchronous>, transform_indices = @transform_3, window_bounds = array<i64: 2, 168, 84>}, {pipeline_mode = #tpu.pipeline_mode<synchronous>, transform_indices = @transform_4, window_bounds = array<i64: 5, 84, 160>}, {pipeline_mode = #tpu.pipeline_mode<synchronous>, transform_indices = @transform_5, window_bounds = array<i64: 1, 160>}, {pipeline_mode = #tpu.pipeline_mode<synchronous>, transform_indices = @transform_6, window_bounds = array<i64: 2, 160, 80>}, {pipeline_mode = #tpu.pipeline_mode<synchronous>, transform_indices = @transform_7, window_bounds = array<i64: 400, 120>}, {pipeline_mode = #tpu.pipeline_mode<synchronous>, transform_indices = @transform_8, window_bounds = array<i64: 1, 120>}, {pipeline_mode = #tpu.pipeline_mode<synchronous>, transform_indices = @transform_9, window_bounds = array<i64: 120, 84>}, {pipeline_mode = #tpu.pipeline_mode<synchronous>, transform_indices = @transform_10, window_bounds = array<i64: 1, 84>}, {pipeline_mode = #tpu.pipeline_mode<synchronous>, transform_indices = @transform_11, window_bounds = array<i64: 84, 128>}, {pipeline_mode = #tpu.pipeline_mode<synchronous>, transform_indices = @transform_12, window_bounds = array<i64: 1, 128>}, {transform_indices = @transform_13, window_bounds = array<i64: 8, 128>}]} {
    %c0 = arith.constant 0 : index
    %c0_0 = arith.constant 0 : index
    %0 = vector.load %arg1[%c0, %c0_0] : memref<256x28xf32, #tpu.memory_space<vmem>>, vector<252x28xf32>
    %1 = arith.truncf %0 : vector<252x28xf32> to vector<252x28xbf16>
    %c0_1 = arith.constant 0 : index
    %c0_2 = arith.constant 0 : index
    %c0_3 = arith.constant 0 : index
    %2 = vector.load %arg2[%c0_1, %c0_2, %c0_3] : memref<5x28x168xbf16, #tpu.memory_space<vmem>>, vector<1x28x168xbf16>
    %3 = vector.shape_cast %2 : vector<1x28x168xbf16> to vector<28x168xbf16>
    %cst = arith.constant dense<0.000000e+00> : vector<252x168xf32>
    %4 = tpu.matmul %1, %3, %cst {dimension_numbers = #tpu.dot_dimension_numbers<[1], [0], [0], [1], [0, 0, 1, 1], [], []>} : vector<252x28xbf16>, vector<28x168xbf16>, vector<252x168xf32> -> vector<252x168xf32>
    %c1 = arith.constant 1 : index
    %c0_4 = arith.constant 0 : index
    %5 = vector.load %arg1[%c1, %c0_4] : memref<256x28xf32, #tpu.memory_space<vmem>>, vector<252x28xf32>
    %6 = arith.truncf %5 : vector<252x28xf32> to vector<252x28xbf16>
    %c1_5 = arith.constant 1 : index
    %c0_6 = arith.constant 0 : index
    %c0_7 = arith.constant 0 : index
    %7 = vector.load %arg2[%c1_5, %c0_6, %c0_7] : memref<5x28x168xbf16, #tpu.memory_space<vmem>>, vector<1x28x168xbf16>
    %8 = vector.shape_cast %7 : vector<1x28x168xbf16> to vector<28x168xbf16>
    %cst_8 = arith.constant dense<0.000000e+00> : vector<252x168xf32>
    %9 = tpu.matmul %6, %8, %cst_8 {dimension_numbers = #tpu.dot_dimension_numbers<[1], [0], [0], [1], [0, 0, 1, 1], [], []>} : vector<252x28xbf16>, vector<28x168xbf16>, vector<252x168xf32> -> vector<252x168xf32>
    %10 = arith.addf %4, %9 : vector<252x168xf32>
    %c2 = arith.constant 2 : index
    %c0_9 = arith.constant 0 : index
    %11 = vector.load %arg1[%c2, %c0_9] : memref<256x28xf32, #tpu.memory_space<vmem>>, vector<252x28xf32>
    %12 = arith.truncf %11 : vector<252x28xf32> to vector<252x28xbf16>
    %c2_10 = arith.constant 2 : index
    %c0_11 = arith.constant 0 : index
    %c0_12 = arith.constant 0 : index
    %13 = vector.load %arg2[%c2_10, %c0_11, %c0_12] : memref<5x28x168xbf16, #tpu.memory_space<vmem>>, vector<1x28x168xbf16>
    %14 = vector.shape_cast %13 : vector<1x28x168xbf16> to vector<28x168xbf16>
    %cst_13 = arith.constant dense<0.000000e+00> : vector<252x168xf32>
    %15 = tpu.matmul %12, %14, %cst_13 {dimension_numbers = #tpu.dot_dimension_numbers<[1], [0], [0], [1], [0, 0, 1, 1], [], []>} : vector<252x28xbf16>, vector<28x168xbf16>, vector<252x168xf32> -> vector<252x168xf32>
    %16 = arith.addf %10, %15 : vector<252x168xf32>
    %c3 = arith.constant 3 : index
    %c0_14 = arith.constant 0 : index
    %17 = vector.load %arg1[%c3, %c0_14] : memref<256x28xf32, #tpu.memory_space<vmem>>, vector<252x28xf32>
    %18 = arith.truncf %17 : vector<252x28xf32> to vector<252x28xbf16>
    %c3_15 = arith.constant 3 : index
    %c0_16 = arith.constant 0 : index
    %c0_17 = arith.constant 0 : index
    %19 = vector.load %arg2[%c3_15, %c0_16, %c0_17] : memref<5x28x168xbf16, #tpu.memory_space<vmem>>, vector<1x28x168xbf16>
    %20 = vector.shape_cast %19 : vector<1x28x168xbf16> to vector<28x168xbf16>
    %cst_18 = arith.constant dense<0.000000e+00> : vector<252x168xf32>
    %21 = tpu.matmul %18, %20, %cst_18 {dimension_numbers = #tpu.dot_dimension_numbers<[1], [0], [0], [1], [0, 0, 1, 1], [], []>} : vector<252x28xbf16>, vector<28x168xbf16>, vector<252x168xf32> -> vector<252x168xf32>
    %22 = arith.addf %16, %21 : vector<252x168xf32>
    %c4 = arith.constant 4 : index
    %c0_19 = arith.constant 0 : index
    %23 = vector.load %arg1[%c4, %c0_19] : memref<256x28xf32, #tpu.memory_space<vmem>>, vector<252x28xf32>
    %24 = arith.truncf %23 : vector<252x28xf32> to vector<252x28xbf16>
    %c4_20 = arith.constant 4 : index
    %c0_21 = arith.constant 0 : index
    %c0_22 = arith.constant 0 : index
    %25 = vector.load %arg2[%c4_20, %c0_21, %c0_22] : memref<5x28x168xbf16, #tpu.memory_space<vmem>>, vector<1x28x168xbf16>
    %26 = vector.shape_cast %25 : vector<1x28x168xbf16> to vector<28x168xbf16>
    %cst_23 = arith.constant dense<0.000000e+00> : vector<252x168xf32>
    %27 = tpu.matmul %24, %26, %cst_23 {dimension_numbers = #tpu.dot_dimension_numbers<[1], [0], [0], [1], [0, 0, 1, 1], [], []>} : vector<252x28xbf16>, vector<28x168xbf16>, vector<252x168xf32> -> vector<252x168xf32>
    %28 = arith.addf %22, %27 : vector<252x168xf32>
    %c0_24 = arith.constant 0 : index
    %c0_25 = arith.constant 0 : index
    %29 = vector.load %arg3[%c0_24, %c0_25] : memref<1x168xf32, #tpu.memory_space<vmem>>, vector<1x168xf32>
    %30 = vector.broadcast %29 : vector<1x168xf32> to vector<252x168xf32>
    %31 = arith.addf %28, %30 : vector<252x168xf32>
    %cst_26 = arith.constant 0.000000e+00 : f32
    %32 = vector.broadcast %cst_26 : f32 to vector<252x168xf32>
    %33 = arith.maximumf %31, %32 : vector<252x168xf32>
    %34 = arith.truncf %33 : vector<252x168xf32> to vector<252x168xbf16>
    %c0_27 = arith.constant 0 : index
    %c0_28 = arith.constant 0 : index
    %c0_29 = arith.constant 0 : index
    %35 = vector.load %arg4[%c0_27, %c0_28, %c0_29] : memref<2x168x84xbf16, #tpu.memory_space<vmem>>, vector<1x168x84xbf16>
    %36 = vector.shape_cast %35 : vector<1x168x84xbf16> to vector<168x84xbf16>
    %cst_30 = arith.constant dense<0.000000e+00> : vector<252x84xf32>
    %37 = tpu.matmul %34, %36, %cst_30 {dimension_numbers = #tpu.dot_dimension_numbers<[1], [0], [0], [1], [0, 0, 1, 1], [], []>} : vector<252x168xbf16>, vector<168x84xbf16>, vector<252x84xf32> -> vector<252x84xf32>
    %c1_31 = arith.constant 1 : index
    %c0_32 = arith.constant 0 : index
    %c0_33 = arith.constant 0 : index
    %38 = vector.load %arg4[%c1_31, %c0_32, %c0_33] : memref<2x168x84xbf16, #tpu.memory_space<vmem>>, vector<1x168x84xbf16>
    %39 = vector.shape_cast %38 : vector<1x168x84xbf16> to vector<168x84xbf16>
    %cst_34 = arith.constant dense<0.000000e+00> : vector<252x84xf32>
    %40 = tpu.matmul %34, %39, %cst_34 {dimension_numbers = #tpu.dot_dimension_numbers<[1], [0], [0], [1], [0, 0, 1, 1], [], []>} : vector<252x168xbf16>, vector<168x84xbf16>, vector<252x84xf32> -> vector<252x84xf32>
    %41 = arith.maximumf %37, %40 : vector<252x84xf32>
    %c0_35 = arith.constant 0 : index
    %c0_36 = arith.constant 0 : index
    %42 = vector.load %arg15[%c0_35, %c0_36] : memref<256x84xf32, #tpu.memory_space<vmem>>, vector<252x84xf32>
    tpu.vector_store %arg15[%c0_35, %c0_36], %41 {strides = array<i32>} : memref<256x84xf32, #tpu.memory_space<vmem>>, vector<252x84xf32>,
    %cst_37 = arith.constant 0.000000e+00 : f32
    %43 = vector.broadcast %cst_37 : f32 to vector<4x84xf32>
    %c252 = arith.constant 252 : index
    %c0_38 = arith.constant 0 : index
    %44 = vector.load %arg15[%c252, %c0_38] : memref<256x84xf32, #tpu.memory_space<vmem>>, vector<4x84xf32>
    tpu.vector_store %arg15[%c252, %c0_38], %43 {strides = array<i32>} : memref<256x84xf32, #tpu.memory_space<vmem>>, vector<4x84xf32>,
    %c0_39 = arith.constant 0 : index
    %c0_40 = arith.constant 0 : index
    %45 = tpu.strided_load %arg15[%c0_39, %c0_40] {strides = array<i32: 2, 1>} : memref<256x84xf32, #tpu.memory_space<vmem>>, vector<128x84xf32>
    %c1_41 = arith.constant 1 : index
    %c0_42 = arith.constant 0 : index
    %46 = tpu.strided_load %arg15[%c1_41, %c0_42] {strides = array<i32: 2, 1>} : memref<256x84xf32, #tpu.memory_space<vmem>>, vector<128x84xf32>
    %47 = arith.maximumf %45, %46 : vector<128x84xf32>
    %c0_43 = arith.constant 0 : index
    %c0_44 = arith.constant 0 : index
    %48 = vector.load %arg16[%c0_43, %c0_44] : memref<128x84xf32, #tpu.memory_space<vmem>>, vector<128x84xf32>
    tpu.vector_store %arg16[%c0_43, %c0_44], %47 {strides = array<i32>} : memref<128x84xf32, #tpu.memory_space<vmem>>, vector<128x84xf32>,
    %c0_45 = arith.constant 0 : index
    %c0_46 = arith.constant 0 : index
    %49 = vector.load %arg16[%c0_45, %c0_46] : memref<128x84xf32, #tpu.memory_space<vmem>>, vector<124x84xf32>
    %50 = arith.truncf %49 : vector<124x84xf32> to vector<124x84xbf16>
    %c0_47 = arith.constant 0 : index
    %c0_48 = arith.constant 0 : index
    %c0_49 = arith.constant 0 : index
    %51 = vector.load %arg5[%c0_47, %c0_48, %c0_49] : memref<5x84x160xbf16, #tpu.memory_space<vmem>>, vector<1x84x160xbf16>
    %52 = vector.shape_cast %51 : vector<1x84x160xbf16> to vector<84x160xbf16>
    %cst_50 = arith.constant dense<0.000000e+00> : vector<124x160xf32>
    %53 = tpu.matmul %50, %52, %cst_50 {dimension_numbers = #tpu.dot_dimension_numbers<[1], [0], [0], [1], [0, 0, 1, 1], [], []>} : vector<124x84xbf16>, vector<84x160xbf16>, vector<124x160xf32> -> vector<124x160xf32>
    %c1_51 = arith.constant 1 : index
    %c0_52 = arith.constant 0 : index
    %54 = vector.load %arg16[%c1_51, %c0_52] : memref<128x84xf32, #tpu.memory_space<vmem>>, vector<124x84xf32>
    %55 = arith.truncf %54 : vector<124x84xf32> to vector<124x84xbf16>
    %c1_53 = arith.constant 1 : index
    %c0_54 = arith.constant 0 : index
    %c0_55 = arith.constant 0 : index
    %56 = vector.load %arg5[%c1_53, %c0_54, %c0_55] : memref<5x84x160xbf16, #tpu.memory_space<vmem>>, vector<1x84x160xbf16>
    %57 = vector.shape_cast %56 : vector<1x84x160xbf16> to vector<84x160xbf16>
    %cst_56 = arith.constant dense<0.000000e+00> : vector<124x160xf32>
    %58 = tpu.matmul %55, %57, %cst_56 {dimension_numbers = #tpu.dot_dimension_numbers<[1], [0], [0], [1], [0, 0, 1, 1], [], []>} : vector<124x84xbf16>, vector<84x160xbf16>, vector<124x160xf32> -> vector<124x160xf32>
    %59 = arith.addf %53, %58 : vector<124x160xf32>
    %c2_57 = arith.constant 2 : index
    %c0_58 = arith.constant 0 : index
    %60 = vector.load %arg16[%c2_57, %c0_58] : memref<128x84xf32, #tpu.memory_space<vmem>>, vector<124x84xf32>
    %61 = arith.truncf %60 : vector<124x84xf32> to vector<124x84xbf16>
    %c2_59 = arith.constant 2 : index
    %c0_60 = arith.constant 0 : index
    %c0_61 = arith.constant 0 : index
    %62 = vector.load %arg5[%c2_59, %c0_60, %c0_61] : memref<5x84x160xbf16, #tpu.memory_space<vmem>>, vector<1x84x160xbf16>
    %63 = vector.shape_cast %62 : vector<1x84x160xbf16> to vector<84x160xbf16>
    %cst_62 = arith.constant dense<0.000000e+00> : vector<124x160xf32>
    %64 = tpu.matmul %61, %63, %cst_62 {dimension_numbers = #tpu.dot_dimension_numbers<[1], [0], [0], [1], [0, 0, 1, 1], [], []>} : vector<124x84xbf16>, vector<84x160xbf16>, vector<124x160xf32> -> vector<124x160xf32>
    %65 = arith.addf %59, %64 : vector<124x160xf32>
    %c3_63 = arith.constant 3 : index
    %c0_64 = arith.constant 0 : index
    %66 = vector.load %arg16[%c3_63, %c0_64] : memref<128x84xf32, #tpu.memory_space<vmem>>, vector<124x84xf32>
    %67 = arith.truncf %66 : vector<124x84xf32> to vector<124x84xbf16>
    %c3_65 = arith.constant 3 : index
    %c0_66 = arith.constant 0 : index
    %c0_67 = arith.constant 0 : index
    %68 = vector.load %arg5[%c3_65, %c0_66, %c0_67] : memref<5x84x160xbf16, #tpu.memory_space<vmem>>, vector<1x84x160xbf16>
    %69 = vector.shape_cast %68 : vector<1x84x160xbf16> to vector<84x160xbf16>
    %cst_68 = arith.constant dense<0.000000e+00> : vector<124x160xf32>
    %70 = tpu.matmul %67, %69, %cst_68 {dimension_numbers = #tpu.dot_dimension_numbers<[1], [0], [0], [1], [0, 0, 1, 1], [], []>} : vector<124x84xbf16>, vector<84x160xbf16>, vector<124x160xf32> -> vector<124x160xf32>
    %71 = arith.addf %65, %70 : vector<124x160xf32>
    %c4_69 = arith.constant 4 : index
    %c0_70 = arith.constant 0 : index
    %72 = vector.load %arg16[%c4_69, %c0_70] : memref<128x84xf32, #tpu.memory_space<vmem>>, vector<124x84xf32>
    %73 = arith.truncf %72 : vector<124x84xf32> to vector<124x84xbf16>
    %c4_71 = arith.constant 4 : index
    %c0_72 = arith.constant 0 : index
    %c0_73 = arith.constant 0 : index
    %74 = vector.load %arg5[%c4_71, %c0_72, %c0_73] : memref<5x84x160xbf16, #tpu.memory_space<vmem>>, vector<1x84x160xbf16>
    %75 = vector.shape_cast %74 : vector<1x84x160xbf16> to vector<84x160xbf16>
    %cst_74 = arith.constant dense<0.000000e+00> : vector<124x160xf32>
    %76 = tpu.matmul %73, %75, %cst_74 {dimension_numbers = #tpu.dot_dimension_numbers<[1], [0], [0], [1], [0, 0, 1, 1], [], []>} : vector<124x84xbf16>, vector<84x160xbf16>, vector<124x160xf32> -> vector<124x160xf32>
    %77 = arith.addf %71, %76 : vector<124x160xf32>
    %c0_75 = arith.constant 0 : index
    %c0_76 = arith.constant 0 : index
    %78 = vector.load %arg6[%c0_75, %c0_76] : memref<1x160xf32, #tpu.memory_space<vmem>>, vector<1x160xf32>
    %79 = vector.broadcast %78 : vector<1x160xf32> to vector<124x160xf32>
    %80 = arith.addf %77, %79 : vector<124x160xf32>
    %cst_77 = arith.constant 0.000000e+00 : f32
    %81 = vector.broadcast %cst_77 : f32 to vector<124x160xf32>
    %82 = arith.maximumf %80, %81 : vector<124x160xf32>
    %83 = arith.truncf %82 : vector<124x160xf32> to vector<124x160xbf16>
    %c0_78 = arith.constant 0 : index
    %c0_79 = arith.constant 0 : index
    %c0_80 = arith.constant 0 : index
    %84 = vector.load %arg7[%c0_78, %c0_79, %c0_80] : memref<2x160x80xbf16, #tpu.memory_space<vmem>>, vector<1x160x80xbf16>
    %85 = vector.shape_cast %84 : vector<1x160x80xbf16> to vector<160x80xbf16>
    %cst_81 = arith.constant dense<0.000000e+00> : vector<124x80xf32>
    %86 = tpu.matmul %83, %85, %cst_81 {dimension_numbers = #tpu.dot_dimension_numbers<[1], [0], [0], [1], [0, 0, 1, 1], [], []>} : vector<124x160xbf16>, vector<160x80xbf16>, vector<124x80xf32> -> vector<124x80xf32>
    %c1_82 = arith.constant 1 : index
    %c0_83 = arith.constant 0 : index
    %c0_84 = arith.constant 0 : index
    %87 = vector.load %arg7[%c1_82, %c0_83, %c0_84] : memref<2x160x80xbf16, #tpu.memory_space<vmem>>, vector<1x160x80xbf16>
    %88 = vector.shape_cast %87 : vector<1x160x80xbf16> to vector<160x80xbf16>
    %cst_85 = arith.constant dense<0.000000e+00> : vector<124x80xf32>
    %89 = tpu.matmul %83, %88, %cst_85 {dimension_numbers = #tpu.dot_dimension_numbers<[1], [0], [0], [1], [0, 0, 1, 1], [], []>} : vector<124x160xbf16>, vector<160x80xbf16>, vector<124x80xf32> -> vector<124x80xf32>
    %90 = arith.maximumf %86, %89 : vector<124x80xf32>
    %c0_86 = arith.constant 0 : index
    %c0_87 = arith.constant 0 : index
    %91 = vector.load %arg17[%c0_86, %c0_87] : memref<128x80xf32, #tpu.memory_space<vmem>>, vector<124x80xf32>
    tpu.vector_store %arg17[%c0_86, %c0_87], %90 {strides = array<i32>} : memref<128x80xf32, #tpu.memory_space<vmem>>, vector<124x80xf32>,
    %cst_88 = arith.constant 0.000000e+00 : f32
    %92 = vector.broadcast %cst_88 : f32 to vector<4x80xf32>
    %c124 = arith.constant 124 : index
    %c0_89 = arith.constant 0 : index
    %93 = vector.load %arg17[%c124, %c0_89] : memref<128x80xf32, #tpu.memory_space<vmem>>, vector<4x80xf32>
    tpu.vector_store %arg17[%c124, %c0_89], %92 {strides = array<i32>} : memref<128x80xf32, #tpu.memory_space<vmem>>, vector<4x80xf32>,
    %c0_90 = arith.constant 0 : index
    %c0_91 = arith.constant 0 : index
    %94 = tpu.strided_load %arg17[%c0_90, %c0_91] {strides = array<i32: 2, 1>} : memref<128x80xf32, #tpu.memory_space<vmem>>, vector<64x80xf32>
    %c1_92 = arith.constant 1 : index
    %c0_93 = arith.constant 0 : index
    %95 = tpu.strided_load %arg17[%c1_92, %c0_93] {strides = array<i32: 2, 1>} : memref<128x80xf32, #tpu.memory_space<vmem>>, vector<64x80xf32>
    %96 = arith.maximumf %94, %95 : vector<64x80xf32>
    %c0_94 = arith.constant 0 : index
    %c0_95 = arith.constant 0 : index
    %97 = vector.load %arg18[%c0_94, %c0_95] : memref<64x80xf32, #tpu.memory_space<vmem>>, vector<64x80xf32>
    tpu.vector_store %arg18[%c0_94, %c0_95], %96 {strides = array<i32>} : memref<64x80xf32, #tpu.memory_space<vmem>>, vector<64x80xf32>,
    %c0_96 = arith.constant 0 : index
    %c0_97 = arith.constant 0 : index
    %98 = tpu.strided_load %arg18[%c0_96, %c0_97] {strides = array<i32: 8, 1>} : memref<64x80xf32, #tpu.memory_space<vmem>>, vector<8x80xf32>
    %99 = arith.truncf %98 : vector<8x80xf32> to vector<8x80xbf16>
    %c0_98 = arith.constant 0 : index
    %c0_99 = arith.constant 0 : index
    %100 = vector.load %arg8[%c0_98, %c0_99] : memref<400x120xbf16, #tpu.memory_space<vmem>>, vector<80x120xbf16>
    %cst_100 = arith.constant dense<0.000000e+00> : vector<8x120xf32>
    %101 = tpu.matmul %99, %100, %cst_100 {dimension_numbers = #tpu.dot_dimension_numbers<[1], [0], [0], [1], [0, 0, 1, 1], [], []>} : vector<8x80xbf16>, vector<80x120xbf16>, vector<8x120xf32> -> vector<8x120xf32>
    %c1_101 = arith.constant 1 : index
    %c0_102 = arith.constant 0 : index
    %102 = tpu.strided_load %arg18[%c1_101, %c0_102] {strides = array<i32: 8, 1>} : memref<64x80xf32, #tpu.memory_space<vmem>>, vector<8x80xf32>
    %103 = arith.truncf %102 : vector<8x80xf32> to vector<8x80xbf16>
    %c80 = arith.constant 80 : index
    %c0_103 = arith.constant 0 : index
    %104 = vector.load %arg8[%c80, %c0_103] : memref<400x120xbf16, #tpu.memory_space<vmem>>, vector<80x120xbf16>
    %cst_104 = arith.constant dense<0.000000e+00> : vector<8x120xf32>
    %105 = tpu.matmul %103, %104, %cst_104 {dimension_numbers = #tpu.dot_dimension_numbers<[1], [0], [0], [1], [0, 0, 1, 1], [], []>} : vector<8x80xbf16>, vector<80x120xbf16>, vector<8x120xf32> -> vector<8x120xf32>
    %106 = arith.addf %101, %105 : vector<8x120xf32>
    %c2_105 = arith.constant 2 : index
    %c0_106 = arith.constant 0 : index
    %107 = tpu.strided_load %arg18[%c2_105, %c0_106] {strides = array<i32: 8, 1>} : memref<64x80xf32, #tpu.memory_space<vmem>>, vector<8x80xf32>
    %108 = arith.truncf %107 : vector<8x80xf32> to vector<8x80xbf16>
    %c160 = arith.constant 160 : index
    %c0_107 = arith.constant 0 : index
    %109 = vector.load %arg8[%c160, %c0_107] : memref<400x120xbf16, #tpu.memory_space<vmem>>, vector<80x120xbf16>
    %cst_108 = arith.constant dense<0.000000e+00> : vector<8x120xf32>
    %110 = tpu.matmul %108, %109, %cst_108 {dimension_numbers = #tpu.dot_dimension_numbers<[1], [0], [0], [1], [0, 0, 1, 1], [], []>} : vector<8x80xbf16>, vector<80x120xbf16>, vector<8x120xf32> -> vector<8x120xf32>
    %111 = arith.addf %106, %110 : vector<8x120xf32>
    %c3_109 = arith.constant 3 : index
    %c0_110 = arith.constant 0 : index
    %112 = tpu.strided_load %arg18[%c3_109, %c0_110] {strides = array<i32: 8, 1>} : memref<64x80xf32, #tpu.memory_space<vmem>>, vector<8x80xf32>
    %113 = arith.truncf %112 : vector<8x80xf32> to vector<8x80xbf16>
    %c240 = arith.constant 240 : index
    %c0_111 = arith.constant 0 : index
    %114 = vector.load %arg8[%c240, %c0_111] : memref<400x120xbf16, #tpu.memory_space<vmem>>, vector<80x120xbf16>
    %cst_112 = arith.constant dense<0.000000e+00> : vector<8x120xf32>
    %115 = tpu.matmul %113, %114, %cst_112 {dimension_numbers = #tpu.dot_dimension_numbers<[1], [0], [0], [1], [0, 0, 1, 1], [], []>} : vector<8x80xbf16>, vector<80x120xbf16>, vector<8x120xf32> -> vector<8x120xf32>
    %116 = arith.addf %111, %115 : vector<8x120xf32>
    %c4_113 = arith.constant 4 : index
    %c0_114 = arith.constant 0 : index
    %117 = tpu.strided_load %arg18[%c4_113, %c0_114] {strides = array<i32: 8, 1>} : memref<64x80xf32, #tpu.memory_space<vmem>>, vector<8x80xf32>
    %118 = arith.truncf %117 : vector<8x80xf32> to vector<8x80xbf16>
    %c320 = arith.constant 320 : index
    %c0_115 = arith.constant 0 : index
    %119 = vector.load %arg8[%c320, %c0_115] : memref<400x120xbf16, #tpu.memory_space<vmem>>, vector<80x120xbf16>
    %cst_116 = arith.constant dense<0.000000e+00> : vector<8x120xf32>
    %120 = tpu.matmul %118, %119, %cst_116 {dimension_numbers = #tpu.dot_dimension_numbers<[1], [0], [0], [1], [0, 0, 1, 1], [], []>} : vector<8x80xbf16>, vector<80x120xbf16>, vector<8x120xf32> -> vector<8x120xf32>
    %121 = arith.addf %116, %120 : vector<8x120xf32>
    %c0_117 = arith.constant 0 : index
    %c0_118 = arith.constant 0 : index
    %122 = vector.load %arg9[%c0_117, %c0_118] : memref<1x120xf32, #tpu.memory_space<vmem>>, vector<1x120xf32>
    %123 = vector.broadcast %122 : vector<1x120xf32> to vector<8x120xf32>
    %124 = arith.addf %121, %123 : vector<8x120xf32>
    %cst_119 = arith.constant 0.000000e+00 : f32
    %125 = vector.broadcast %cst_119 : f32 to vector<8x120xf32>
    %126 = arith.maximumf %124, %125 : vector<8x120xf32>
    %127 = arith.truncf %126 : vector<8x120xf32> to vector<8x120xbf16>
    %c0_120 = arith.constant 0 : index
    %c0_121 = arith.constant 0 : index
    %128 = vector.load %arg10[%c0_120, %c0_121] : memref<120x84xbf16, #tpu.memory_space<vmem>>, vector<120x84xbf16>
    %cst_122 = arith.constant dense<0.000000e+00> : vector<8x84xf32>
    %129 = tpu.matmul %127, %128, %cst_122 {dimension_numbers = #tpu.dot_dimension_numbers<[1], [0], [0], [1], [0, 0, 1, 1], [], []>} : vector<8x120xbf16>, vector<120x84xbf16>, vector<8x84xf32> -> vector<8x84xf32>
    %c0_123 = arith.constant 0 : index
    %c0_124 = arith.constant 0 : index
    %130 = vector.load %arg11[%c0_123, %c0_124] : memref<1x84xf32, #tpu.memory_space<vmem>>, vector<1x84xf32>
    %131 = vector.broadcast %130 : vector<1x84xf32> to vector<8x84xf32>
    %132 = arith.addf %129, %131 : vector<8x84xf32>
    %cst_125 = arith.constant 0.000000e+00 : f32
    %133 = vector.broadcast %cst_125 : f32 to vector<8x84xf32>
    %134 = arith.maximumf %132, %133 : vector<8x84xf32>
    %135 = arith.truncf %134 : vector<8x84xf32> to vector<8x84xbf16>
    %c0_126 = arith.constant 0 : index
    %c0_127 = arith.constant 0 : index
    %136 = vector.load %arg12[%c0_126, %c0_127] : memref<84x128xbf16, #tpu.memory_space<vmem>>, vector<84x128xbf16>
    %cst_128 = arith.constant dense<0.000000e+00> : vector<8x128xf32>
    %137 = tpu.matmul %135, %136, %cst_128 {dimension_numbers = #tpu.dot_dimension_numbers<[1], [0], [0], [1], [0, 0, 1, 1], [], []>} : vector<8x84xbf16>, vector<84x128xbf16>, vector<8x128xf32> -> vector<8x128xf32>
    %c0_129 = arith.constant 0 : index
    %c0_130 = arith.constant 0 : index
    %138 = vector.load %arg13[%c0_129, %c0_130] : memref<1x128xf32, #tpu.memory_space<vmem>>, vector<1x128xf32>
    %139 = vector.broadcast %138 : vector<1x128xf32> to vector<8x128xf32>
    %140 = arith.addf %137, %139 : vector<8x128xf32>
    %c0_131 = arith.constant 0 : index
    %c0_132 = arith.constant 0 : index
    %141 = vector.load %arg14[%c0_131, %c0_132] : memref<8x128xf32, #tpu.memory_space<vmem>>, vector<8x128xf32>
    tpu.vector_store %arg14[%c0_131, %c0_132], %140 {strides = array<i32>} : memref<8x128xf32, #tpu.memory_space<vmem>>, vector<8x128xf32>,
    return
  }
  func.func @transform_0(%arg0: i32) -> (i32, i32) {
    %c0_i32 = arith.constant 0 : i32
    %c0_i32_0 = arith.constant 0 : i32
    return %arg0, %c0_i32 : i32, i32
  }
  func.func @transform_1(%arg0: i32) -> (i32, i32, i32) {
    %c0_i32 = arith.constant 0 : i32
    %c0_i32_0 = arith.constant 0 : i32
    %c0_i32_1 = arith.constant 0 : i32
    %c0_i32_2 = arith.constant 0 : i32
    return %c0_i32, %c0_i32_0, %c0_i32_1 : i32, i32, i32
  }
  func.func @transform_2(%arg0: i32) -> (i32, i32) {
    %c0_i32 = arith.constant 0 : i32
    %c0_i32_0 = arith.constant 0 : i32
    %c0_i32_1 = arith.constant 0 : i32
    return %c0_i32, %c0_i32_0 : i32, i32
  }
  func.func @transform_3(%arg0: i32) -> (i32, i32, i32) {
    %c0_i32 = arith.constant 0 : i32
    %c0_i32_0 = arith.constant 0 : i32
    %c0_i32_1 = arith.constant 0 : i32
    %c0_i32_2 = arith.constant 0 : i32
    return %c0_i32, %c0_i32_0, %c0_i32_1 : i32, i32, i32
  }
  func.func @transform_4(%arg0: i32) -> (i32, i32, i32) {
    %c0_i32 = arith.constant 0 : i32
    %c0_i32_0 = arith.constant 0 : i32
    %c0_i32_1 = arith.constant 0 : i32
    %c0_i32_2 = arith.constant 0 : i32
    return %c0_i32, %c0_i32_0, %c0_i32_1 : i32, i32, i32
  }
  func.func @transform_5(%arg0: i32) -> (i32, i32) {
    %c0_i32 = arith.constant 0 : i32
    %c0_i32_0 = arith.constant 0 : i32
    %c0_i32_1 = arith.constant 0 : i32
    return %c0_i32, %c0_i32_0 : i32, i32
  }
  func.func @transform_6(%arg0: i32) -> (i32, i32, i32) {
    %c0_i32 = arith.constant 0 : i32
    %c0_i32_0 = arith.constant 0 : i32
    %c0_i32_1 = arith.constant 0 : i32
    %c0_i32_2 = arith.constant 0 : i32
    return %c0_i32, %c0_i32_0, %c0_i32_1 : i32, i32, i32
  }
  func.func @transform_7(%arg0: i32) -> (i32, i32) {
    %c0_i32 = arith.constant 0 : i32
    %c0_i32_0 = arith.constant 0 : i32
    %c0_i32_1 = arith.constant 0 : i32
    return %c0_i32, %c0_i32_0 : i32, i32
  }
  func.func @transform_8(%arg0: i32) -> (i32, i32) {
    %c0_i32 = arith.constant 0 : i32
    %c0_i32_0 = arith.constant 0 : i32
    %c0_i32_1 = arith.constant 0 : i32
    return %c0_i32, %c0_i32_0 : i32, i32
  }
  func.func @transform_9(%arg0: i32) -> (i32, i32) {
    %c0_i32 = arith.constant 0 : i32
    %c0_i32_0 = arith.constant 0 : i32
    %c0_i32_1 = arith.constant 0 : i32
    return %c0_i32, %c0_i32_0 : i32, i32
  }
  func.func @transform_10(%arg0: i32) -> (i32, i32) {
    %c0_i32 = arith.constant 0 : i32
    %c0_i32_0 = arith.constant 0 : i32
    %c0_i32_1 = arith.constant 0 : i32
    return %c0_i32, %c0_i32_0 : i32, i32
  }
  func.func @transform_11(%arg0: i32) -> (i32, i32) {
    %c0_i32 = arith.constant 0 : i32
    %c0_i32_0 = arith.constant 0 : i32
    %c0_i32_1 = arith.constant 0 : i32
    return %c0_i32, %c0_i32_0 : i32, i32
  }
  func.func @transform_12(%arg0: i32) -> (i32, i32) {
    %c0_i32 = arith.constant 0 : i32
    %c0_i32_0 = arith.constant 0 : i32
    %c0_i32_1 = arith.constant 0 : i32
    return %c0_i32, %c0_i32_0 : i32, i32
  }
  func.func @transform_13(%arg0: i32) -> (i32, i32) {
    %c0_i32 = arith.constant 0 : i32
    %c0_i32_0 = arith.constant 0 : i32
    return %arg0, %c0_i32 : i32, i32
  }
}

</mosaic_0001>

<llo_original>
// kernel: tpu_custom_call.1
$region0: #{tpu_custom_call.1}
  #allocation0 [shape = 'u32[]', space=smem, size = 0x4, offset = 0x4, fixed_abs, tag = 'smem constant byte address 0x4 - core index']
  #allocation1 [shape = 'u32[144,128]{1,0:T(1,128)}', space=vmem, size = 0x12000, scoped, tag = 'internal scratch']
  #allocation2 [shape = 'f32[256,84]{1,0:T(8,128)}', space=vmem, size = 0x20000, scoped, tag = 'scratch operand']
  #allocation3 [shape = 'f32[128,84]{1,0:T(8,128)}', space=vmem, size = 0x10000, scoped, tag = 'scratch operand']
  #allocation4 [shape = 'f32[128,80]{1,0:T(8,128)}', space=vmem, size = 0x10000, scoped, tag = 'scratch operand']
  #allocation5 [shape = 'f32[64,80]{1,0:T(8,128)}', space=vmem, size = 0x8000, scoped, tag = 'scratch operand']
  %s0 = inlined_call_operand.vmem [shape: f32[512,28], index: 0, kind: input, shape index: {}]
  %s1 = inlined_call_operand.vmem [shape: bf16[5,28,168], index: 1, kind: input, shape index: {}]
  %s2 = inlined_call_operand.vmem [shape: f32[1,168], index: 2, kind: input, shape index: {}]
  %s3 = inlined_call_operand.vmem [shape: bf16[2,168,84], index: 3, kind: input, shape index: {}]
  %s4 = inlined_call_operand.vmem [shape: bf16[5,84,160], index: 4, kind: input, shape index: {}]
  %s5 = inlined_call_operand.vmem [shape: f32[1,160], index: 5, kind: input, shape index: {}]
  %s6 = inlined_call_operand.vmem [shape: bf16[2,160,80], index: 6, kind: input, shape index: {}]
  %s7 = inlined_call_operand.vmem [shape: bf16[400,120], index: 7, kind: input, shape index: {}]
  %s8 = inlined_call_operand.vmem [shape: f32[1,120], index: 8, kind: input, shape index: {}]
  %s9 = inlined_call_operand.vmem [shape: bf16[120,84], index: 9, kind: input, shape index: {}]
  %s10 = inlined_call_operand.vmem [shape: f32[1,84], index: 10, kind: input, shape index: {}]
  %s11 = inlined_call_operand.vmem [shape: bf16[84,128], index: 11, kind: input, shape index: {}]
  %s12 = inlined_call_operand.vmem [shape: f32[1,128], index: 12, kind: input, shape index: {}]
  %s13 = inlined_call_operand.hbm [shape: f32[16,128], index: 13, kind: output, shape index: {}]
  %s14 = sld [smem:[#allocation0]]
  $region85: #{tpu_custom_call.1} parent=0
    _
  %s16 = ssub.s32 1, %s14
  %s17 = scalar_select 0, %s16, %s14
  $region1: #{tpu_custom_call.1} parent=0
    #allocation6 [shape = 'u8[8192]{0}', space=vmem, size = 0x2000, scoped, tag = 'output window, operand 0']
    #allocation7 [shape = 's32[2]{0}', space=sflag, size = 0x8, scoped, tag = 'scoped memory for tpu_custom_call.1']
    %18 = vsyncpa [#allocation7], 0
    %s19 = scalar_lea.sflag [#allocation7], 1
    %20 = vsyncpa %s19, 0
    loop: start=0, step=1, limit=4
    $region2: #{tpu_custom_call.1} parent=1 // loop_pre_header
      _
    $region3: #{tpu_custom_call.1} parent=1 // loop_header
      %s22 = sphi 0, %s26
      %p23 = scmp.ge.s32.totalorder %s22, 4
      %s32 = sphi 0, %s34
      %s35 = sphi 0, %s32
      %s36 = sphi 0, %s35
      %s52 = sphi 0, %s36
      %s56 = sphi 0, %s56
      %s58 = sphi 0, %s56
      %s59 = sphi 0, %s58
      %s73 = sphi 0, %s59
      %s77 = sphi 0, %s77
      %s79 = sphi 0, %s77
      %s80 = sphi 0, %s79
      %s94 = sphi 0, %s80
      %s98 = sphi 0, %s98
      %s100 = sphi 0, %s98
      %s101 = sphi 0, %s100
      %s115 = sphi 0, %s101
      %s119 = sphi 0, %s119
      %s121 = sphi 0, %s119
      %s122 = sphi 0, %s121
      %s136 = sphi 0, %s122
      %s140 = sphi 0, %s140
      %s142 = sphi 0, %s140
      %s143 = sphi 0, %s142
      %s157 = sphi 0, %s143
      %s161 = sphi 0, %s161
      %s163 = sphi 0, %s161
      %s164 = sphi 0, %s163
      %s178 = sphi 0, %s164
      %s182 = sphi 0, %s182
      %s184 = sphi 0, %s182
      %s185 = sphi 0, %s184
      %s199 = sphi 0, %s185
      %s203 = sphi 0, %s203
      %s205 = sphi 0, %s203
      %s206 = sphi 0, %s205
      %s220 = sphi 0, %s206
      %s224 = sphi 0, %s224
      %s226 = sphi 0, %s224
      %s227 = sphi 0, %s226
      %s241 = sphi 0, %s227
      %s245 = sphi 0, %s245
      %s247 = sphi 0, %s245
      %s248 = sphi 0, %s247
      %s262 = sphi 0, %s248
      %s266 = sphi 0, %s266
      %s268 = sphi 0, %s266
      %s269 = sphi 0, %s268
      %s283 = sphi 0, %s269
      %s287 = sphi 0, %s287
      %s289 = sphi 0, %s287
      %s290 = sphi 0, %s289
      %s304 = sphi 0, %s290
      %s310 = sphi 0, %s312
      %s313 = sphi 0, %s310
      %s314 = sphi 0, %s313
      %s330 = sphi 0, %s314
    $region4: #{tpu_custom_call.1} parent=1 // loop_header_branch
      %25 = sbr.rel (%p23) target = $region8
    $region5: #{tpu_custom_call.1} parent=1 // loop_body
      %s27 = ssub.s32 %s22, 1
      %s28 = ssub.s32 %s22, 2
      %s29 = sadd.s32 %s22, 1
      %s30 = ssub.s32 %s22, %s29
      %p31 = scmp.eq.s32.totalorder %s30, 0
      %s33 = sadd.s32 %s32, 1
      %s34 = scalar_select %p31, %s32, %s33
      %p37 = pneg %p31
      %p38 = scmp.eq.s32.totalorder %s22, 1
      %p39 = por %p37, %p38
      %p40 = scmp.ne.s32.totalorder %s32, %s35
      %p41 = scmp.eq.s32.totalorder %s22, 0
      %p42 = por %p40, %p41
      %p43 = scmp.ne.s32.totalorder %s32, %s35
      %p44 = scmp.eq.s32.totalorder %s27, 1
      %p45 = por %p43, %p44
      %p46 = scmp.ne.s32.totalorder %s35, %s36
      %p47 = scmp.eq.s32.totalorder %s27, 0
      %p48 = por %p46, %p47
      %p49 = scmp.ne.s32.totalorder %s35, %s36
      %p50 = scmp.eq.s32.totalorder %s28, 1
      %p51 = por %p49, %p50
      %p53 = scmp.ne.s32.totalorder %s36, %s52
      %p54 = scmp.eq.s32.totalorder %s28, 0
      %p55 = por %p53, %p54
      %s57 = sadd.s32 %s56, 1
      %p60 = scmp.eq.s32.totalorder %s22, 1
      %p61 = scmp.ne.s32.totalorder %s56, %s58
      %p62 = scmp.eq.s32.totalorder %s22, 0
      %p63 = por %p61, %p62
      %p64 = scmp.ne.s32.totalorder %s56, %s58
      %p65 = scmp.eq.s32.totalorder %s27, 1
      %p66 = por %p64, %p65
      %p67 = scmp.ne.s32.totalorder %s58, %s59
      %p68 = scmp.eq.s32.totalorder %s27, 0
      %p69 = por %p67, %p68
      %p70 = scmp.ne.s32.totalorder %s58, %s59
      %p71 = scmp.eq.s32.totalorder %s28, 1
      %p72 = por %p70, %p71
      %p74 = scmp.ne.s32.totalorder %s59, %s73
      %p75 = scmp.eq.s32.totalorder %s28, 0
      %p76 = por %p74, %p75
      %s78 = sadd.s32 %s77, 1
      %p81 = scmp.eq.s32.totalorder %s22, 1
      %p82 = scmp.ne.s32.totalorder %s77, %s79
      %p83 = scmp.eq.s32.totalorder %s22, 0
      %p84 = por %p82, %p83
      %p85 = scmp.ne.s32.totalorder %s77, %s79
      %p86 = scmp.eq.s32.totalorder %s27, 1
      %p87 = por %p85, %p86
      %p88 = scmp.ne.s32.totalorder %s79, %s80
      %p89 = scmp.eq.s32.totalorder %s27, 0
      %p90 = por %p88, %p89
      %p91 = scmp.ne.s32.totalorder %s79, %s80
      %p92 = scmp.eq.s32.totalorder %s28, 1
      %p93 = por %p91, %p92
      %p95 = scmp.ne.s32.totalorder %s80, %s94
      %p96 = scmp.eq.s32.totalorder %s28, 0
      %p97 = por %p95, %p96
      %s99 = sadd.s32 %s98, 1
      %p102 = scmp.eq.s32.totalorder %s22, 1
      %p103 = scmp.ne.s32.totalorder %s98, %s100
      %p104 = scmp.eq.s32.totalorder %s22, 0
      %p105 = por %p103, %p104
      %p106 = scmp.ne.s32.totalorder %s98, %s100
      %p107 = scmp.eq.s32.totalorder %s27, 1
      %p108 = por %p106, %p107
      %p109 = scmp.ne.s32.totalorder %s100, %s101
      %p110 = scmp.eq.s32.totalorder %s27, 0
      %p111 = por %p109, %p110
      %p112 = scmp.ne.s32.totalorder %s100, %s101
      %p113 = scmp.eq.s32.totalorder %s28, 1
      %p114 = por %p112, %p113
      %p116 = scmp.ne.s32.totalorder %s101, %s115
      %p117 = scmp.eq.s32.totalorder %s28, 0
      %p118 = por %p116, %p117
      %s120 = sadd.s32 %s119, 1
      %p123 = scmp.eq.s32.totalorder %s22, 1
      %p124 = scmp.ne.s32.totalorder %s119, %s121
      %p125 = scmp.eq.s32.totalorder %s22, 0
      %p126 = por %p124, %p125
      %p127 = scmp.ne.s32.totalorder %s119, %s121
      %p128 = scmp.eq.s32.totalorder %s27, 1
      %p129 = por %p127, %p128
      %p130 = scmp.ne.s32.totalorder %s121, %s122
      %p131 = scmp.eq.s32.totalorder %s27, 0
      %p132 = por %p130, %p131
      %p133 = scmp.ne.s32.totalorder %s121, %s122
      %p134 = scmp.eq.s32.totalorder %s28, 1
      %p135 = por %p133, %p134
      %p137 = scmp.ne.s32.totalorder %s122, %s136
      %p138 = scmp.eq.s32.totalorder %s28, 0
      %p139 = por %p137, %p138
      %s141 = sadd.s32 %s140, 1
      %p144 = scmp.eq.s32.totalorder %s22, 1
      %p145 = scmp.ne.s32.totalorder %s140, %s142
      %p146 = scmp.eq.s32.totalorder %s22, 0
      %p147 = por %p145, %p146
      %p148 = scmp.ne.s32.totalorder %s140, %s142
      %p149 = scmp.eq.s32.totalorder %s27, 1
      %p150 = por %p148, %p149
      %p151 = scmp.ne.s32.totalorder %s142, %s143
      %p152 = scmp.eq.s32.totalorder %s27, 0
      %p153 = por %p151, %p152
      %p154 = scmp.ne.s32.totalorder %s142, %s143
      %p155 = scmp.eq.s32.totalorder %s28, 1
      %p156 = por %p154, %p155
      %p158 = scmp.ne.s32.totalorder %s143, %s157
      %p159 = scmp.eq.s32.totalorder %s28, 0
      %p160 = por %p158, %p159
      %s162 = sadd.s32 %s161, 1
      %p165 = scmp.eq.s32.totalorder %s22, 1
      %p166 = scmp.ne.s32.totalorder %s161, %s163
      %p167 = scmp.eq.s32.totalorder %s22, 0
      %p168 = por %p166, %p167
      %p169 = scmp.ne.s32.totalorder %s161, %s163
      %p170 = scmp.eq.s32.totalorder %s27, 1
      %p171 = por %p169, %p170
      %p172 = scmp.ne.s32.totalorder %s163, %s164
      %p173 = scmp.eq.s32.totalorder %s27, 0
      %p174 = por %p172, %p173
      %p175 = scmp.ne.s32.totalorder %s163, %s164
      %p176 = scmp.eq.s32.totalorder %s28, 1
      %p177 = por %p175, %p176
      %p179 = scmp.ne.s32.totalorder %s164, %s178
      %p180 = scmp.eq.s32.totalorder %s28, 0
      %p181 = por %p179, %p180
      %s183 = sadd.s32 %s182, 1
      %p186 = scmp.eq.s32.totalorder %s22, 1
      %p187 = scmp.ne.s32.totalorder %s182, %s184
      %p188 = scmp.eq.s32.totalorder %s22, 0
      %p189 = por %p187, %p188
      %p190 = scmp.ne.s32.totalorder %s182, %s184
      %p191 = scmp.eq.s32.totalorder %s27, 1
      %p192 = por %p190, %p191
      %p193 = scmp.ne.s32.totalorder %s184, %s185
      %p194 = scmp.eq.s32.totalorder %s27, 0
      %p195 = por %p193, %p194
      %p196 = scmp.ne.s32.totalorder %s184, %s185
      %p197 = scmp.eq.s32.totalorder %s28, 1
      %p198 = por %p196, %p197
      %p200 = scmp.ne.s32.totalorder %s185, %s199
      %p201 = scmp.eq.s32.totalorder %s28, 0
      %p202 = por %p200, %p201
      %s204 = sadd.s32 %s203, 1
      %p207 = scmp.eq.s32.totalorder %s22, 1
      %p208 = scmp.ne.s32.totalorder %s203, %s205
      %p209 = scmp.eq.s32.totalorder %s22, 0
      %p210 = por %p208, %p209
      %p211 = scmp.ne.s32.totalorder %s203, %s205
      %p212 = scmp.eq.s32.totalorder %s27, 1
      %p213 = por %p211, %p212
      %p214 = scmp.ne.s32.totalorder %s205, %s206
      %p215 = scmp.eq.s32.totalorder %s27, 0
      %p216 = por %p214, %p215
      %p217 = scmp.ne.s32.totalorder %s205, %s206
      %p218 = scmp.eq.s32.totalorder %s28, 1
      %p219 = por %p217, %p218
      %p221 = scmp.ne.s32.totalorder %s206, %s220
      %p222 = scmp.eq.s32.totalorder %s28, 0
      %p223 = por %p221, %p222
      %s225 = sadd.s32 %s224, 1
      %p228 = scmp.eq.s32.totalorder %s22, 1
      %p229 = scmp.ne.s32.totalorder %s224, %s226
      %p230 = scmp.eq.s32.totalorder %s22, 0
      %p231 = por %p229, %p230
      %p232 = scmp.ne.s32.totalorder %s224, %s226
      %p233 = scmp.eq.s32.totalorder %s27, 1
      %p234 = por %p232, %p233
      %p235 = scmp.ne.s32.totalorder %s226, %s227
      %p236 = scmp.eq.s32.totalorder %s27, 0
      %p237 = por %p235, %p236
      %p238 = scmp.ne.s32.totalorder %s226, %s227
      %p239 = scmp.eq.s32.totalorder %s28, 1
      %p240 = por %p238, %p239
      %p242 = scmp.ne.s32.totalorder %s227, %s241
      %p243 = scmp.eq.s32.totalorder %s28, 0
      %p244 = por %p242, %p243
      %s246 = sadd.s32 %s245, 1
      %p249 = scmp.eq.s32.totalorder %s22, 1
      %p250 = scmp.ne.s32.totalorder %s245, %s247
      %p251 = scmp.eq.s32.totalorder %s22, 0
      %p252 = por %p250, %p251
      %p253 = scmp.ne.s32.totalorder %s245, %s247
      %p254 = scmp.eq.s32.totalorder %s27, 1
      %p255 = por %p253, %p254
      %p256 = scmp.ne.s32.totalorder %s247, %s248
      %p257 = scmp.eq.s32.totalorder %s27, 0
      %p258 = por %p256, %p257
      %p259 = scmp.ne.s32.totalorder %s247, %s248
      %p260 = scmp.eq.s32.totalorder %s28, 1
      %p261 = por %p259, %p260
      %p263 = scmp.ne.s32.totalorder %s248, %s262
      %p264 = scmp.eq.s32.totalorder %s28, 0
      %p265 = por %p263, %p264
      %s267 = sadd.s32 %s266, 1
      %p270 = scmp.eq.s32.totalorder %s22, 1
      %p271 = scmp.ne.s32.totalorder %s266, %s268
      %p272 = scmp.eq.s32.totalorder %s22, 0
      %p273 = por %p271, %p272
      %p274 = scmp.ne.s32.totalorder %s266, %s268
      %p275 = scmp.eq.s32.totalorder %s27, 1
      %p276 = por %p274, %p275
      %p277 = scmp.ne.s32.totalorder %s268, %s269
      %p278 = scmp.eq.s32.totalorder %s27, 0
      %p279 = por %p277, %p278
      %p280 = scmp.ne.s32.totalorder %s268, %s269
      %p281 = scmp.eq.s32.totalorder %s28, 1
      %p282 = por %p280, %p281
      %p284 = scmp.ne.s32.totalorder %s269, %s283
      %p285 = scmp.eq.s32.totalorder %s28, 0
      %p286 = por %p284, %p285
      %s288 = sadd.s32 %s287, 1
      %p291 = scmp.eq.s32.totalorder %s22, 1
      %p292 = scmp.ne.s32.totalorder %s287, %s289
      %p293 = scmp.eq.s32.totalorder %s22, 0
      %p294 = por %p292, %p293
      %p295 = scmp.ne.s32.totalorder %s287, %s289
      %p296 = scmp.eq.s32.totalorder %s27, 1
      %p297 = por %p295, %p296
      %p298 = scmp.ne.s32.totalorder %s289, %s290
      %p299 = scmp.eq.s32.totalorder %s27, 0
      %p300 = por %p298, %p299
      %p301 = scmp.ne.s32.totalorder %s289, %s290
      %p302 = scmp.eq.s32.totalorder %s28, 1
      %p303 = por %p301, %p302
      %p305 = scmp.ne.s32.totalorder %s290, %s304
      %p306 = scmp.eq.s32.totalorder %s28, 0
      %p307 = por %p305, %p306
      %s308 = ssub.s32 %s22, %s29
      %p309 = scmp.eq.s32.totalorder %s308, 0
      %s311 = sadd.s32 %s310, 1
      %s312 = scalar_select %p309, %s310, %s311
      %p315 = pneg %p309
      %p316 = scmp.eq.s32.totalorder %s22, 1
      %p317 = por %p315, %p316
      %p318 = scmp.ne.s32.totalorder %s310, %s313
      %p319 = scmp.eq.s32.totalorder %s22, 0
      %p320 = por %p318, %p319
      %p321 = scmp.ne.s32.totalorder %s310, %s313
      %p322 = scmp.eq.s32.totalorder %s27, 1
      %p323 = por %p321, %p322
      %p324 = scmp.ne.s32.totalorder %s313, %s314
      %p325 = scmp.eq.s32.totalorder %s27, 0
      %p326 = por %p324, %p325
      %p327 = scmp.ne.s32.totalorder %s313, %s314
      %p328 = scmp.eq.s32.totalorder %s28, 1
      %p329 = por %p327, %p328
      %p331 = scmp.ne.s32.totalorder %s314, %s330
      %p332 = scmp.eq.s32.totalorder %s28, 0
      %p333 = por %p331, %p332
      %p334 = scmp.le.s32.totalorder 1, %s22
      %p335 = scmp.lt.s32.totalorder %s22, 3
      %p336 = pnand %p334, %p335
      %p337 = pneg %p336
      // Predicated region
      $region9: #{tpu_custom_call.1} parent=5 // pred_check
        _
      $region10: #{tpu_custom_call.1} parent=5 // pred_check_branch
        %339 = sbr.rel (%p336) target = $region12
      $region11: #{tpu_custom_call.1} parent=5 // pred_region
        %s340 = ssub.s32 %s22, 1
        // Predicated region
        $region13: #{tpu_custom_call.1} parent=11 // pred_check
          %p341 = pneg %p69
        $region14: #{tpu_custom_call.1} parent=11 // pred_check_branch
          %343 = sbr.rel (%p341) target = $region16
        $region15: #{tpu_custom_call.1} parent=11 // pred_region
          _
        $region16: #{tpu_custom_call.1} parent=11 // pred_fallthru
          _
        // Predicated region
        $region17: #{tpu_custom_call.1} parent=11 // pred_check
          %p344 = pneg %p90
        $region18: #{tpu_custom_call.1} parent=11 // pred_check_branch
          %346 = sbr.rel (%p344) target = $region20
        $region19: #{tpu_custom_call.1} parent=11 // pred_region
          _
        $region20: #{tpu_custom_call.1} parent=11 // pred_fallthru
          _
        // Predicated region
        $region21: #{tpu_custom_call.1} parent=11 // pred_check
          %p347 = pneg %p111
        $region22: #{tpu_custom_call.1} parent=11 // pred_check_branch
          %349 = sbr.rel (%p347) target = $region24
        $region23: #{tpu_custom_call.1} parent=11 // pred_region
          _
        $region24: #{tpu_custom_call.1} parent=11 // pred_fallthru
          _
        // Predicated region
        $region25: #{tpu_custom_call.1} parent=11 // pred_check
          %p350 = pneg %p132
        $region26: #{tpu_custom_call.1} parent=11 // pred_check_branch
          %352 = sbr.rel (%p350) target = $region28
        $region27: #{tpu_custom_call.1} parent=11 // pred_region
          _
        $region28: #{tpu_custom_call.1} parent=11 // pred_fallthru
          _
        // Predicated region
        $region29: #{tpu_custom_call.1} parent=11 // pred_check
          %p353 = pneg %p153
        $region30: #{tpu_custom_call.1} parent=11 // pred_check_branch
          %355 = sbr.rel (%p353) target = $region32
        $region31: #{tpu_custom_call.1} parent=11 // pred_region
          _
        $region32: #{tpu_custom_call.1} parent=11 // pred_fallthru
          _
        // Predicated region
        $region33: #{tpu_custom_call.1} parent=11 // pred_check
          %p356 = pneg %p174
        $region34: #{tpu_custom_call.1} parent=11 // pred_check_branch
          %358 = sbr.rel (%p356) target = $region36
        $region35: #{tpu_custom_call.1} parent=11 // pred_region
          _
        $region36: #{tpu_custom_call.1} parent=11 // pred_fallthru
          _
        // Predicated region
        $region37: #{tpu_custom_call.1} parent=11 // pred_check
          %p359 = pneg %p195
        $region38: #{tpu_custom_call.1} parent=11 // pred_check_branch
          %361 = sbr.rel (%p359) target = $region40
        $region39: #{tpu_custom_call.1} parent=11 // pred_region
          _
        $region40: #{tpu_custom_call.1} parent=11 // pred_fallthru
          _
        // Predicated region
        $region41: #{tpu_custom_call.1} parent=11 // pred_check
          %p362 = pneg %p216
        $region42: #{tpu_custom_call.1} parent=11 // pred_check_branch
          %364 = sbr.rel (%p362) target = $region44
        $region43: #{tpu_custom_call.1} parent=11 // pred_region
          _
        $region44: #{tpu_custom_call.1} parent=11 // pred_fallthru
          _
        // Predicated region
        $region45: #{tpu_custom_call.1} parent=11 // pred_check
          %p365 = pneg %p237
        $region46: #{tpu_custom_call.1} parent=11 // pred_check_branch
          %367 = sbr.rel (%p365) target = $region48
        $region47: #{tpu_custom_call.1} parent=11 // pred_region
          _
        $region48: #{tpu_custom_call.1} parent=11 // pred_fallthru
          _
        // Predicated region
        $region49: #{tpu_custom_call.1} parent=11 // pred_check
          %p368 = pneg %p258
        $region50: #{tpu_custom_call.1} parent=11 // pred_check_branch
          %370 = sbr.rel (%p368) target = $region52
        $region51: #{tpu_custom_call.1} parent=11 // pred_region
          _
        $region52: #{tpu_custom_call.1} parent=11 // pred_fallthru
          _
        // Predicated region
        $region53: #{tpu_custom_call.1} parent=11 // pred_check
          %p371 = pneg %p279
        $region54: #{tpu_custom_call.1} parent=11 // pred_check_branch
          %373 = sbr.rel (%p371) target = $region56
        $region55: #{tpu_custom_call.1} parent=11 // pred_region
          _
        $region56: #{tpu_custom_call.1} parent=11 // pred_fallthru
          _
        // Predicated region
        $region57: #{tpu_custom_call.1} parent=11 // pred_check
          %p374 = pneg %p300
        $region58: #{tpu_custom_call.1} parent=11 // pred_check_branch
          %376 = sbr.rel (%p374) target = $region60
        $region59: #{tpu_custom_call.1} parent=11 // pred_region
          _
        $region60: #{tpu_custom_call.1} parent=11 // pred_fallthru
          _
      $region12: #{tpu_custom_call.1} parent=5 // pred_fallthru
        _
      %p377 = scmp.lt.s32.totalorder %s22, 2
      // Predicated region
      $region61: #{tpu_custom_call.1} parent=5 // pred_check
        %p378 = pneg %p377
      $region62: #{tpu_custom_call.1} parent=5 // pred_check_branch
        %380 = sbr.rel (%p378) target = $region64
      $region63: #{tpu_custom_call.1} parent=5 // pred_region
        // Predicated region
        $region65: #{tpu_custom_call.1} parent=63 // pred_check
          %p381 = pneg %p42
        $region66: #{tpu_custom_call.1} parent=63 // pred_check_branch
          %383 = sbr.rel (%p381) target = $region68
        $region67: #{tpu_custom_call.1} parent=63 // pred_region
          %s384 = smul.u32 32, %s22
          %p385 = scmp.lt.s32.totalorder %s384, 63
          %s386 = scalar_select %p385, %s384, 63
          %s387 = smul.addr %s386, 8
          %s388 = scalar_lea.vmem %s0, %s387
          %s389 = smul.u32 32, %s22
        $region68: #{tpu_custom_call.1} parent=63 // pred_fallthru
          _
      $region64: #{tpu_custom_call.1} parent=5 // pred_fallthru
        _
      %p390 = scmp.le.s32.totalorder 1, %s22
      %p391 = scmp.lt.s32.totalorder %s22, 3
      %p392 = pnand %p390, %p391
      %p393 = pneg %p392
      // Predicated region
      $region69: #{tpu_custom_call.1} parent=5 // pred_check
        _
      $region70: #{tpu_custom_call.1} parent=5 // pred_check_branch
        %395 = sbr.rel (%p392) target = $region72
      $region71: #{tpu_custom_call.1} parent=5 // pred_region
        %s396 = ssub.s32 %s22, 1
        %s397 = smul.u32 32, %s27
        %p398 = scmp.lt.s32.totalorder %s397, 63
        %s399 = scalar_select %p398, %s397, 63
        %s400 = smul.addr %s399, 8
        %s401 = scalar_lea.vmem %s0, %s400
        %p402 = pneg %p48
        %p403 = pneg %p45
        %p404 = pneg %p69
        %p405 = pneg %p66
        %p406 = pneg %p90
        %p407 = pneg %p87
        %p408 = pneg %p111
        %p409 = pneg %p108
        %p410 = pneg %p132
        %p411 = pneg %p129
        %p412 = pneg %p153
        %p413 = pneg %p150
        %p414 = pneg %p174
        %p415 = pneg %p171
        %p416 = pneg %p195
        %p417 = pneg %p192
        %p418 = pneg %p216
        %p419 = pneg %p213
        %p420 = pneg %p237
        %p421 = pneg %p234
        %p422 = pneg %p258
        %p423 = pneg %p255
        %p424 = pneg %p279
        %p425 = pneg %p276
        %p426 = pneg %p300
        %p427 = pneg %p297
        %p428 = pneg %p326
        %p429 = pneg %p323
        %s430 = sand.u32 %s313, 1
        %s431 = scalar_lea.sflag [#allocation7], %s430
        %s432 = sand.u32 %s313, 1
        %s433 = smul.addr %s432, 8
        %s434 = scalar_lea.vmem [#allocation6], %s433
        %s435 = smul.u32 32, %s27
        %p436 = scmp.lt.s32.totalorder %s435, 63
        %s437 = scalar_select %p436, %s435, 63
        %s438 = smul.addr %s437, 8
        %s439 = scalar_lea.vmem %s0, %s438
        %s440 = smul.u32 32, %s27
        %v442 = vld [vmem:[%s439] sm:$0xff]
        %v443 = vld [vmem:[%s439 + $0x8] sm:$0xff]
        %v444 = vld [vmem:[%s439 + $0x10] sm:$0xff]
        %v445 = vld [vmem:[%s439 + $0x18] sm:$0xff]
        %v446 = vld [vmem:[%s439 + $0x20] sm:$0xff]
        %v447 = vld [vmem:[%s439 + $0x28] sm:$0xff]
        %v448 = vld [vmem:[%s439 + $0x30] sm:$0xff]
        %v449 = vld [vmem:[%s439 + $0x38] sm:$0xff]
        %v450 = vld [vmem:[%s439 + $0x40] sm:$0xff]
        %v451 = vld [vmem:[%s439 + $0x48] sm:$0xff]
        %v452 = vld [vmem:[%s439 + $0x50] sm:$0xff]
        %v453 = vld [vmem:[%s439 + $0x58] sm:$0xff]
        %v454 = vld [vmem:[%s439 + $0x60] sm:$0xff]
        %v455 = vld [vmem:[%s439 + $0x68] sm:$0xff]
        %v456 = vld [vmem:[%s439 + $0x70] sm:$0xff]
        %v457 = vld [vmem:[%s439 + $0x78] sm:$0xff]
        %v458 = vld [vmem:[%s439 + $0x80] sm:$0xff]
        %v459 = vld [vmem:[%s439 + $0x88] sm:$0xff]
        %v460 = vld [vmem:[%s439 + $0x90] sm:$0xff]
        %v461 = vld [vmem:[%s439 + $0x98] sm:$0xff]
        %v462 = vld [vmem:[%s439 + $0xa0] sm:$0xff]
        %v463 = vld [vmem:[%s439 + $0xa8] sm:$0xff]
        %v464 = vld [vmem:[%s439 + $0xb0] sm:$0xff]
        %v465 = vld [vmem:[%s439 + $0xb8] sm:$0xff]
        %v466 = vld [vmem:[%s439 + $0xc0] sm:$0xff]
        %v467 = vld [vmem:[%s439 + $0xc8] sm:$0xff]
        %v468 = vld [vmem:[%s439 + $0xd0] sm:$0xff]
        %v469 = vld [vmem:[%s439 + $0xd8] sm:$0xff]
        %v470 = vld [vmem:[%s439 + $0xe0] sm:$0xff]
        %v471 = vld [vmem:[%s439 + $0xe8] sm:$0xff]
        %v472 = vld [vmem:[%s439 + $0xf0] sm:$0xff]
        %v473 = vld [vmem:[%s439 + $0xf8] sm:$0xf]
        %v474 = vpack.c.bf16 %v443, %v442
        %v475 = vpack.c.bf16 %v445, %v444
        %v476 = vpack.c.bf16 %v447, %v446
        %v477 = vpack.c.bf16 %v449, %v448
        %v478 = vpack.c.bf16 %v451, %v450
        %v479 = vpack.c.bf16 %v453, %v452
        %v480 = vpack.c.bf16 %v455, %v454
        %v481 = vpack.c.bf16 %v457, %v456
        %v482 = vpack.c.bf16 %v459, %v458
        %v483 = vpack.c.bf16 %v461, %v460
        %v484 = vpack.c.bf16 %v463, %v462
        %v485 = vpack.c.bf16 %v465, %v464
        %v486 = vpack.c.bf16 %v467, %v466
        %v487 = vpack.c.bf16 %v469, %v468
        %v488 = vpack.c.bf16 %v471, %v470
        %v489 = vpack.c.bf16 %v473, %v472
        %v490 = vld [vmem:[%s1] sm:$0xff]
        %v491 = vld [vmem:[%s1 + $0x8] sm:$0xff]
        %v492 = vld [vmem:[%s1 + $0x10] sm:$0xff]
        %v493 = vld [vmem:[%s1 + $0x18] sm:$0x33]
        %v494 = vld [vmem:[%s439 + $0x1] sm:$0xff]
        %v495 = vld [vmem:[%s439 + $0x9] sm:$0xff]
        %v496 = vld [vmem:[%s439 + $0x11] sm:$0xff]
        %v497 = vld [vmem:[%s439 + $0x19] sm:$0xff]
        %v498 = vld [vmem:[%s439 + $0x21] sm:$0xff]
        %v499 = vld [vmem:[%s439 + $0x29] sm:$0xff]
        %v500 = vld [vmem:[%s439 + $0x31] sm:$0xff]
        %v501 = vld [vmem:[%s439 + $0x39] sm:$0xff]
        %v502 = vld [vmem:[%s439 + $0x41] sm:$0xff]
        %v503 = vld [vmem:[%s439 + $0x49] sm:$0xff]
        %v504 = vld [vmem:[%s439 + $0x51] sm:$0xff]
        %v505 = vld [vmem:[%s439 + $0x59] sm:$0xff]
        %v506 = vld [vmem:[%s439 + $0x61] sm:$0xff]
        %v507 = vld [vmem:[%s439 + $0x69] sm:$0xff]
        %v508 = vld [vmem:[%s439 + $0x71] sm:$0xff]
        %v509 = vld [vmem:[%s439 + $0x79] sm:$0xff]
        %v510 = vld [vmem:[%s439 + $0x81] sm:$0xff]
        %v511 = vld [vmem:[%s439 + $0x89] sm:$0xff]
        %v512 = vld [vmem:[%s439 + $0x91] sm:$0xff]
        %v513 = vld [vmem:[%s439 + $0x99] sm:$0xff]
        %v514 = vld [vmem:[%s439 + $0xa1] sm:$0xff]
        %v515 = vld [vmem:[%s439 + $0xa9] sm:$0xff]
        %v516 = vld [vmem:[%s439 + $0xb1] sm:$0xff]
        %v517 = vld [vmem:[%s439 + $0xb9] sm:$0xff]
        %v518 = vld [vmem:[%s439 + $0xc1] sm:$0xff]
        %v519 = vld [vmem:[%s439 + $0xc9] sm:$0xff]
        %v520 = vld [vmem:[%s439 + $0xd1] sm:$0xff]
        %v521 = vld [vmem:[%s439 + $0xd9] sm:$0xff]
        %v522 = vld [vmem:[%s439 + $0xe1] sm:$0xff]
        %v523 = vld [vmem:[%s439 + $0xe9] sm:$0xff]
        %v524 = vld [vmem:[%s439 + $0xf1] sm:$0xff]
        %v525 = vld [vmem:[%s439 + $0xf9] sm:$0xf]
        %v526 = vpack.c.bf16 %v495, %v494
        %v527 = vpack.c.bf16 %v497, %v496
        %v528 = vpack.c.bf16 %v499, %v498
        %v529 = vpack.c.bf16 %v501, %v500
        %v530 = vpack.c.bf16 %v503, %v502
        %v531 = vpack.c.bf16 %v505, %v504
        %v532 = vpack.c.bf16 %v507, %v506
        %v533 = vpack.c.bf16 %v509, %v508
        %v534 = vpack.c.bf16 %v511, %v510
        %v535 = vpack.c.bf16 %v513, %v512
        %v536 = vpack.c.bf16 %v515, %v514
        %v537 = vpack.c.bf16 %v517, %v516
        %v538 = vpack.c.bf16 %v519, %v518
        %v539 = vpack.c.bf16 %v521, %v520
        %v540 = vpack.c.bf16 %v523, %v522
        %v541 = vpack.c.bf16 %v525, %v524
        %s542 = scalar_lea.vmem %s1, 32
        %v543 = vld [vmem:[%s542] sm:$0xff]
        %v544 = vld [vmem:[%s542 + $0x8] sm:$0xff]
        %v545 = vld [vmem:[%s542 + $0x10] sm:$0xff]
        %v546 = vld [vmem:[%s542 + $0x18] sm:$0x33]
        %v551 = vunpack.c.l.b16 %v543
        %v552 = vunpack.c.h.b16 %v543
        %v553 = vunpack.c.l.b16 %v544
        %v554 = vunpack.c.h.b16 %v544
        %v555 = vunpack.c.l.b16 %v545
        %v556 = vunpack.c.h.b16 %v545
        %v557 = vunpack.c.l.b16 %v546
        %v558 = vunpack.c.h.b16 %v546
        %v559 = vpack.c.b16 %v553, %v551
        %v560 = vpack.c.b16 %v554, %v552
        %v561 = vpack.c.b16 %v557, %v555
        %v562 = vpack.c.b16 %v558, %v556
        %vm565 = vcmask 228352
        %v567 = vsel %vm565, %v526, 0
        %v570 = vsel %vm565, %v527, 0
        %v573 = vsel %vm565, %v528, 0
        %v576 = vsel %vm565, %v529, 0
        %v579 = vsel %vm565, %v530, 0
        %v582 = vsel %vm565, %v531, 0
        %v585 = vsel %vm565, %v532, 0
        %v588 = vsel %vm565, %v533, 0
        %v591 = vsel %vm565, %v534, 0
        %v594 = vsel %vm565, %v535, 0
        %v597 = vsel %vm565, %v536, 0
        %v600 = vsel %vm565, %v537, 0
        %v603 = vsel %vm565, %v538, 0
        %v606 = vsel %vm565, %v539, 0
        %v609 = vsel %vm565, %v540, 0
        %v612 = vsel %vm565, %v541, 0
        %vm614 = vcmask 1045504
        %v616 = vsel %vm614, %v561, 0
        %v619 = vsel %vm614, %v562, 0
        %621 = vmatprep.subr.bf16.mxu0 %v560
        %622 = vmatpush1.bf16.msra.mxu0 %v559
        %623 = vmatprep.subr.bf16.mxu0 %v619
        %624 = vmatpush1.bf16.msra.mxu0 %v616
        %625 = vmatprep.subr.bf16.mxu0 0
        %626 = vmatpush1.bf16.msra.mxu0 0
        %627 = vmatprep.subr.bf16.mxu0 0
        %628 = vmatpush1.bf16.msra.mxu0 0
        %629 = vmatprep.subr.bf16.mxu0 0
        %630 = vmatpush1.bf16.msra.mxu0 0
        %631 = vmatprep.subr.bf16.mxu0 0
        %632 = vmatpush1.bf16.msra.mxu0 0
        %633 = vmatprep.subr.bf16.mxu0 0
        %634 = vmatpush1.bf16.msra.mxu0 0
        %635 = vmatprep.subr.bf16.mxu0 0
        %636 = vmatpush1.bf16.msra.mxu0 0
        %637 = vmatprep.subr.bf16.mxu0 0
        %638 = vmatpush1.bf16.msra.mxu0 0
        %639 = vmatprep.subr.bf16.mxu0 0
        %640 = vmatpush1.bf16.msra.mxu0 0
        %641 = vmatprep.subr.bf16.mxu0 0
        %642 = vmatpush1.bf16.msra.mxu0 0
        %643 = vmatprep.subr.bf16.mxu0 0
        %644 = vmatpush1.bf16.msra.mxu0 0
        %645 = vmatprep.subr.bf16.mxu0 0
        %646 = vmatpush1.bf16.msra.mxu0 0
        %647 = vmatprep.subr.bf16.mxu0 0
        %648 = vmatpush1.bf16.msra.mxu0 0
        %649 = vmatprep.subr.bf16.mxu0 0
        %650 = vmatpush1.bf16.msra.mxu0 0
        %651 = vmatprep.subr.bf16.mxu0 0
        %652 = vmatpush1.bf16.msra.mxu0 0
        %653 = vmatprep.mubr.bf16.mxu0 0
        %654 = vmatmul.mubr.bf16.gmra.mrb[0].mxu0 %v567
        %v655 = vpop.f32.mrb[0].mxu0
        %v656 = vadd.f32 0.0, %v655
        %v657 = vpop.f32.mrb[0].mxu0
        %v658 = vadd.f32 0.0, %v657
        %v659 = vpop.f32.mrb[0].mxu0
        %v660 = vadd.f32 0.0, %v659
        %v661 = vpop.f32.mrb[0].mxu0
        %v662 = vadd.f32 0.0, %v661
        %663 = vmatprep.mubr.bf16.mxu0 0
        %664 = vmatmul.mubr.bf16.gmra.mrb[0].mxu0 %v570
        %v665 = vpop.f32.mrb[0].mxu0
        %v666 = vadd.f32 0.0, %v665
        %v667 = vpop.f32.mrb[0].mxu0
        %v668 = vadd.f32 0.0, %v667
        %v669 = vpop.f32.mrb[0].mxu0
        %v670 = vadd.f32 0.0, %v669
        %v671 = vpop.f32.mrb[0].mxu0
        %v672 = vadd.f32 0.0, %v671
        %673 = vmatprep.mubr.bf16.mxu0 0
        %674 = vmatmul.mubr.bf16.gmra.mrb[0].mxu0 %v573
        %v675 = vpop.f32.mrb[0].mxu0
        %v676 = vadd.f32 0.0, %v675
        %v677 = vpop.f32.mrb[0].mxu0
        %v678 = vadd.f32 0.0, %v677
        %v679 = vpop.f32.mrb[0].mxu0
        %v680 = vadd.f32 0.0, %v679
        %v681 = vpop.f32.mrb[0].mxu0
        %v682 = vadd.f32 0.0, %v681
        %683 = vmatprep.mubr.bf16.mxu0 0
        %684 = vmatmul.mubr.bf16.gmra.mrb[0].mxu0 %v576
        %v685 = vpop.f32.mrb[0].mxu0
        %v686 = vadd.f32 0.0, %v685
        %v687 = vpop.f32.mrb[0].mxu0
        %v688 = vadd.f32 0.0, %v687
        %v689 = vpop.f32.mrb[0].mxu0
        %v690 = vadd.f32 0.0, %v689
        %v691 = vpop.f32.mrb[0].mxu0
        %v692 = vadd.f32 0.0, %v691
        %693 = vmatprep.mubr.bf16.mxu0 0
        %694 = vmatmul.mubr.bf16.gmra.mrb[0].mxu0 %v579
        %v695 = vpop.f32.mrb[0].mxu0
        %v696 = vadd.f32 0.0, %v695
        %v697 = vpop.f32.mrb[0].mxu0
        %v698 = vadd.f32 0.0, %v697
        %v699 = vpop.f32.mrb[0].mxu0
        %v700 = vadd.f32 0.0, %v699
        %v701 = vpop.f32.mrb[0].mxu0
        %v702 = vadd.f32 0.0, %v701
        %703 = vmatprep.mubr.bf16.mxu0 0
        %704 = vmatmul.mubr.bf16.gmra.mrb[0].mxu0 %v582
        %v705 = vpop.f32.mrb[0].mxu0
        %v706 = vadd.f32 0.0, %v705
        %v707 = vpop.f32.mrb[0].mxu0
        %v708 = vadd.f32 0.0, %v707
        %v709 = vpop.f32.mrb[0].mxu0
        %v710 = vadd.f32 0.0, %v709
        %v711 = vpop.f32.mrb[0].mxu0
        %v712 = vadd.f32 0.0, %v711
        %713 = vmatprep.mubr.bf16.mxu0 0
        %714 = vmatmul.mubr.bf16.gmra.mrb[0].mxu0 %v585
        %v715 = vpop.f32.mrb[0].mxu0
        %v716 = vadd.f32 0.0, %v715
        %v717 = vpop.f32.mrb[0].mxu0
        %v718 = vadd.f32 0.0, %v717
        %v719 = vpop.f32.mrb[0].mxu0
        %v720 = vadd.f32 0.0, %v719
        %v721 = vpop.f32.mrb[0].mxu0
        %v722 = vadd.f32 0.0, %v721
        %723 = vmatprep.mubr.bf16.mxu0 0
        %724 = vmatmul.mubr.bf16.gmra.mrb[0].mxu0 %v588
        %v725 = vpop.f32.mrb[0].mxu0
        %v726 = vadd.f32 0.0, %v725
        %v727 = vpop.f32.mrb[0].mxu0
        %v728 = vadd.f32 0.0, %v727
        %v729 = vpop.f32.mrb[0].mxu0
        %v730 = vadd.f32 0.0, %v729
        %v731 = vpop.f32.mrb[0].mxu0
        %v732 = vadd.f32 0.0, %v731
        %733 = vmatprep.mubr.bf16.mxu0 0
        %734 = vmatmul.mubr.bf16.gmra.mrb[0].mxu0 %v591
        %v735 = vpop.f32.mrb[0].mxu0
        %v736 = vadd.f32 0.0, %v735
        %v737 = vpop.f32.mrb[0].mxu0
        %v738 = vadd.f32 0.0, %v737
        %v739 = vpop.f32.mrb[0].mxu0
        %v740 = vadd.f32 0.0, %v739
        %v741 = vpop.f32.mrb[0].mxu0
        %v742 = vadd.f32 0.0, %v741
        %743 = vmatprep.mubr.bf16.mxu0 0
        %744 = vmatmul.mubr.bf16.gmra.mrb[0].mxu0 %v594
        %v745 = vpop.f32.mrb[0].mxu0
        %v746 = vadd.f32 0.0, %v745
        %v747 = vpop.f32.mrb[0].mxu0
        %v748 = vadd.f32 0.0, %v747
        %v749 = vpop.f32.mrb[0].mxu0
        %v750 = vadd.f32 0.0, %v749
        %v751 = vpop.f32.mrb[0].mxu0
        %v752 = vadd.f32 0.0, %v751
        %753 = vmatprep.mubr.bf16.mxu0 0
        %754 = vmatmul.mubr.bf16.gmra.mrb[0].mxu0 %v597
        %v755 = vpop.f32.mrb[0].mxu0
        %v756 = vadd.f32 0.0, %v755
        %v757 = vpop.f32.mrb[0].mxu0
        %v758 = vadd.f32 0.0, %v757
        %v759 = vpop.f32.mrb[0].mxu0
        %v760 = vadd.f32 0.0, %v759
        %v761 = vpop.f32.mrb[0].mxu0
        %v762 = vadd.f32 0.0, %v761
        %763 = vmatprep.mubr.bf16.mxu0 0
        %764 = vmatmul.mubr.bf16.gmra.mrb[0].mxu0 %v600
        %v765 = vpop.f32.mrb[0].mxu0
        %v766 = vadd.f32 0.0, %v765
        %v767 = vpop.f32.mrb[0].mxu0
        %v768 = vadd.f32 0.0, %v767
        %v769 = vpop.f32.mrb[0].mxu0
        %v770 = vadd.f32 0.0, %v769
        %v771 = vpop.f32.mrb[0].mxu0
        %v772 = vadd.f32 0.0, %v771
        %773 = vmatprep.mubr.bf16.mxu0 0
        %774 = vmatmul.mubr.bf16.gmra.mrb[0].mxu0 %v603
        %v775 = vpop.f32.mrb[0].mxu0
        %v776 = vadd.f32 0.0, %v775
        %v777 = vpop.f32.mrb[0].mxu0
        %v778 = vadd.f32 0.0, %v777
        %v779 = vpop.f32.mrb[0].mxu0
        %v780 = vadd.f32 0.0, %v779
        %v781 = vpop.f32.mrb[0].mxu0
        %v782 = vadd.f32 0.0, %v781
        %783 = vmatprep.mubr.bf16.mxu0 0
        %784 = vmatmul.mubr.bf16.gmra.mrb[0].mxu0 %v606
        %v785 = vpop.f32.mrb[0].mxu0
        %v786 = vadd.f32 0.0, %v785
        %v787 = vpop.f32.mrb[0].mxu0
        %v788 = vadd.f32 0.0, %v787
        %v789 = vpop.f32.mrb[0].mxu0
        %v790 = vadd.f32 0.0, %v789
        %v791 = vpop.f32.mrb[0].mxu0
        %v792 = vadd.f32 0.0, %v791
        %793 = vmatprep.mubr.bf16.mxu0 0
        %794 = vmatmul.mubr.bf16.gmra.mrb[0].mxu0 %v609
        %v795 = vpop.f32.mrb[0].mxu0
        %v796 = vadd.f32 0.0, %v795
        %v797 = vpop.f32.mrb[0].mxu0
        %v798 = vadd.f32 0.0, %v797
        %v799 = vpop.f32.mrb[0].mxu0
        %v800 = vadd.f32 0.0, %v799
        %v801 = vpop.f32.mrb[0].mxu0
        %v802 = vadd.f32 0.0, %v801
        %803 = vmatprep.mubr.bf16.mxu0 0
        %804 = vmatmul.mubr.bf16.gmra.mrb[0].mxu0 %v612
        %v805 = vpop.f32.mrb[0].mxu0
        %v806 = vadd.f32 0.0, %v805
        %v807 = vpop.f32.mrb[0].mxu0
        %v808 = vadd.f32 0.0, %v807
        %v809 = vpop.f32.mrb[0].mxu0
        %v810 = vadd.f32 0.0, %v809
        %v811 = vpop.f32.mrb[0].mxu0
        %v812 = vadd.f32 0.0, %v811
        %813 = vdwg.mxu0
        %v818 = vunpack.c.l.b16 %v490
        %v819 = vunpack.c.h.b16 %v490
        %v820 = vunpack.c.l.b16 %v491
        %v821 = vunpack.c.h.b16 %v491
        %v822 = vunpack.c.l.b16 %v492
        %v823 = vunpack.c.h.b16 %v492
        %v824 = vunpack.c.l.b16 %v493
        %v825 = vunpack.c.h.b16 %v493
        %v826 = vpack.c.b16 %v820, %v818
        %v827 = vpack.c.b16 %v821, %v819
        %v828 = vpack.c.b16 %v824, %v822
        %v829 = vpack.c.b16 %v825, %v823
        %v833 = vsel %vm565, %v474, 0
        %v836 = vsel %vm565, %v475, 0
        %v839 = vsel %vm565, %v476, 0
        %v842 = vsel %vm565, %v477, 0
        %v845 = vsel %vm565, %v478, 0
        %v848 = vsel %vm565, %v479, 0
        %v851 = vsel %vm565, %v480, 0
        %v854 = vsel %vm565, %v481, 0
        %v857 = vsel %vm565, %v482, 0
        %v860 = vsel %vm565, %v483, 0
        %v863 = vsel %vm565, %v484, 0
        %v866 = vsel %vm565, %v485, 0
        %v869 = vsel %vm565, %v486, 0
        %v872 = vsel %vm565, %v487, 0
        %v875 = vsel %vm565, %v488, 0
        %v878 = vsel %vm565, %v489, 0
        %v881 = vsel %vm614, %v828, 0
        %v884 = vsel %vm614, %v829, 0
        %886 = vmatprep.subr.bf16.mxu0 %v827
        %887 = vmatpush1.bf16.msra.mxu0 %v826
        %888 = vmatprep.subr.bf16.mxu0 %v884
        %889 = vmatpush1.bf16.msra.mxu0 %v881
        %890 = vmatprep.subr.bf16.mxu0 0
        %891 = vmatpush1.bf16.msra.mxu0 0
        %892 = vmatprep.subr.bf16.mxu0 0
        %893 = vmatpush1.bf16.msra.mxu0 0
        %894 = vmatprep.subr.bf16.mxu0 0
        %895 = vmatpush1.bf16.msra.mxu0 0
        %896 = vmatprep.subr.bf16.mxu0 0
        %897 = vmatpush1.bf16.msra.mxu0 0
        %898 = vmatprep.subr.bf16.mxu0 0
        %899 = vmatpush1.bf16.msra.mxu0 0
        %900 = vmatprep.subr.bf16.mxu0 0
        %901 = vmatpush1.bf16.msra.mxu0 0
        %902 = vmatprep.subr.bf16.mxu0 0
        %903 = vmatpush1.bf16.msra.mxu0 0
        %904 = vmatprep.subr.bf16.mxu0 0
        %905 = vmatpush1.bf16.msra.mxu0 0
        %906 = vmatprep.subr.bf16.mxu0 0
        %907 = vmatpush1.bf16.msra.mxu0 0
        %908 = vmatprep.subr.bf16.mxu0 0
        %909 = vmatpush1.bf16.msra.mxu0 0
        %910 = vmatprep.subr.bf16.mxu0 0
        %911 = vmatpush1.bf16.msra.mxu0 0
        %912 = vmatprep.subr.bf16.mxu0 0
        %913 = vmatpush1.bf16.msra.mxu0 0
        %914 = vmatprep.subr.bf16.mxu0 0
        %915 = vmatpush1.bf16.msra.mxu0 0
        %916 = vmatprep.subr.bf16.mxu0 0
        %917 = vmatpush1.bf16.msra.mxu0 0
        %918 = vmatprep.mubr.bf16.mxu0 0
        %919 = vmatmul.mubr.bf16.gmra.mrb[0].mxu0 %v833
        %v920 = vpop.f32.mrb[0].mxu0
        %v921 = vadd.f32 %v656, %v920
        %v922 = vpop.f32.mrb[0].mxu0
        %v923 = vadd.f32 %v658, %v922
        %v924 = vpop.f32.mrb[0].mxu0
        %v925 = vadd.f32 %v660, %v924
        %v926 = vpop.f32.mrb[0].mxu0
        %v927 = vadd.f32 %v662, %v926
        %928 = vmatprep.mubr.bf16.mxu0 0
        %929 = vmatmul.mubr.bf16.gmra.mrb[0].mxu0 %v836
        %v930 = vpop.f32.mrb[0].mxu0
        %v931 = vadd.f32 %v666, %v930
        %v932 = vpop.f32.mrb[0].mxu0
        %v933 = vadd.f32 %v668, %v932
        %v934 = vpop.f32.mrb[0].mxu0
        %v935 = vadd.f32 %v670, %v934
        %v936 = vpop.f32.mrb[0].mxu0
        %v937 = vadd.f32 %v672, %v936
        %938 = vmatprep.mubr.bf16.mxu0 0
        %939 = vmatmul.mubr.bf16.gmra.mrb[0].mxu0 %v839
        %v940 = vpop.f32.mrb[0].mxu0
        %v941 = vadd.f32 %v676, %v940
        %v942 = vpop.f32.mrb[0].mxu0
        %v943 = vadd.f32 %v678, %v942
        %v944 = vpop.f32.mrb[0].mxu0
        %v945 = vadd.f32 %v680, %v944
        %v946 = vpop.f32.mrb[0].mxu0
        %v947 = vadd.f32 %v682, %v946
        %948 = vmatprep.mubr.bf16.mxu0 0
        %949 = vmatmul.mubr.bf16.gmra.mrb[0].mxu0 %v842
        %v950 = vpop.f32.mrb[0].mxu0
        %v951 = vadd.f32 %v686, %v950
        %v952 = vpop.f32.mrb[0].mxu0
        %v953 = vadd.f32 %v688, %v952
        %v954 = vpop.f32.mrb[0].mxu0
        %v955 = vadd.f32 %v690, %v954
        %v956 = vpop.f32.mrb[0].mxu0
        %v957 = vadd.f32 %v692, %v956
        %958 = vmatprep.mubr.bf16.mxu0 0
        %959 = vmatmul.mubr.bf16.gmra.mrb[0].mxu0 %v845
        %v960 = vpop.f32.mrb[0].mxu0
        %v961 = vadd.f32 %v696, %v960
        %v962 = vpop.f32.mrb[0].mxu0
        %v963 = vadd.f32 %v698, %v962
        %v964 = vpop.f32.mrb[0].mxu0
        %v965 = vadd.f32 %v700, %v964
        %v966 = vpop.f32.mrb[0].mxu0
        %v967 = vadd.f32 %v702, %v966
        %968 = vmatprep.mubr.bf16.mxu0 0
        %969 = vmatmul.mubr.bf16.gmra.mrb[0].mxu0 %v848
        %v970 = vpop.f32.mrb[0].mxu0
        %v971 = vadd.f32 %v706, %v970
        %v972 = vpop.f32.mrb[0].mxu0
        %v973 = vadd.f32 %v708, %v972
        %v974 = vpop.f32.mrb[0].mxu0
        %v975 = vadd.f32 %v710, %v974
        %v976 = vpop.f32.mrb[0].mxu0
        %v977 = vadd.f32 %v712, %v976
        %978 = vmatprep.mubr.bf16.mxu0 0
        %979 = vmatmul.mubr.bf16.gmra.mrb[0].mxu0 %v851
        %v980 = vpop.f32.mrb[0].mxu0
        %v981 = vadd.f32 %v716, %v980
        %v982 = vpop.f32.mrb[0].mxu0
        %v983 = vadd.f32 %v718, %v982
        %v984 = vpop.f32.mrb[0].mxu0
        %v985 = vadd.f32 %v720, %v984
        %v986 = vpop.f32.mrb[0].mxu0
        %v987 = vadd.f32 %v722, %v986
        %988 = vmatprep.mubr.bf16.mxu0 0
        %989 = vmatmul.mubr.bf16.gmra.mrb[0].mxu0 %v854
        %v990 = vpop.f32.mrb[0].mxu0
        %v991 = vadd.f32 %v726, %v990
        %v992 = vpop.f32.mrb[0].mxu0
        %v993 = vadd.f32 %v728, %v992
        %v994 = vpop.f32.mrb[0].mxu0
        %v995 = vadd.f32 %v730, %v994
        %v996 = vpop.f32.mrb[0].mxu0
        %v997 = vadd.f32 %v732, %v996
        %998 = vmatprep.mubr.bf16.mxu0 0
        %999 = vmatmul.mubr.bf16.gmra.mrb[0].mxu0 %v857
        %v1000 = vpop.f32.mrb[0].mxu0
        %v1001 = vadd.f32 %v736, %v1000
        %v1002 = vpop.f32.mrb[0].mxu0
        %v1003 = vadd.f32 %v738, %v1002
        %v1004 = vpop.f32.mrb[0].mxu0
        %v1005 = vadd.f32 %v740, %v1004
        %v1006 = vpop.f32.mrb[0].mxu0
        %v1007 = vadd.f32 %v742, %v1006
        %1008 = vmatprep.mubr.bf16.mxu0 0
        %1009 = vmatmul.mubr.bf16.gmra.mrb[0].mxu0 %v860
        %v1010 = vpop.f32.mrb[0].mxu0
        %v1011 = vadd.f32 %v746, %v1010
        %v1012 = vpop.f32.mrb[0].mxu0
        %v1013 = vadd.f32 %v748, %v1012
        %v1014 = vpop.f32.mrb[0].mxu0
        %v1015 = vadd.f32 %v750, %v1014
        %v1016 = vpop.f32.mrb[0].mxu0
        %v1017 = vadd.f32 %v752, %v1016
        %1018 = vmatprep.mubr.bf16.mxu0 0
        %1019 = vmatmul.mubr.bf16.gmra.mrb[0].mxu0 %v863
        %v1020 = vpop.f32.mrb[0].mxu0
        %v1021 = vadd.f32 %v756, %v1020
        %v1022 = vpop.f32.mrb[0].mxu0
        %v1023 = vadd.f32 %v758, %v1022
        %v1024 = vpop.f32.mrb[0].mxu0
        %v1025 = vadd.f32 %v760, %v1024
        %v1026 = vpop.f32.mrb[0].mxu0
        %v1027 = vadd.f32 %v762, %v1026
        %1028 = vmatprep.mubr.bf16.mxu0 0
        %1029 = vmatmul.mubr.bf16.gmra.mrb[0].mxu0 %v866
        %v1030 = vpop.f32.mrb[0].mxu0
        %v1031 = vadd.f32 %v766, %v1030
        %v1032 = vpop.f32.mrb[0].mxu0
        %v1033 = vadd.f32 %v768, %v1032
        %v1034 = vpop.f32.mrb[0].mxu0
        %v1035 = vadd.f32 %v770, %v1034
        %v1036 = vpop.f32.mrb[0].mxu0
        %v1037 = vadd.f32 %v772, %v1036
        %1038 = vmatprep.mubr.bf16.mxu0 0
        %1039 = vmatmul.mubr.bf16.gmra.mrb[0].mxu0 %v869
        %v1040 = vpop.f32.mrb[0].mxu0
        %v1041 = vadd.f32 %v776, %v1040
        %v1042 = vpop.f32.mrb[0].mxu0
        %v1043 = vadd.f32 %v778, %v1042
        %v1044 = vpop.f32.mrb[0].mxu0
        %v1045 = vadd.f32 %v780, %v1044
        %v1046 = vpop.f32.mrb[0].mxu0
        %v1047 = vadd.f32 %v782, %v1046
        %1048 = vmatprep.mubr.bf16.mxu0 0
        %1049 = vmatmul.mubr.bf16.gmra.mrb[0].mxu0 %v872
        %v1050 = vpop.f32.mrb[0].mxu0
        %v1051 = vadd.f32 %v786, %v1050
        %v1052 = vpop.f32.mrb[0].mxu0
        %v1053 = vadd.f32 %v788, %v1052
        %v1054 = vpop.f32.mrb[0].mxu0
        %v1055 = vadd.f32 %v790, %v1054
        %v1056 = vpop.f32.mrb[0].mxu0
        %v1057 = vadd.f32 %v792, %v1056
        %1058 = vmatprep.mubr.bf16.mxu0 0
        %1059 = vmatmul.mubr.bf16.gmra.mrb[0].mxu0 %v875
        %v1060 = vpop.f32.mrb[0].mxu0
        %v1061 = vadd.f32 %v796, %v1060
        %v1062 = vpop.f32.mrb[0].mxu0
        %v1063 = vadd.f32 %v798, %v1062
        %v1064 = vpop.f32.mrb[0].mxu0
        %v1065 = vadd.f32 %v800, %v1064
        %v1066 = vpop.f32.mrb[0].mxu0
        %v1067 = vadd.f32 %v802, %v1066
        %1068 = vmatprep.mubr.bf16.mxu0 0
        %1069 = vmatmul.mubr.bf16.gmra.mrb[0].mxu0 %v878
        %v1070 = vpop.f32.mrb[0].mxu0
        %v1071 = vadd.f32 %v806, %v1070
        %v1072 = vpop.f32.mrb[0].mxu0
        %v1073 = vadd.f32 %v808, %v1072
        %v1074 = vpop.f32.mrb[0].mxu0
        %v1075 = vadd.f32 %v810, %v1074
        %v1076 = vpop.f32.mrb[0].mxu0
        %v1077 = vadd.f32 %v812, %v1076
        %1078 = vdwg.mxu0
        %v1079 = vld [vmem:[%s439 + $0x2] sm:$0xff]
        %v1080 = vld [vmem:[%s439 + $0xa] sm:$0xff]
        %v1081 = vld [vmem:[%s439 + $0x12] sm:$0xff]
        %v1082 = vld [vmem:[%s439 + $0x1a] sm:$0xff]
        %v1083 = vld [vmem:[%s439 + $0x22] sm:$0xff]
        %v1084 = vld [vmem:[%s439 + $0x2a] sm:$0xff]
        %v1085 = vld [vmem:[%s439 + $0x32] sm:$0xff]
        %v1086 = vld [vmem:[%s439 + $0x3a] sm:$0xff]
        %v1087 = vld [vmem:[%s439 + $0x42] sm:$0xff]
        %v1088 = vld [vmem:[%s439 + $0x4a] sm:$0xff]
        %v1089 = vld [vmem:[%s439 + $0x52] sm:$0xff]
        %v1090 = vld [vmem:[%s439 + $0x5a] sm:$0xff]
        %v1091 = vld [vmem:[%s439 + $0x62] sm:$0xff]
        %v1092 = vld [vmem:[%s439 + $0x6a] sm:$0xff]
        %v1093 = vld [vmem:[%s439 + $0x72] sm:$0xff]
        %v1094 = vld [vmem:[%s439 + $0x7a] sm:$0xff]
        %v1095 = vld [vmem:[%s439 + $0x82] sm:$0xff]
        %v1096 = vld [vmem:[%s439 + $0x8a] sm:$0xff]
        %v1097 = vld [vmem:[%s439 + $0x92] sm:$0xff]
        %v1098 = vld [vmem:[%s439 + $0x9a] sm:$0xff]
        %v1099 = vld [vmem:[%s439 + $0xa2] sm:$0xff]
        %v1100 = vld [vmem:[%s439 + $0xaa] sm:$0xff]
        %v1101 = vld [vmem:[%s439 + $0xb2] sm:$0xff]
        %v1102 = vld [vmem:[%s439 + $0xba] sm:$0xff]
        %v1103 = vld [vmem:[%s439 + $0xc2] sm:$0xff]
        %v1104 = vld [vmem:[%s439 + $0xca] sm:$0xff]
        %v1105 = vld [vmem:[%s439 + $0xd2] sm:$0xff]
        %v1106 = vld [vmem:[%s439 + $0xda] sm:$0xff]
        %v1107 = vld [vmem:[%s439 + $0xe2] sm:$0xff]
        %v1108 = vld [vmem:[%s439 + $0xea] sm:$0xff]
        %v1109 = vld [vmem:[%s439 + $0xf2] sm:$0xff]
        %v1110 = vld [vmem:[%s439 + $0xfa] sm:$0xf]
        %v1111 = vpack.c.bf16 %v1080, %v1079
        %v1112 = vpack.c.bf16 %v1082, %v1081
        %v1113 = vpack.c.bf16 %v1084, %v1083
        %v1114 = vpack.c.bf16 %v1086, %v1085
        %v1115 = vpack.c.bf16 %v1088, %v1087
        %v1116 = vpack.c.bf16 %v1090, %v1089
        %v1117 = vpack.c.bf16 %v1092, %v1091
        %v1118 = vpack.c.bf16 %v1094, %v1093
        %v1119 = vpack.c.bf16 %v1096, %v1095
        %v1120 = vpack.c.bf16 %v1098, %v1097
        %v1121 = vpack.c.bf16 %v1100, %v1099
        %v1122 = vpack.c.bf16 %v1102, %v1101
        %v1123 = vpack.c.bf16 %v1104, %v1103
        %v1124 = vpack.c.bf16 %v1106, %v1105
        %v1125 = vpack.c.bf16 %v1108, %v1107
        %v1126 = vpack.c.bf16 %v1110, %v1109
        %s1127 = scalar_lea.vmem %s1, 64
        %v1128 = vld [vmem:[%s1127] sm:$0xff]
        %v1129 = vld [vmem:[%s1127 + $0x8] sm:$0xff]
        %v1130 = vld [vmem:[%s1127 + $0x10] sm:$0xff]
        %v1131 = vld [vmem:[%s1127 + $0x18] sm:$0x33]
        %v1136 = vunpack.c.l.b16 %v1128
        %v1137 = vunpack.c.h.b16 %v1128
        %v1138 = vunpack.c.l.b16 %v1129
        %v1139 = vunpack.c.h.b16 %v1129
        %v1140 = vunpack.c.l.b16 %v1130
        %v1141 = vunpack.c.h.b16 %v1130
        %v1142 = vunpack.c.l.b16 %v1131
        %v1143 = vunpack.c.h.b16 %v1131
        %v1144 = vpack.c.b16 %v1138, %v1136
        %v1145 = vpack.c.b16 %v1139, %v1137
        %v1146 = vpack.c.b16 %v1142, %v1140
        %v1147 = vpack.c.b16 %v1143, %v1141
        %v1151 = vsel %vm565, %v1111, 0
        %v1154 = vsel %vm565, %v1112, 0
        %v1157 = vsel %vm565, %v1113, 0
        %v1160 = vsel %vm565, %v1114, 0
        %v1163 = vsel %vm565, %v1115, 0
        %v1166 = vsel %vm565, %v1116, 0
        %v1169 = vsel %vm565, %v1117, 0
        %v1172 = vsel %vm565, %v1118, 0
        %v1175 = vsel %vm565, %v1119, 0
        %v1178 = vsel %vm565, %v1120, 0
        %v1181 = vsel %vm565, %v1121, 0
        %v1184 = vsel %vm565, %v1122, 0
        %v1187 = vsel %vm565, %v1123, 0
        %v1190 = vsel %vm565, %v1124, 0
        %v1193 = vsel %vm565, %v1125, 0
        %v1196 = vsel %vm565, %v1126, 0
        %v1199 = vsel %vm614, %v1146, 0
        %v1202 = vsel %vm614, %v1147, 0
        %1204 = vmatprep.subr.bf16.mxu0 %v1145
        %1205 = vmatpush1.bf16.msra.mxu0 %v1144
        %1206 = vmatprep.subr.bf16.mxu0 %v1202
        %1207 = vmatpush1.bf16.msra.mxu0 %v1199
        %1208 = vmatprep.subr.bf16.mxu0 0
        %1209 = vmatpush1.bf16.msra.mxu0 0
        %1210 = vmatprep.subr.bf16.mxu0 0
        %1211 = vmatpush1.bf16.msra.mxu0 0
        %1212 = vmatprep.subr.bf16.mxu0 0
        %1213 = vmatpush1.bf16.msra.mxu0 0
        %1214 = vmatprep.subr.bf16.mxu0 0
        %1215 = vmatpush1.bf16.msra.mxu0 0
        %1216 = vmatprep.subr.bf16.mxu0 0
        %1217 = vmatpush1.bf16.msra.mxu0 0
        %1218 = vmatprep.subr.bf16.mxu0 0
        %1219 = vmatpush1.bf16.msra.mxu0 0
        %1220 = vmatprep.subr.bf16.mxu0 0
        %1221 = vmatpush1.bf16.msra.mxu0 0
        %1222 = vmatprep.subr.bf16.mxu0 0
        %1223 = vmatpush1.bf16.msra.mxu0 0
        %1224 = vmatprep.subr.bf16.mxu0 0
        %1225 = vmatpush1.bf16.msra.mxu0 0
        %1226 = vmatprep.subr.bf16.mxu0 0
        %1227 = vmatpush1.bf16.msra.mxu0 0
        %1228 = vmatprep.subr.bf16.mxu0 0
        %1229 = vmatpush1.bf16.msra.mxu0 0
        %1230 = vmatprep.subr.bf16.mxu0 0
        %1231 = vmatpush1.bf16.msra.mxu0 0
        %1232 = vmatprep.subr.bf16.mxu0 0
        %1233 = vmatpush1.bf16.msra.mxu0 0
        %1234 = vmatprep.subr.bf16.mxu0 0
        %1235 = vmatpush1.bf16.msra.mxu0 0
        %1236 = vmatprep.mubr.bf16.mxu0 0
        %1237 = vmatmul.mubr.bf16.gmra.mrb[0].mxu0 %v1151
        %v1238 = vpop.f32.mrb[0].mxu0
        %v1239 = vadd.f32 0.0, %v1238
        %v1240 = vpop.f32.mrb[0].mxu0
        %v1241 = vadd.f32 0.0, %v1240
        %v1242 = vpop.f32.mrb[0].mxu0
        %v1243 = vadd.f32 0.0, %v1242
        %v1244 = vpop.f32.mrb[0].mxu0
        %v1245 = vadd.f32 0.0, %v1244
        %1246 = vmatprep.mubr.bf16.mxu0 0
        %1247 = vmatmul.mubr.bf16.gmra.mrb[0].mxu0 %v1154
        %v1248 = vpop.f32.mrb[0].mxu0
        %v1249 = vadd.f32 0.0, %v1248
        %v1250 = vpop.f32.mrb[0].mxu0
        %v1251 = vadd.f32 0.0, %v1250
        %v1252 = vpop.f32.mrb[0].mxu0
        %v1253 = vadd.f32 0.0, %v1252
        %v1254 = vpop.f32.mrb[0].mxu0
        %v1255 = vadd.f32 0.0, %v1254
        %1256 = vmatprep.mubr.bf16.mxu0 0
        %1257 = vmatmul.mubr.bf16.gmra.mrb[0].mxu0 %v1157
        %v1258 = vpop.f32.mrb[0].mxu0
        %v1259 = vadd.f32 0.0, %v1258
        %v1260 = vpop.f32.mrb[0].mxu0
        %v1261 = vadd.f32 0.0, %v1260
        %v1262 = vpop.f32.mrb[0].mxu0
        %v1263 = vadd.f32 0.0, %v1262
        %v1264 = vpop.f32.mrb[0].mxu0
        %v1265 = vadd.f32 0.0, %v1264
        %1266 = vmatprep.mubr.bf16.mxu0 0
        %1267 = vmatmul.mubr.bf16.gmra.mrb[0].mxu0 %v1160
        %v1268 = vpop.f32.mrb[0].mxu0
        %v1269 = vadd.f32 0.0, %v1268
        %v1270 = vpop.f32.mrb[0].mxu0
        %v1271 = vadd.f32 0.0, %v1270
        %v1272 = vpop.f32.mrb[0].mxu0
        %v1273 = vadd.f32 0.0, %v1272
        %v1274 = vpop.f32.mrb[0].mxu0
        %v1275 = vadd.f32 0.0, %v1274
        %1276 = vmatprep.mubr.bf16.mxu0 0
        %1277 = vmatmul.mubr.bf16.gmra.mrb[0].mxu0 %v1163
        %v1278 = vpop.f32.mrb[0].mxu0
        %v1279 = vadd.f32 0.0, %v1278
        %v1280 = vpop.f32.mrb[0].mxu0
        %v1281 = vadd.f32 0.0, %v1280
        %v1282 = vpop.f32.mrb[0].mxu0
        %v1283 = vadd.f32 0.0, %v1282
        %v1284 = vpop.f32.mrb[0].mxu0
        %v1285 = vadd.f32 0.0, %v1284
        %1286 = vmatprep.mubr.bf16.mxu0 0
        %1287 = vmatmul.mubr.bf16.gmra.mrb[0].mxu0 %v1166
        %v1288 = vpop.f32.mrb[0].mxu0
        %v1289 = vadd.f32 0.0, %v1288
        %v1290 = vpop.f32.mrb[0].mxu0
        %v1291 = vadd.f32 0.0, %v1290
        %v1292 = vpop.f32.mrb[0].mxu0
        %v1293 = vadd.f32 0.0, %v1292
        %v1294 = vpop.f32.mrb[0].mxu0
        %v1295 = vadd.f32 0.0, %v1294
        %1296 = vmatprep.mubr.bf16.mxu0 0
        %1297 = vmatmul.mubr.bf16.gmra.mrb[0].mxu0 %v1169
        %v1298 = vpop.f32.mrb[0].mxu0
        %v1299 = vadd.f32 0.0, %v1298
        %v1300 = vpop.f32.mrb[0].mxu0
        %v1301 = vadd.f32 0.0, %v1300
        %v1302 = vpop.f32.mrb[0].mxu0
        %v1303 = vadd.f32 0.0, %v1302
        %v1304 = vpop.f32.mrb[0].mxu0
        %v1305 = vadd.f32 0.0, %v1304
        %1306 = vmatprep.mubr.bf16.mxu0 0
        %1307 = vmatmul.mubr.bf16.gmra.mrb[0].mxu0 %v1172
        %v1308 = vpop.f32.mrb[0].mxu0
        %v1309 = vadd.f32 0.0, %v1308
        %v1310 = vpop.f32.mrb[0].mxu0
        %v1311 = vadd.f32 0.0, %v1310
        %v1312 = vpop.f32.mrb[0].mxu0
        %v1313 = vadd.f32 0.0, %v1312
        %v1314 = vpop.f32.mrb[0].mxu0
        %v1315 = vadd.f32 0.0, %v1314
        %1316 = vmatprep.mubr.bf16.mxu0 0
        %1317 = vmatmul.mubr.bf16.gmra.mrb[0].mxu0 %v1175
        %v1318 = vpop.f32.mrb[0].mxu0
        %v1319 = vadd.f32 0.0, %v1318
        %v1320 = vpop.f32.mrb[0].mxu0
        %v1321 = vadd.f32 0.0, %v1320
        %v1322 = vpop.f32.mrb[0].mxu0
        %v1323 = vadd.f32 0.0, %v1322
        %v1324 = vpop.f32.mrb[0].mxu0
        %v1325 = vadd.f32 0.0, %v1324
        %1326 = vmatprep.mubr.bf16.mxu0 0
        %1327 = vmatmul.mubr.bf16.gmra.mrb[0].mxu0 %v1178
        %v1328 = vpop.f32.mrb[0].mxu0
        %v1329 = vadd.f32 0.0, %v1328
        %v1330 = vpop.f32.mrb[0].mxu0
        %v1331 = vadd.f32 0.0, %v1330
        %v1332 = vpop.f32.mrb[0].mxu0
        %v1333 = vadd.f32 0.0, %v1332
        %v1334 = vpop.f32.mrb[0].mxu0
        %v1335 = vadd.f32 0.0, %v1334
        %1336 = vmatprep.mubr.bf16.mxu0 0
        %1337 = vmatmul.mubr.bf16.gmra.mrb[0].mxu0 %v1181
        %v1338 = vpop.f32.mrb[0].mxu0
        %v1339 = vadd.f32 0.0, %v1338
        %v1340 = vpop.f32.mrb[0].mxu0
        %v1341 = vadd.f32 0.0, %v1340
        %v1342 = vpop.f32.mrb[0].mxu0
        %v1343 = vadd.f32 0.0, %v1342
        %v1344 = vpop.f32.mrb[0].mxu0
        %v1345 = vadd.f32 0.0, %v1344
        %1346 = vmatprep.mubr.bf16.mxu0 0
        %1347 = vmatmul.mubr.bf16.gmra.mrb[0].mxu0 %v1184
        %v1348 = vpop.f32.mrb[0].mxu0
        %v1349 = vadd.f32 0.0, %v1348
        %v1350 = vpop.f32.mrb[0].mxu0
        %v1351 = vadd.f32 0.0, %v1350
        %v1352 = vpop.f32.mrb[0].mxu0
        %v1353 = vadd.f32 0.0, %v1352
        %v1354 = vpop.f32.mrb[0].mxu0
        %v1355 = vadd.f32 0.0, %v1354
        %1356 = vmatprep.mubr.bf16.mxu0 0
        %1357 = vmatmul.mubr.bf16.gmra.mrb[0].mxu0 %v1187
        %v1358 = vpop.f32.mrb[0].mxu0
        %v1359 = vadd.f32 0.0, %v1358
        %v1360 = vpop.f32.mrb[0].mxu0
        %v1361 = vadd.f32 0.0, %v1360
        %v1362 = vpop.f32.mrb[0].mxu0
        %v1363 = vadd.f32 0.0, %v1362
        %v1364 = vpop.f32.mrb[0].mxu0
        %v1365 = vadd.f32 0.0, %v1364
        %1366 = vmatprep.mubr.bf16.mxu0 0
        %1367 = vmatmul.mubr.bf16.gmra.mrb[0].mxu0 %v1190
        %v1368 = vpop.f32.mrb[0].mxu0
        %v1369 = vadd.f32 0.0, %v1368
        %v1370 = vpop.f32.mrb[0].mxu0
        %v1371 = vadd.f32 0.0, %v1370
        %v1372 = vpop.f32.mrb[0].mxu0
        %v1373 = vadd.f32 0.0, %v1372
        %v1374 = vpop.f32.mrb[0].mxu0
        %v1375 = vadd.f32 0.0, %v1374
        %1376 = vmatprep.mubr.bf16.mxu0 0
        %1377 = vmatmul.mubr.bf16.gmra.mrb[0].mxu0 %v1193
        %v1378 = vpop.f32.mrb[0].mxu0
        %v1379 = vadd.f32 0.0, %v1378
        %v1380 = vpop.f32.mrb[0].mxu0
        %v1381 = vadd.f32 0.0, %v1380
        %v1382 = vpop.f32.mrb[0].mxu0
        %v1383 = vadd.f32 0.0, %v1382
        %v1384 = vpop.f32.mrb[0].mxu0
        %v1385 = vadd.f32 0.0, %v1384
        %1386 = vmatprep.mubr.bf16.mxu0 0
        %1387 = vmatmul.mubr.bf16.gmra.mrb[0].mxu0 %v1196
        %v1388 = vpop.f32.mrb[0].mxu0
        %v1389 = vadd.f32 0.0, %v1388
        %v1390 = vpop.f32.mrb[0].mxu0
        %v1391 = vadd.f32 0.0, %v1390
        %v1392 = vpop.f32.mrb[0].mxu0
        %v1393 = vadd.f32 0.0, %v1392
        %v1394 = vpop.f32.mrb[0].mxu0
        %v1395 = vadd.f32 0.0, %v1394
        %1396 = vdwg.mxu0
        %v1397 = vadd.f32 %v921, %v1239
        %v1398 = vadd.f32 %v923, %v1241
        %v1399 = vadd.f32 %v925, %v1243
        %v1400 = vadd.f32 %v927, %v1245
        %v1401 = vadd.f32 %v931, %v1249
        %v1402 = vadd.f32 %v933, %v1251
        %v1403 = vadd.f32 %v935, %v1253
        %v1404 = vadd.f32 %v937, %v1255
        %v1405 = vadd.f32 %v941, %v1259
        %v1406 = vadd.f32 %v943, %v1261
        %v1407 = vadd.f32 %v945, %v1263
        %v1408 = vadd.f32 %v947, %v1265
        %v1409 = vadd.f32 %v951, %v1269
        %v1410 = vadd.f32 %v953, %v1271
        %v1411 = vadd.f32 %v955, %v1273
        %v1412 = vadd.f32 %v957, %v1275
        %v1413 = vadd.f32 %v961, %v1279
        %v1414 = vadd.f32 %v963, %v1281
        %v1415 = vadd.f32 %v965, %v1283
        %v1416 = vadd.f32 %v967, %v1285
        %v1417 = vadd.f32 %v971, %v1289
        %v1418 = vadd.f32 %v973, %v1291
        %v1419 = vadd.f32 %v975, %v1293
        %v1420 = vadd.f32 %v977, %v1295
        %v1421 = vadd.f32 %v981, %v1299
        %v1422 = vadd.f32 %v983, %v1301
        %v1423 = vadd.f32 %v985, %v1303
        %v1424 = vadd.f32 %v987, %v1305
        %v1425 = vadd.f32 %v991, %v1309
        %v1426 = vadd.f32 %v993, %v1311
        %v1427 = vadd.f32 %v995, %v1313
        %v1428 = vadd.f32 %v997, %v1315
        %v1429 = vadd.f32 %v1001, %v1319
        %v1430 = vadd.f32 %v1003, %v1321
        %v1431 = vadd.f32 %v1005, %v1323
        %v1432 = vadd.f32 %v1007, %v1325
        %v1433 = vadd.f32 %v1011, %v1329
        %v1434 = vadd.f32 %v1013, %v1331
        %v1435 = vadd.f32 %v1015, %v1333
        %v1436 = vadd.f32 %v1017, %v1335
        %v1437 = vadd.f32 %v1021, %v1339
        %v1438 = vadd.f32 %v1023, %v1341
        %v1439 = vadd.f32 %v1025, %v1343
        %v1440 = vadd.f32 %v1027, %v1345
        %v1441 = vadd.f32 %v1031, %v1349
        %v1442 = vadd.f32 %v1033, %v1351
        %v1443 = vadd.f32 %v1035, %v1353
        %v1444 = vadd.f32 %v1037, %v1355
        %v1445 = vadd.f32 %v1041, %v1359
        %v1446 = vadd.f32 %v1043, %v1361
        %v1447 = vadd.f32 %v1045, %v1363
        %v1448 = vadd.f32 %v1047, %v1365
        %v1449 = vadd.f32 %v1051, %v1369
        %v1450 = vadd.f32 %v1053, %v1371
        %v1451 = vadd.f32 %v1055, %v1373
        %v1452 = vadd.f32 %v1057, %v1375
        %v1453 = vadd.f32 %v1061, %v1379
        %v1454 = vadd.f32 %v1063, %v1381
        %v1455 = vadd.f32 %v1065, %v1383
        %v1456 = vadd.f32 %v1067, %v1385
        %v1457 = vadd.f32 %v1071, %v1389
        %v1458 = vadd.f32 %v1073, %v1391
        %v1459 = vadd.f32 %v1075, %v1393
        %v1460 = vadd.f32 %v1077, %v1395
        %v1461 = vld [vmem:[%s439 + $0x3] sm:$0xff]
        %v1462 = vld [vmem:[%s439 + $0xb] sm:$0xff]
        %v1463 = vld [vmem:[%s439 + $0x13] sm:$0xff]
        %v1464 = vld [vmem:[%s439 + $0x1b] sm:$0xff]
        %v1465 = vld [vmem:[%s439 + $0x23] sm:$0xff]
        %v1466 = vld [vmem:[%s439 + $0x2b] sm:$0xff]
        %v1467 = vld [vmem:[%s439 + $0x33] sm:$0xff]
        %v1468 = vld [vmem:[%s439 + $0x3b] sm:$0xff]
        %v1469 = vld [vmem:[%s439 + $0x43] sm:$0xff]
        %v1470 = vld [vmem:[%s439 + $0x4b] sm:$0xff]
        %v1471 = vld [vmem:[%s439 + $0x53] sm:$0xff]
        %v1472 = vld [vmem:[%s439 + $0x5b] sm:$0xff]
        %v1473 = vld [vmem:[%s439 + $0x63] sm:$0xff]
        %v1474 = vld [vmem:[%s439 + $0x6b] sm:$0xff]
        %v1475 = vld [vmem:[%s439 + $0x73] sm:$0xff]
        %v1476 = vld [vmem:[%s439 + $0x7b] sm:$0xff]
        %v1477 = vld [vmem:[%s439 + $0x83] sm:$0xff]
        %v1478 = vld [vmem:[%s439 + $0x8b] sm:$0xff]
        %v1479 = vld [vmem:[%s439 + $0x93] sm:$0xff]
        %v1480 = vld [vmem:[%s439 + $0x9b] sm:$0xff]
        %v1481 = vld [vmem:[%s439 + $0xa3] sm:$0xff]
        %v1482 = vld [vmem:[%s439 + $0xab] sm:$0xff]
        %v1483 = vld [vmem:[%s439 + $0xb3] sm:$0xff]
        %v1484 = vld [vmem:[%s439 + $0xbb] sm:$0xff]
        %v1485 = vld [vmem:[%s439 + $0xc3] sm:$0xff]
        %v1486 = vld [vmem:[%s439 + $0xcb] sm:$0xff]
        %v1487 = vld [vmem:[%s439 + $0xd3] sm:$0xff]
        %v1488 = vld [vmem:[%s439 + $0xdb] sm:$0xff]
        %v1489 = vld [vmem:[%s439 + $0xe3] sm:$0xff]
        %v1490 = vld [vmem:[%s439 + $0xeb] sm:$0xff]
        %v1491 = vld [vmem:[%s439 + $0xf3] sm:$0xff]
        %v1492 = vld [vmem:[%s439 + $0xfb] sm:$0xf]
        %v1493 = vpack.c.bf16 %v1462, %v1461
        %v1494 = vpack.c.bf16 %v1464, %v1463
        %v1495 = vpack.c.bf16 %v1466, %v1465
        %v1496 = vpack.c.bf16 %v1468, %v1467
        %v1497 = vpack.c.bf16 %v1470, %v1469
        %v1498 = vpack.c.bf16 %v1472, %v1471
        %v1499 = vpack.c.bf16 %v1474, %v1473
        %v1500 = vpack.c.bf16 %v1476, %v1475
        %v1501 = vpack.c.bf16 %v1478, %v1477
        %v1502 = vpack.c.bf16 %v1480, %v1479
        %v1503 = vpack.c.bf16 %v1482, %v1481
        %v1504 = vpack.c.bf16 %v1484, %v1483
        %v1505 = vpack.c.bf16 %v1486, %v1485
        %v1506 = vpack.c.bf16 %v1488, %v1487
        %v1507 = vpack.c.bf16 %v1490, %v1489
        %v1508 = vpack.c.bf16 %v1492, %v1491
        %s1509 = scalar_lea.vmem %s1, 96
        %v1510 = vld [vmem:[%s1509] sm:$0xff]
        %v1511 = vld [vmem:[%s1509 + $0x8] sm:$0xff]
        %v1512 = vld [vmem:[%s1509 + $0x10] sm:$0xff]
        %v1513 = vld [vmem:[%s1509 + $0x18] sm:$0x33]
        %v1518 = vunpack.c.l.b16 %v1510
        %v1519 = vunpack.c.h.b16 %v1510
        %v1520 = vunpack.c.l.b16 %v1511
        %v1521 = vunpack.c.h.b16 %v1511
        %v1522 = vunpack.c.l.b16 %v1512
        %v1523 = vunpack.c.h.b16 %v1512
        %v1524 = vunpack.c.l.b16 %v1513
        %v1525 = vunpack.c.h.b16 %v1513
        %v1526 = vpack.c.b16 %v1520, %v1518
        %v1527 = vpack.c.b16 %v1521, %v1519
        %v1528 = vpack.c.b16 %v1524, %v1522
        %v1529 = vpack.c.b16 %v1525, %v1523
        %v1533 = vsel %vm565, %v1493, 0
        %v1536 = vsel %vm565, %v1494, 0
        %v1539 = vsel %vm565, %v1495, 0
        %v1542 = vsel %vm565, %v1496, 0
        %v1545 = vsel %vm565, %v1497, 0
        %v1548 = vsel %vm565, %v1498, 0
        %v1551 = vsel %vm565, %v1499, 0
        %v1554 = vsel %vm565, %v1500, 0
        %v1557 = vsel %vm565, %v1501, 0
        %v1560 = vsel %vm565, %v1502, 0
        %v1563 = vsel %vm565, %v1503, 0
        %v1566 = vsel %vm565, %v1504, 0
        %v1569 = vsel %vm565, %v1505, 0
        %v1572 = vsel %vm565, %v1506, 0
        %v1575 = vsel %vm565, %v1507, 0
        %v1578 = vsel %vm565, %v1508, 0
        %v1581 = vsel %vm614, %v1528, 0
        %v1584 = vsel %vm614, %v1529, 0
        %1586 = vmatprep.subr.bf16.mxu0 %v1527
        %1587 = vmatpush1.bf16.msra.mxu0 %v1526
        %1588 = vmatprep.subr.bf16.mxu0 %v1584
        %1589 = vmatpush1.bf16.msra.mxu0 %v1581
        %1590 = vmatprep.subr.bf16.mxu0 0
        %1591 = vmatpush1.bf16.msra.mxu0 0
        %1592 = vmatprep.subr.bf16.mxu0 0
        %1593 = vmatpush1.bf16.msra.mxu0 0
        %1594 = vmatprep.subr.bf16.mxu0 0
        %1595 = vmatpush1.bf16.msra.mxu0 0
        %1596 = vmatprep.subr.bf16.mxu0 0
        %1597 = vmatpush1.bf16.msra.mxu0 0
        %1598 = vmatprep.subr.bf16.mxu0 0
        %1599 = vmatpush1.bf16.msra.mxu0 0
        %1600 = vmatprep.subr.bf16.mxu0 0
        %1601 = vmatpush1.bf16.msra.mxu0 0
        %1602 = vmatprep.subr.bf16.mxu0 0
        %1603 = vmatpush1.bf16.msra.mxu0 0
        %1604 = vmatprep.subr.bf16.mxu0 0
        %1605 = vmatpush1.bf16.msra.mxu0 0
        %1606 = vmatprep.subr.bf16.mxu0 0
        %1607 = vmatpush1.bf16.msra.mxu0 0
        %1608 = vmatprep.subr.bf16.mxu0 0
        %1609 = vmatpush1.bf16.msra.mxu0 0
        %1610 = vmatprep.subr.bf16.mxu0 0
        %1611 = vmatpush1.bf16.msra.mxu0 0
        %1612 = vmatprep.subr.bf16.mxu0 0
        %1613 = vmatpush1.bf16.msra.mxu0 0
        %1614 = vmatprep.subr.bf16.mxu0 0
        %1615 = vmatpush1.bf16.msra.mxu0 0
        %1616 = vmatprep.subr.bf16.mxu0 0
        %1617 = vmatpush1.bf16.msra.mxu0 0
        %1618 = vmatprep.mubr.bf16.mxu0 0
        %1619 = vmatmul.mubr.bf16.gmra.mrb[0].mxu0 %v1533
        %v1620 = vpop.f32.mrb[0].mxu0
        %v1621 = vadd.f32 0.0, %v1620
        %v1622 = vpop.f32.mrb[0].mxu0
        %v1623 = vadd.f32 0.0, %v1622
        %v1624 = vpop.f32.mrb[0].mxu0
        %v1625 = vadd.f32 0.0, %v1624
        %v1626 = vpop.f32.mrb[0].mxu0
        %v1627 = vadd.f32 0.0, %v1626
        %1628 = vmatprep.mubr.bf16.mxu0 0
        %1629 = vmatmul.mubr.bf16.gmra.mrb[0].mxu0 %v1536
        %v1630 = vpop.f32.mrb[0].mxu0
        %v1631 = vadd.f32 0.0, %v1630
        %v1632 = vpop.f32.mrb[0].mxu0
        %v1633 = vadd.f32 0.0, %v1632
        %v1634 = vpop.f32.mrb[0].mxu0
        %v1635 = vadd.f32 0.0, %v1634
        %v1636 = vpop.f32.mrb[0].mxu0
        %v1637 = vadd.f32 0.0, %v1636
        %1638 = vmatprep.mubr.bf16.mxu0 0
        %1639 = vmatmul.mubr.bf16.gmra.mrb[0].mxu0 %v1539
        %v1640 = vpop.f32.mrb[0].mxu0
        %v1641 = vadd.f32 0.0, %v1640
        %v1642 = vpop.f32.mrb[0].mxu0
        %v1643 = vadd.f32 0.0, %v1642
        %v1644 = vpop.f32.mrb[0].mxu0
        %v1645 = vadd.f32 0.0, %v1644
        %v1646 = vpop.f32.mrb[0].mxu0
        %v1647 = vadd.f32 0.0, %v1646
        %1648 = vmatprep.mubr.bf16.mxu0 0
        %1649 = vmatmul.mubr.bf16.gmra.mrb[0].mxu0 %v1542
        %v1650 = vpop.f32.mrb[0].mxu0
        %v1651 = vadd.f32 0.0, %v1650
        %v1652 = vpop.f32.mrb[0].mxu0
        %v1653 = vadd.f32 0.0, %v1652
        %v1654 = vpop.f32.mrb[0].mxu0
        %v1655 = vadd.f32 0.0, %v1654
        %v1656 = vpop.f32.mrb[0].mxu0
        %v1657 = vadd.f32 0.0, %v1656
        %1658 = vmatprep.mubr.bf16.mxu0 0
        %1659 = vmatmul.mubr.bf16.gmra.mrb[0].mxu0 %v1545
        %v1660 = vpop.f32.mrb[0].mxu0
        %v1661 = vadd.f32 0.0, %v1660
        %v1662 = vpop.f32.mrb[0].mxu0
        %v1663 = vadd.f32 0.0, %v1662
        %v1664 = vpop.f32.mrb[0].mxu0
        %v1665 = vadd.f32 0.0, %v1664
        %v1666 = vpop.f32.mrb[0].mxu0
        %v1667 = vadd.f32 0.0, %v1666
        %1668 = vmatprep.mubr.bf16.mxu0 0
        %1669 = vmatmul.mubr.bf16.gmra.mrb[0].mxu0 %v1548
        %v1670 = vpop.f32.mrb[0].mxu0
        %v1671 = vadd.f32 0.0, %v1670
        %v1672 = vpop.f32.mrb[0].mxu0
        %v1673 = vadd.f32 0.0, %v1672
        %v1674 = vpop.f32.mrb[0].mxu0
        %v1675 = vadd.f32 0.0, %v1674
        %v1676 = vpop.f32.mrb[0].mxu0
        %v1677 = vadd.f32 0.0, %v1676
        %1678 = vmatprep.mubr.bf16.mxu0 0
        %1679 = vmatmul.mubr.bf16.gmra.mrb[0].mxu0 %v1551
        %v1680 = vpop.f32.mrb[0].mxu0
        %v1681 = vadd.f32 0.0, %v1680
        %v1682 = vpop.f32.mrb[0].mxu0
        %v1683 = vadd.f32 0.0, %v1682
        %v1684 = vpop.f32.mrb[0].mxu0
        %v1685 = vadd.f32 0.0, %v1684
        %v1686 = vpop.f32.mrb[0].mxu0
        %v1687 = vadd.f32 0.0, %v1686
        %1688 = vmatprep.mubr.bf16.mxu0 0
        %1689 = vmatmul.mubr.bf16.gmra.mrb[0].mxu0 %v1554
        %v1690 = vpop.f32.mrb[0].mxu0
        %v1691 = vadd.f32 0.0, %v1690
        %v1692 = vpop.f32.mrb[0].mxu0
        %v1693 = vadd.f32 0.0, %v1692
        %v1694 = vpop.f32.mrb[0].mxu0
        %v1695 = vadd.f32 0.0, %v1694
        %v1696 = vpop.f32.mrb[0].mxu0
        %v1697 = vadd.f32 0.0, %v1696
        %1698 = vmatprep.mubr.bf16.mxu0 0
        %1699 = vmatmul.mubr.bf16.gmra.mrb[0].mxu0 %v1557
        %v1700 = vpop.f32.mrb[0].mxu0
        %v1701 = vadd.f32 0.0, %v1700
        %v1702 = vpop.f32.mrb[0].mxu0
        %v1703 = vadd.f32 0.0, %v1702
        %v1704 = vpop.f32.mrb[0].mxu0
        %v1705 = vadd.f32 0.0, %v1704
        %v1706 = vpop.f32.mrb[0].mxu0
        %v1707 = vadd.f32 0.0, %v1706
        %1708 = vmatprep.mubr.bf16.mxu0 0
        %1709 = vmatmul.mubr.bf16.gmra.mrb[0].mxu0 %v1560
        %v1710 = vpop.f32.mrb[0].mxu0
        %v1711 = vadd.f32 0.0, %v1710
        %v1712 = vpop.f32.mrb[0].mxu0
        %v1713 = vadd.f32 0.0, %v1712
        %v1714 = vpop.f32.mrb[0].mxu0
        %v1715 = vadd.f32 0.0, %v1714
        %v1716 = vpop.f32.mrb[0].mxu0
        %v1717 = vadd.f32 0.0, %v1716
        %1718 = vmatprep.mubr.bf16.mxu0 0
        %1719 = vmatmul.mubr.bf16.gmra.mrb[0].mxu0 %v1563
        %v1720 = vpop.f32.mrb[0].mxu0
        %v1721 = vadd.f32 0.0, %v1720
        %v1722 = vpop.f32.mrb[0].mxu0
        %v1723 = vadd.f32 0.0, %v1722
        %v1724 = vpop.f32.mrb[0].mxu0
        %v1725 = vadd.f32 0.0, %v1724
        %v1726 = vpop.f32.mrb[0].mxu0
        %v1727 = vadd.f32 0.0, %v1726
        %1728 = vmatprep.mubr.bf16.mxu0 0
        %1729 = vmatmul.mubr.bf16.gmra.mrb[0].mxu0 %v1566
        %v1730 = vpop.f32.mrb[0].mxu0
        %v1731 = vadd.f32 0.0, %v1730
        %v1732 = vpop.f32.mrb[0].mxu0
        %v1733 = vadd.f32 0.0, %v1732
        %v1734 = vpop.f32.mrb[0].mxu0
        %v1735 = vadd.f32 0.0, %v1734
        %v1736 = vpop.f32.mrb[0].mxu0
        %v1737 = vadd.f32 0.0, %v1736
        %1738 = vmatprep.mubr.bf16.mxu0 0
        %1739 = vmatmul.mubr.bf16.gmra.mrb[0].mxu0 %v1569
        %v1740 = vpop.f32.mrb[0].mxu0
        %v1741 = vadd.f32 0.0, %v1740
        %v1742 = vpop.f32.mrb[0].mxu0
        %v1743 = vadd.f32 0.0, %v1742
        %v1744 = vpop.f32.mrb[0].mxu0
        %v1745 = vadd.f32 0.0, %v1744
        %v1746 = vpop.f32.mrb[0].mxu0
        %v1747 = vadd.f32 0.0, %v1746
        %1748 = vmatprep.mubr.bf16.mxu0 0
        %1749 = vmatmul.mubr.bf16.gmra.mrb[0].mxu0 %v1572
        %v1750 = vpop.f32.mrb[0].mxu0
        %v1751 = vadd.f32 0.0, %v1750
        %v1752 = vpop.f32.mrb[0].mxu0
        %v1753 = vadd.f32 0.0, %v1752
        %v1754 = vpop.f32.mrb[0].mxu0
        %v1755 = vadd.f32 0.0, %v1754
        %v1756 = vpop.f32.mrb[0].mxu0
        %v1757 = vadd.f32 0.0, %v1756
        %1758 = vmatprep.mubr.bf16.mxu0 0
        %1759 = vmatmul.mubr.bf16.gmra.mrb[0].mxu0 %v1575
        %v1760 = vpop.f32.mrb[0].mxu0
        %v1761 = vadd.f32 0.0, %v1760
        %v1762 = vpop.f32.mrb[0].mxu0
        %v1763 = vadd.f32 0.0, %v1762
        %v1764 = vpop.f32.mrb[0].mxu0
        %v1765 = vadd.f32 0.0, %v1764
        %v1766 = vpop.f32.mrb[0].mxu0
        %v1767 = vadd.f32 0.0, %v1766
        %1768 = vmatprep.mubr.bf16.mxu0 0
        %1769 = vmatmul.mubr.bf16.gmra.mrb[0].mxu0 %v1578
        %v1770 = vpop.f32.mrb[0].mxu0
        %v1771 = vadd.f32 0.0, %v1770
        %v1772 = vpop.f32.mrb[0].mxu0
        %v1773 = vadd.f32 0.0, %v1772
        %v1774 = vpop.f32.mrb[0].mxu0
        %v1775 = vadd.f32 0.0, %v1774
        %v1776 = vpop.f32.mrb[0].mxu0
        %v1777 = vadd.f32 0.0, %v1776
        %1778 = vdwg.mxu0
        %v1779 = vadd.f32 %v1397, %v1621
        %v1780 = vadd.f32 %v1398, %v1623
        %v1781 = vadd.f32 %v1399, %v1625
        %v1782 = vadd.f32 %v1400, %v1627
        %v1783 = vadd.f32 %v1401, %v1631
        %v1784 = vadd.f32 %v1402, %v1633
        %v1785 = vadd.f32 %v1403, %v1635
        %v1786 = vadd.f32 %v1404, %v1637
        %v1787 = vadd.f32 %v1405, %v1641
        %v1788 = vadd.f32 %v1406, %v1643
        %v1789 = vadd.f32 %v1407, %v1645
        %v1790 = vadd.f32 %v1408, %v1647
        %v1791 = vadd.f32 %v1409, %v1651
        %v1792 = vadd.f32 %v1410, %v1653
        %v1793 = vadd.f32 %v1411, %v1655
        %v1794 = vadd.f32 %v1412, %v1657
        %v1795 = vadd.f32 %v1413, %v1661
        %v1796 = vadd.f32 %v1414, %v1663
        %v1797 = vadd.f32 %v1415, %v1665
        %v1798 = vadd.f32 %v1416, %v1667
        %v1799 = vadd.f32 %v1417, %v1671
        %v1800 = vadd.f32 %v1418, %v1673
        %v1801 = vadd.f32 %v1419, %v1675
        %v1802 = vadd.f32 %v1420, %v1677
        %v1803 = vadd.f32 %v1421, %v1681
        %v1804 = vadd.f32 %v1422, %v1683
        %v1805 = vadd.f32 %v1423, %v1685
        %v1806 = vadd.f32 %v1424, %v1687
        %v1807 = vadd.f32 %v1425, %v1691
        %v1808 = vadd.f32 %v1426, %v1693
        %v1809 = vadd.f32 %v1427, %v1695
        %v1810 = vadd.f32 %v1428, %v1697
        %v1811 = vadd.f32 %v1429, %v1701
        %v1812 = vadd.f32 %v1430, %v1703
        %v1813 = vadd.f32 %v1431, %v1705
        %v1814 = vadd.f32 %v1432, %v1707
        %v1815 = vadd.f32 %v1433, %v1711
        %v1816 = vadd.f32 %v1434, %v1713
        %v1817 = vadd.f32 %v1435, %v1715
        %v1818 = vadd.f32 %v1436, %v1717
        %v1819 = vadd.f32 %v1437, %v1721
        %v1820 = vadd.f32 %v1438, %v1723
        %v1821 = vadd.f32 %v1439, %v1725
        %v1822 = vadd.f32 %v1440, %v1727
        %v1823 = vadd.f32 %v1441, %v1731
        %v1824 = vadd.f32 %v1442, %v1733
        %v1825 = vadd.f32 %v1443, %v1735
        %v1826 = vadd.f32 %v1444, %v1737
        %v1827 = vadd.f32 %v1445, %v1741
        %v1828 = vadd.f32 %v1446, %v1743
        %v1829 = vadd.f32 %v1447, %v1745
        %v1830 = vadd.f32 %v1448, %v1747
        %v1831 = vadd.f32 %v1449, %v1751
        %v1832 = vadd.f32 %v1450, %v1753
        %v1833 = vadd.f32 %v1451, %v1755
        %v1834 = vadd.f32 %v1452, %v1757
        %v1835 = vadd.f32 %v1453, %v1761
        %v1836 = vadd.f32 %v1454, %v1763
        %v1837 = vadd.f32 %v1455, %v1765
        %v1838 = vadd.f32 %v1456, %v1767
        %v1839 = vadd.f32 %v1457, %v1771
        %v1840 = vadd.f32 %v1458, %v1773
        %v1841 = vadd.f32 %v1459, %v1775
        %v1842 = vadd.f32 %v1460, %v1777
        %v1843 = vld [vmem:[%s439 + $0x4] sm:$0xff]
        %v1844 = vld [vmem:[%s439 + $0xc] sm:$0xff]
        %v1845 = vld [vmem:[%s439 + $0x14] sm:$0xff]
        %v1846 = vld [vmem:[%s439 + $0x1c] sm:$0xff]
        %v1847 = vld [vmem:[%s439 + $0x24] sm:$0xff]
        %v1848 = vld [vmem:[%s439 + $0x2c] sm:$0xff]
        %v1849 = vld [vmem:[%s439 + $0x34] sm:$0xff]
        %v1850 = vld [vmem:[%s439 + $0x3c] sm:$0xff]
        %v1851 = vld [vmem:[%s439 + $0x44] sm:$0xff]
        %v1852 = vld [vmem:[%s439 + $0x4c] sm:$0xff]
        %v1853 = vld [vmem:[%s439 + $0x54] sm:$0xff]
        %v1854 = vld [vmem:[%s439 + $0x5c] sm:$0xff]
        %v1855 = vld [vmem:[%s439 + $0x64] sm:$0xff]
        %v1856 = vld [vmem:[%s439 + $0x6c] sm:$0xff]
        %v1857 = vld [vmem:[%s439 + $0x74] sm:$0xff]
        %v1858 = vld [vmem:[%s439 + $0x7c] sm:$0xff]
        %v1859 = vld [vmem:[%s439 + $0x84] sm:$0xff]
        %v1860 = vld [vmem:[%s439 + $0x8c] sm:$0xff]
        %v1861 = vld [vmem:[%s439 + $0x94] sm:$0xff]
        %v1862 = vld [vmem:[%s439 + $0x9c] sm:$0xff]
        %v1863 = vld [vmem:[%s439 + $0xa4] sm:$0xff]
        %v1864 = vld [vmem:[%s439 + $0xac] sm:$0xff]
        %v1865 = vld [vmem:[%s439 + $0xb4] sm:$0xff]
        %v1866 = vld [vmem:[%s439 + $0xbc] sm:$0xff]
        %v1867 = vld [vmem:[%s439 + $0xc4] sm:$0xff]
        %v1868 = vld [vmem:[%s439 + $0xcc] sm:$0xff]
        %v1869 = vld [vmem:[%s439 + $0xd4] sm:$0xff]
        %v1870 = vld [vmem:[%s439 + $0xdc] sm:$0xff]
        %v1871 = vld [vmem:[%s439 + $0xe4] sm:$0xff]
        %v1872 = vld [vmem:[%s439 + $0xec] sm:$0xff]
        %v1873 = vld [vmem:[%s439 + $0xf4] sm:$0xff]
        %v1874 = vld [vmem:[%s439 + $0xfc] sm:$0xf]
        %v1875 = vpack.c.bf16 %v1844, %v1843
        %v1876 = vpack.c.bf16 %v1846, %v1845
        %v1877 = vpack.c.bf16 %v1848, %v1847
        %v1878 = vpack.c.bf16 %v1850, %v1849
        %v1879 = vpack.c.bf16 %v1852, %v1851
        %v1880 = vpack.c.bf16 %v1854, %v1853
        %v1881 = vpack.c.bf16 %v1856, %v1855
        %v1882 = vpack.c.bf16 %v1858, %v1857
        %v1883 = vpack.c.bf16 %v1860, %v1859
        %v1884 = vpack.c.bf16 %v1862, %v1861
        %v1885 = vpack.c.bf16 %v1864, %v1863
        %v1886 = vpack.c.bf16 %v1866, %v1865
        %v1887 = vpack.c.bf16 %v1868, %v1867
        %v1888 = vpack.c.bf16 %v1870, %v1869
        %v1889 = vpack.c.bf16 %v1872, %v1871
        %v1890 = vpack.c.bf16 %v1874, %v1873
        %s1891 = scalar_lea.vmem %s1, 128
        %v1892 = vld [vmem:[%s1891] sm:$0xff]
        %v1893 = vld [vmem:[%s1891 + $0x8] sm:$0xff]
        %v1894 = vld [vmem:[%s1891 + $0x10] sm:$0xff]
        %v1895 = vld [vmem:[%s1891 + $0x18] sm:$0x33]
        %v1900 = vunpack.c.l.b16 %v1892
        %v1901 = vunpack.c.h.b16 %v1892
        %v1902 = vunpack.c.l.b16 %v1893
        %v1903 = vunpack.c.h.b16 %v1893
        %v1904 = vunpack.c.l.b16 %v1894
        %v1905 = vunpack.c.h.b16 %v1894
        %v1906 = vunpack.c.l.b16 %v1895
        %v1907 = vunpack.c.h.b16 %v1895
        %v1908 = vpack.c.b16 %v1902, %v1900
        %v1909 = vpack.c.b16 %v1903, %v1901
        %v1910 = vpack.c.b16 %v1906, %v1904
        %v1911 = vpack.c.b16 %v1907, %v1905
        %v1915 = vsel %vm565, %v1875, 0
        %v1918 = vsel %vm565, %v1876, 0
        %v1921 = vsel %vm565, %v1877, 0
        %v1924 = vsel %vm565, %v1878, 0
        %v1927 = vsel %vm565, %v1879, 0
        %v1930 = vsel %vm565, %v1880, 0
        %v1933 = vsel %vm565, %v1881, 0
        %v1936 = vsel %vm565, %v1882, 0
        %v1939 = vsel %vm565, %v1883, 0
        %v1942 = vsel %vm565, %v1884, 0
        %v1945 = vsel %vm565, %v1885, 0
        %v1948 = vsel %vm565, %v1886, 0
        %v1951 = vsel %vm565, %v1887, 0
        %v1954 = vsel %vm565, %v1888, 0
        %v1957 = vsel %vm565, %v1889, 0
        %v1960 = vsel %vm565, %v1890, 0
        %v1963 = vsel %vm614, %v1910, 0
        %v1966 = vsel %vm614, %v1911, 0
        %1968 = vmatprep.subr.bf16.mxu0 %v1909
        %1969 = vmatpush1.bf16.msra.mxu0 %v1908
        %1970 = vmatprep.subr.bf16.mxu0 %v1966
        %1971 = vmatpush1.bf16.msra.mxu0 %v1963
        %1972 = vmatprep.subr.bf16.mxu0 0
        %1973 = vmatpush1.bf16.msra.mxu0 0
        %1974 = vmatprep.subr.bf16.mxu0 0
        %1975 = vmatpush1.bf16.msra.mxu0 0
        %1976 = vmatprep.subr.bf16.mxu0 0
        %1977 = vmatpush1.bf16.msra.mxu0 0
        %1978 = vmatprep.subr.bf16.mxu0 0
        %1979 = vmatpush1.bf16.msra.mxu0 0
        %1980 = vmatprep.subr.bf16.mxu0 0
        %1981 = vmatpush1.bf16.msra.mxu0 0
        %1982 = vmatprep.subr.bf16.mxu0 0
        %1983 = vmatpush1.bf16.msra.mxu0 0
        %1984 = vmatprep.subr.bf16.mxu0 0
        %1985 = vmatpush1.bf16.msra.mxu0 0
        %1986 = vmatprep.subr.bf16.mxu0 0
        %1987 = vmatpush1.bf16.msra.mxu0 0
        %1988 = vmatprep.subr.bf16.mxu0 0
        %1989 = vmatpush1.bf16.msra.mxu0 0
        %1990 = vmatprep.subr.bf16.mxu0 0
        %1991 = vmatpush1.bf16.msra.mxu0 0
        %1992 = vmatprep.subr.bf16.mxu0 0
        %1993 = vmatpush1.bf16.msra.mxu0 0
        %1994 = vmatprep.subr.bf16.mxu0 0
        %1995 = vmatpush1.bf16.msra.mxu0 0
        %1996 = vmatprep.subr.bf16.mxu0 0
        %1997 = vmatpush1.bf16.msra.mxu0 0
        %1998 = vmatprep.subr.bf16.mxu0 0
        %1999 = vmatpush1.bf16.msra.mxu0 0
        %2000 = vmatprep.mubr.bf16.mxu0 0
        %2001 = vmatmul.mubr.bf16.gmra.mrb[0].mxu0 %v1915
        %v2002 = vpop.f32.mrb[0].mxu0
        %v2003 = vadd.f32 0.0, %v2002
        %v2004 = vpop.f32.mrb[0].mxu0
        %v2005 = vadd.f32 0.0, %v2004
        %v2006 = vpop.f32.mrb[0].mxu0
        %v2007 = vadd.f32 0.0, %v2006
        %v2008 = vpop.f32.mrb[0].mxu0
        %v2009 = vadd.f32 0.0, %v2008
        %2010 = vmatprep.mubr.bf16.mxu0 0
        %2011 = vmatmul.mubr.bf16.gmra.mrb[0].mxu0 %v1918
        %v2012 = vpop.f32.mrb[0].mxu0
        %v2013 = vadd.f32 0.0, %v2012
        %v2014 = vpop.f32.mrb[0].mxu0
        %v2015 = vadd.f32 0.0, %v2014
        %v2016 = vpop.f32.mrb[0].mxu0
        %v2017 = vadd.f32 0.0, %v2016
        %v2018 = vpop.f32.mrb[0].mxu0
        %v2019 = vadd.f32 0.0, %v2018
        %2020 = vmatprep.mubr.bf16.mxu0 0
        %2021 = vmatmul.mubr.bf16.gmra.mrb[0].mxu0 %v1921
        %v2022 = vpop.f32.mrb[0].mxu0
        %v2023 = vadd.f32 0.0, %v2022
        %v2024 = vpop.f32.mrb[0].mxu0
        %v2025 = vadd.f32 0.0, %v2024
        %v2026 = vpop.f32.mrb[0].mxu0
        %v2027 = vadd.f32 0.0, %v2026
        %v2028 = vpop.f32.mrb[0].mxu0
        %v2029 = vadd.f32 0.0, %v2028
        %2030 = vmatprep.mubr.bf16.mxu0 0
        %2031 = vmatmul.mubr.bf16.gmra.mrb[0].mxu0 %v1924
        %v2032 = vpop.f32.mrb[0].mxu0
        %v2033 = vadd.f32 0.0, %v2032
        %v2034 = vpop.f32.mrb[0].mxu0
        %v2035 = vadd.f32 0.0, %v2034
        %v2036 = vpop.f32.mrb[0].mxu0
        %v2037 = vadd.f32 0.0, %v2036
        %v2038 = vpop.f32.mrb[0].mxu0
        %v2039 = vadd.f32 0.0, %v2038
        %2040 = vmatprep.mubr.bf16.mxu0 0
        %2041 = vmatmul.mubr.bf16.gmra.mrb[0].mxu0 %v1927
        %v2042 = vpop.f32.mrb[0].mxu0
        %v2043 = vadd.f32 0.0, %v2042
        %v2044 = vpop.f32.mrb[0].mxu0
        %v2045 = vadd.f32 0.0, %v2044
        %v2046 = vpop.f32.mrb[0].mxu0
        %v2047 = vadd.f32 0.0, %v2046
        %v2048 = vpop.f32.mrb[0].mxu0
        %v2049 = vadd.f32 0.0, %v2048
        %2050 = vmatprep.mubr.bf16.mxu0 0
        %2051 = vmatmul.mubr.bf16.gmra.mrb[0].mxu0 %v1930
        %v2052 = vpop.f32.mrb[0].mxu0
        %v2053 = vadd.f32 0.0, %v2052
        %v2054 = vpop.f32.mrb[0].mxu0
        %v2055 = vadd.f32 0.0, %v2054
        %v2056 = vpop.f32.mrb[0].mxu0
        %v2057 = vadd.f32 0.0, %v2056
        %v2058 = vpop.f32.mrb[0].mxu0
        %v2059 = vadd.f32 0.0, %v2058
        %2060 = vmatprep.mubr.bf16.mxu0 0
        %2061 = vmatmul.mubr.bf16.gmra.mrb[0].mxu0 %v1933
        %v2062 = vpop.f32.mrb[0].mxu0
        %v2063 = vadd.f32 0.0, %v2062
        %v2064 = vpop.f32.mrb[0].mxu0
        %v2065 = vadd.f32 0.0, %v2064
        %v2066 = vpop.f32.mrb[0].mxu0
        %v2067 = vadd.f32 0.0, %v2066
        %v2068 = vpop.f32.mrb[0].mxu0
        %v2069 = vadd.f32 0.0, %v2068
        %2070 = vmatprep.mubr.bf16.mxu0 0
        %2071 = vmatmul.mubr.bf16.gmra.mrb[0].mxu0 %v1936
        %v2072 = vpop.f32.mrb[0].mxu0
        %v2073 = vadd.f32 0.0, %v2072
        %v2074 = vpop.f32.mrb[0].mxu0
        %v2075 = vadd.f32 0.0, %v2074
        %v2076 = vpop.f32.mrb[0].mxu0
        %v2077 = vadd.f32 0.0, %v2076
        %v2078 = vpop.f32.mrb[0].mxu0
        %v2079 = vadd.f32 0.0, %v2078
        %2080 = vmatprep.mubr.bf16.mxu0 0
        %2081 = vmatmul.mubr.bf16.gmra.mrb[0].mxu0 %v1939
        %v2082 = vpop.f32.mrb[0].mxu0
        %v2083 = vadd.f32 0.0, %v2082
        %v2084 = vpop.f32.mrb[0].mxu0
        %v2085 = vadd.f32 0.0, %v2084
        %v2086 = vpop.f32.mrb[0].mxu0
        %v2087 = vadd.f32 0.0, %v2086
        %v2088 = vpop.f32.mrb[0].mxu0
        %v2089 = vadd.f32 0.0, %v2088
        %2090 = vmatprep.mubr.bf16.mxu0 0
        %2091 = vmatmul.mubr.bf16.gmra.mrb[0].mxu0 %v1942
        %v2092 = vpop.f32.mrb[0].mxu0
        %v2093 = vadd.f32 0.0, %v2092
        %v2094 = vpop.f32.mrb[0].mxu0
        %v2095 = vadd.f32 0.0, %v2094
        %v2096 = vpop.f32.mrb[0].mxu0
        %v2097 = vadd.f32 0.0, %v2096
        %v2098 = vpop.f32.mrb[0].mxu0
        %v2099 = vadd.f32 0.0, %v2098
        %2100 = vmatprep.mubr.bf16.mxu0 0
        %2101 = vmatmul.mubr.bf16.gmra.mrb[0].mxu0 %v1945
        %v2102 = vpop.f32.mrb[0].mxu0
        %v2103 = vadd.f32 0.0, %v2102
        %v2104 = vpop.f32.mrb[0].mxu0
        %v2105 = vadd.f32 0.0, %v2104
        %v2106 = vpop.f32.mrb[0].mxu0
        %v2107 = vadd.f32 0.0, %v2106
        %v2108 = vpop.f32.mrb[0].mxu0
        %v2109 = vadd.f32 0.0, %v2108
        %2110 = vmatprep.mubr.bf16.mxu0 0
        %2111 = vmatmul.mubr.bf16.gmra.mrb[0].mxu0 %v1948
        %v2112 = vpop.f32.mrb[0].mxu0
        %v2113 = vadd.f32 0.0, %v2112
        %v2114 = vpop.f32.mrb[0].mxu0
        %v2115 = vadd.f32 0.0, %v2114
        %v2116 = vpop.f32.mrb[0].mxu0
        %v2117 = vadd.f32 0.0, %v2116
        %v2118 = vpop.f32.mrb[0].mxu0
        %v2119 = vadd.f32 0.0, %v2118
        %2120 = vmatprep.mubr.bf16.mxu0 0
        %2121 = vmatmul.mubr.bf16.gmra.mrb[0].mxu0 %v1951
        %v2122 = vpop.f32.mrb[0].mxu0
        %v2123 = vadd.f32 0.0, %v2122
        %v2124 = vpop.f32.mrb[0].mxu0
        %v2125 = vadd.f32 0.0, %v2124
        %v2126 = vpop.f32.mrb[0].mxu0
        %v2127 = vadd.f32 0.0, %v2126
        %v2128 = vpop.f32.mrb[0].mxu0
        %v2129 = vadd.f32 0.0, %v2128
        %2130 = vmatprep.mubr.bf16.mxu0 0
        %2131 = vmatmul.mubr.bf16.gmra.mrb[0].mxu0 %v1954
        %v2132 = vpop.f32.mrb[0].mxu0
        %v2133 = vadd.f32 0.0, %v2132
        %v2134 = vpop.f32.mrb[0].mxu0
        %v2135 = vadd.f32 0.0, %v2134
        %v2136 = vpop.f32.mrb[0].mxu0
        %v2137 = vadd.f32 0.0, %v2136
        %v2138 = vpop.f32.mrb[0].mxu0
        %v2139 = vadd.f32 0.0, %v2138
        %2140 = vmatprep.mubr.bf16.mxu0 0
        %2141 = vmatmul.mubr.bf16.gmra.mrb[0].mxu0 %v1957
        %v2142 = vpop.f32.mrb[0].mxu0
        %v2143 = vadd.f32 0.0, %v2142
        %v2144 = vpop.f32.mrb[0].mxu0
        %v2145 = vadd.f32 0.0, %v2144
        %v2146 = vpop.f32.mrb[0].mxu0
        %v2147 = vadd.f32 0.0, %v2146
        %v2148 = vpop.f32.mrb[0].mxu0
        %v2149 = vadd.f32 0.0, %v2148
        %2150 = vmatprep.mubr.bf16.mxu0 0
        %2151 = vmatmul.mubr.bf16.gmra.mrb[0].mxu0 %v1960
        %v2152 = vpop.f32.mrb[0].mxu0
        %v2153 = vadd.f32 0.0, %v2152
        %v2154 = vpop.f32.mrb[0].mxu0
        %v2155 = vadd.f32 0.0, %v2154
        %v2156 = vpop.f32.mrb[0].mxu0
        %v2157 = vadd.f32 0.0, %v2156
        %v2158 = vpop.f32.mrb[0].mxu0
        %v2159 = vadd.f32 0.0, %v2158
        %2160 = vdwg.mxu0
        %v2161 = vadd.f32 %v1779, %v2003
        %v2162 = vadd.f32 %v1780, %v2005
        %v2163 = vadd.f32 %v1781, %v2007
        %v2164 = vadd.f32 %v1782, %v2009
        %v2165 = vadd.f32 %v1783, %v2013
        %v2166 = vadd.f32 %v1784, %v2015
        %v2167 = vadd.f32 %v1785, %v2017
        %v2168 = vadd.f32 %v1786, %v2019
        %v2169 = vadd.f32 %v1787, %v2023
        %v2170 = vadd.f32 %v1788, %v2025
        %v2171 = vadd.f32 %v1789, %v2027
        %v2172 = vadd.f32 %v1790, %v2029
        %v2173 = vadd.f32 %v1791, %v2033
        %v2174 = vadd.f32 %v1792, %v2035
        %v2175 = vadd.f32 %v1793, %v2037
        %v2176 = vadd.f32 %v1794, %v2039
        %v2177 = vadd.f32 %v1795, %v2043
        %v2178 = vadd.f32 %v1796, %v2045
        %v2179 = vadd.f32 %v1797, %v2047
        %v2180 = vadd.f32 %v1798, %v2049
        %v2181 = vadd.f32 %v1799, %v2053
        %v2182 = vadd.f32 %v1800, %v2055
        %v2183 = vadd.f32 %v1801, %v2057
        %v2184 = vadd.f32 %v1802, %v2059
        %v2185 = vadd.f32 %v1803, %v2063
        %v2186 = vadd.f32 %v1804, %v2065
        %v2187 = vadd.f32 %v1805, %v2067
        %v2188 = vadd.f32 %v1806, %v2069
        %v2189 = vadd.f32 %v1807, %v2073
        %v2190 = vadd.f32 %v1808, %v2075
        %v2191 = vadd.f32 %v1809, %v2077
        %v2192 = vadd.f32 %v1810, %v2079
        %v2193 = vadd.f32 %v1811, %v2083
        %v2194 = vadd.f32 %v1812, %v2085
        %v2195 = vadd.f32 %v1813, %v2087
        %v2196 = vadd.f32 %v1814, %v2089
        %v2197 = vadd.f32 %v1815, %v2093
        %v2198 = vadd.f32 %v1816, %v2095
        %v2199 = vadd.f32 %v1817, %v2097
        %v2200 = vadd.f32 %v1818, %v2099
        %v2201 = vadd.f32 %v1819, %v2103
        %v2202 = vadd.f32 %v1820, %v2105
        %v2203 = vadd.f32 %v1821, %v2107
        %v2204 = vadd.f32 %v1822, %v2109
        %v2205 = vadd.f32 %v1823, %v2113
        %v2206 = vadd.f32 %v1824, %v2115
        %v2207 = vadd.f32 %v1825, %v2117
        %v2208 = vadd.f32 %v1826, %v2119
        %v2209 = vadd.f32 %v1827, %v2123
        %v2210 = vadd.f32 %v1828, %v2125
        %v2211 = vadd.f32 %v1829, %v2127
        %v2212 = vadd.f32 %v1830, %v2129
        %v2213 = vadd.f32 %v1831, %v2133
        %v2214 = vadd.f32 %v1832, %v2135
        %v2215 = vadd.f32 %v1833, %v2137
        %v2216 = vadd.f32 %v1834, %v2139
        %v2217 = vadd.f32 %v1835, %v2143
        %v2218 = vadd.f32 %v1836, %v2145
        %v2219 = vadd.f32 %v1837, %v2147
        %v2220 = vadd.f32 %v1838, %v2149
        %v2221 = vadd.f32 %v1839, %v2153
        %v2222 = vadd.f32 %v1840, %v2155
        %v2223 = vadd.f32 %v1841, %v2157
        %v2224 = vadd.f32 %v1842, %v2159
        %v2225 = vld [vmem:[%s2] sm:$0x3]
        %v2227 = vlaneseq
        %v2228 = vshrl.u32 %v2227, 7
        %v2229 = vsub.s32 0, %v2228
        %v2230 = vrot.slane %v2225, %v2229
        %v2231 = vlaneseq
        %v2232 = vshrl.u32 %v2231, 7
        %v2233 = vsub.s32 1, %v2232
        %v2234 = vrot.slane %v2225, %v2233
        %v2237 = vadd.f32 %v2161, %v2230
        %v2238 = vadd.f32 %v2162, %v2234
        %v2239 = vadd.f32 %v2163, %v2230
        %v2240 = vadd.f32 %v2164, %v2234
        %v2241 = vadd.f32 %v2165, %v2230
        %v2242 = vadd.f32 %v2166, %v2234
        %v2243 = vadd.f32 %v2167, %v2230
        %v2244 = vadd.f32 %v2168, %v2234
        %v2245 = vadd.f32 %v2169, %v2230
        %v2246 = vadd.f32 %v2170, %v2234
        %v2247 = vadd.f32 %v2171, %v2230
        %v2248 = vadd.f32 %v2172, %v2234
        %v2249 = vadd.f32 %v2173, %v2230
        %v2250 = vadd.f32 %v2174, %v2234
        %v2251 = vadd.f32 %v2175, %v2230
        %v2252 = vadd.f32 %v2176, %v2234
        %v2253 = vadd.f32 %v2177, %v2230
        %v2254 = vadd.f32 %v2178, %v2234
        %v2255 = vadd.f32 %v2179, %v2230
        %v2256 = vadd.f32 %v2180, %v2234
        %v2257 = vadd.f32 %v2181, %v2230
        %v2258 = vadd.f32 %v2182, %v2234
        %v2259 = vadd.f32 %v2183, %v2230
        %v2260 = vadd.f32 %v2184, %v2234
        %v2261 = vadd.f32 %v2185, %v2230
        %v2262 = vadd.f32 %v2186, %v2234
        %v2263 = vadd.f32 %v2187, %v2230
        %v2264 = vadd.f32 %v2188, %v2234
        %v2265 = vadd.f32 %v2189, %v2230
        %v2266 = vadd.f32 %v2190, %v2234
        %v2267 = vadd.f32 %v2191, %v2230
        %v2268 = vadd.f32 %v2192, %v2234
        %v2269 = vadd.f32 %v2193, %v2230
        %v2270 = vadd.f32 %v2194, %v2234
        %v2271 = vadd.f32 %v2195, %v2230
        %v2272 = vadd.f32 %v2196, %v2234
        %v2273 = vadd.f32 %v2197, %v2230
        %v2274 = vadd.f32 %v2198, %v2234
        %v2275 = vadd.f32 %v2199, %v2230
        %v2276 = vadd.f32 %v2200, %v2234
        %v2277 = vadd.f32 %v2201, %v2230
        %v2278 = vadd.f32 %v2202, %v2234
        %v2279 = vadd.f32 %v2203, %v2230
        %v2280 = vadd.f32 %v2204, %v2234
        %v2281 = vadd.f32 %v2205, %v2230
        %v2282 = vadd.f32 %v2206, %v2234
        %v2283 = vadd.f32 %v2207, %v2230
        %v2284 = vadd.f32 %v2208, %v2234
        %v2285 = vadd.f32 %v2209, %v2230
        %v2286 = vadd.f32 %v2210, %v2234
        %v2287 = vadd.f32 %v2211, %v2230
        %v2288 = vadd.f32 %v2212, %v2234
        %v2289 = vadd.f32 %v2213, %v2230
        %v2290 = vadd.f32 %v2214, %v2234
        %v2291 = vadd.f32 %v2215, %v2230
        %v2292 = vadd.f32 %v2216, %v2234
        %v2293 = vadd.f32 %v2217, %v2230
        %v2294 = vadd.f32 %v2218, %v2234
        %v2295 = vadd.f32 %v2219, %v2230
        %v2296 = vadd.f32 %v2220, %v2234
        %v2297 = vadd.f32 %v2221, %v2230
        %v2298 = vadd.f32 %v2222, %v2234
        %v2299 = vadd.f32 %v2223, %v2230
        %v2300 = vadd.f32 %v2224, %v2234
        %v2301 = vmax.f32 %v2237, 0.0
        %v2302 = vmax.f32 %v2238, 0.0
        %v2303 = vmax.f32 %v2239, 0.0
        %v2304 = vmax.f32 %v2240, 0.0
        %v2305 = vmax.f32 %v2241, 0.0
        %v2306 = vmax.f32 %v2242, 0.0
        %v2307 = vmax.f32 %v2243, 0.0
        %v2308 = vmax.f32 %v2244, 0.0
        %v2309 = vmax.f32 %v2245, 0.0
        %v2310 = vmax.f32 %v2246, 0.0
        %v2311 = vmax.f32 %v2247, 0.0
        %v2312 = vmax.f32 %v2248, 0.0
        %v2313 = vmax.f32 %v2249, 0.0
        %v2314 = vmax.f32 %v2250, 0.0
        %v2315 = vmax.f32 %v2251, 0.0
        %v2316 = vmax.f32 %v2252, 0.0
        %v2317 = vmax.f32 %v2253, 0.0
        %v2318 = vmax.f32 %v2254, 0.0
        %v2319 = vmax.f32 %v2255, 0.0
        %v2320 = vmax.f32 %v2256, 0.0
        %v2321 = vmax.f32 %v2257, 0.0
        %v2322 = vmax.f32 %v2258, 0.0
        %v2323 = vmax.f32 %v2259, 0.0
        %v2324 = vmax.f32 %v2260, 0.0
        %v2325 = vmax.f32 %v2261, 0.0
        %v2326 = vmax.f32 %v2262, 0.0
        %v2327 = vmax.f32 %v2263, 0.0
        %v2328 = vmax.f32 %v2264, 0.0
        %v2329 = vmax.f32 %v2265, 0.0
        %v2330 = vmax.f32 %v2266, 0.0
        %v2331 = vmax.f32 %v2267, 0.0
        %v2332 = vmax.f32 %v2268, 0.0
        %v2333 = vmax.f32 %v2269, 0.0
        %v2334 = vmax.f32 %v2270, 0.0
        %v2335 = vmax.f32 %v2271, 0.0
        %v2336 = vmax.f32 %v2272, 0.0
        %v2337 = vmax.f32 %v2273, 0.0
        %v2338 = vmax.f32 %v2274, 0.0
        %v2339 = vmax.f32 %v2275, 0.0
        %v2340 = vmax.f32 %v2276, 0.0
        %v2341 = vmax.f32 %v2277, 0.0
        %v2342 = vmax.f32 %v2278, 0.0
        %v2343 = vmax.f32 %v2279, 0.0
        %v2344 = vmax.f32 %v2280, 0.0
        %v2345 = vmax.f32 %v2281, 0.0
        %v2346 = vmax.f32 %v2282, 0.0
        %v2347 = vmax.f32 %v2283, 0.0
        %v2348 = vmax.f32 %v2284, 0.0
        %v2349 = vmax.f32 %v2285, 0.0
        %v2350 = vmax.f32 %v2286, 0.0
        %v2351 = vmax.f32 %v2287, 0.0
        %v2352 = vmax.f32 %v2288, 0.0
        %v2353 = vmax.f32 %v2289, 0.0
        %v2354 = vmax.f32 %v2290, 0.0
        %v2355 = vmax.f32 %v2291, 0.0
        %v2356 = vmax.f32 %v2292, 0.0
        %v2357 = vmax.f32 %v2293, 0.0
        %v2358 = vmax.f32 %v2294, 0.0
        %v2359 = vmax.f32 %v2295, 0.0
        %v2360 = vmax.f32 %v2296, 0.0
        %v2361 = vmax.f32 %v2297, 0.0
        %v2362 = vmax.f32 %v2298, 0.0
        %v2363 = vmax.f32 %v2299, 0.0
        %v2364 = vmax.f32 %v2300, 0.0
        %v2365 = vpack.c.bf16 %v2303, %v2301
        %v2366 = vpack.c.bf16 %v2304, %v2302
        %v2367 = vpack.c.bf16 %v2307, %v2305
        %v2368 = vpack.c.bf16 %v2308, %v2306
        %v2369 = vpack.c.bf16 %v2311, %v2309
        %v2370 = vpack.c.bf16 %v2312, %v2310
        %v2371 = vpack.c.bf16 %v2315, %v2313
        %v2372 = vpack.c.bf16 %v2316, %v2314
        %v2373 = vpack.c.bf16 %v2319, %v2317
        %v2374 = vpack.c.bf16 %v2320, %v2318
        %v2375 = vpack.c.bf16 %v2323, %v2321
        %v2376 = vpack.c.bf16 %v2324, %v2322
        %v2377 = vpack.c.bf16 %v2327, %v2325
        %v2378 = vpack.c.bf16 %v2328, %v2326
        %v2379 = vpack.c.bf16 %v2331, %v2329
        %v2380 = vpack.c.bf16 %v2332, %v2330
        %v2381 = vpack.c.bf16 %v2335, %v2333
        %v2382 = vpack.c.bf16 %v2336, %v2334
        %v2383 = vpack.c.bf16 %v2339, %v2337
        %v2384 = vpack.c.bf16 %v2340, %v2338
        %v2385 = vpack.c.bf16 %v2343, %v2341
        %v2386 = vpack.c.bf16 %v2344, %v2342
        %v2387 = vpack.c.bf16 %v2347, %v2345
        %v2388 = vpack.c.bf16 %v2348, %v2346
        %v2389 = vpack.c.bf16 %v2351, %v2349
        %v2390 = vpack.c.bf16 %v2352, %v2350
        %v2391 = vpack.c.bf16 %v2355, %v2353
        %v2392 = vpack.c.bf16 %v2356, %v2354
        %v2393 = vpack.c.bf16 %v2359, %v2357
        %v2394 = vpack.c.bf16 %v2360, %v2358
        %v2395 = vpack.c.bf16 %v2363, %v2361
        %v2396 = vpack.c.bf16 %v2364, %v2362
        %v2397 = vld [vmem:[%s3] sm:$0xf]
        %v2398 = vld [vmem:[%s3 + $0x4] sm:$0xf]
        %v2399 = vld [vmem:[%s3 + $0x8] sm:$0xf]
        %v2400 = vld [vmem:[%s3 + $0xc] sm:$0xf]
        %v2401 = vld [vmem:[%s3 + $0x10] sm:$0xf]
        %v2402 = vld [vmem:[%s3 + $0x14] sm:$0xf]
        %v2403 = vld [vmem:[%s3 + $0x18] sm:$0xf]
        %v2404 = vld [vmem:[%s3 + $0x1c] sm:$0xf]
        %v2405 = vld [vmem:[%s3 + $0x20] sm:$0xf]
        %v2406 = vld [vmem:[%s3 + $0x24] sm:$0xf]
        %v2407 = vld [vmem:[%s3 + $0x28] sm:$0xf]
        %v2408 = vld [vmem:[%s3 + $0x2c] sm:$0xf]
        %v2409 = vld [vmem:[%s3 + $0x30] sm:$0xf]
        %v2410 = vld [vmem:[%s3 + $0x34] sm:$0xf]
        %v2411 = vld [vmem:[%s3 + $0x38] sm:$0xf]
        %v2412 = vld [vmem:[%s3 + $0x3c] sm:$0xf]
        %v2413 = vld [vmem:[%s3 + $0x40] sm:$0xf]
        %v2414 = vld [vmem:[%s3 + $0x44] sm:$0xf]
        %v2415 = vld [vmem:[%s3 + $0x48] sm:$0xf]
        %v2416 = vld [vmem:[%s3 + $0x4c] sm:$0xf]
        %v2417 = vld [vmem:[%s3 + $0x50] sm:$0xf]
        %v2439 = vunpack.c.l.b16 %v2397
        %v2440 = vunpack.c.l.b16 %v2398
        %v2441 = vunpack.c.l.b16 %v2399
        %v2442 = vunpack.c.l.b16 %v2400
        %v2443 = vunpack.c.l.b16 %v2401
        %v2444 = vunpack.c.l.b16 %v2402
        %v2445 = vunpack.c.l.b16 %v2403
        %v2446 = vunpack.c.l.b16 %v2404
        %v2447 = vunpack.c.l.b16 %v2405
        %v2448 = vunpack.c.l.b16 %v2406
        %v2449 = vunpack.c.l.b16 %v2407
        %v2450 = vunpack.c.l.b16 %v2408
        %v2451 = vunpack.c.l.b16 %v2409
        %v2452 = vunpack.c.l.b16 %v2410
        %v2453 = vunpack.c.l.b16 %v2411
        %v2454 = vunpack.c.l.b16 %v2412
        %v2455 = vunpack.c.l.b16 %v2413
        %v2456 = vunpack.c.l.b16 %v2414
        %v2457 = vunpack.c.l.b16 %v2415
        %v2458 = vunpack.c.l.b16 %v2416
        %v2459 = vunpack.c.l.b16 %v2417
        %v2460 = vpack.c.b16 %v2440, %v2439
        %v2461 = vpack.c.b16 %v2442, %v2441
        %v2462 = vpack.c.b16 %v2444, %v2443
        %v2463 = vpack.c.b16 %v2446, %v2445
        %v2464 = vpack.c.b16 %v2448, %v2447
        %v2465 = vpack.c.b16 %v2450, %v2449
        %v2466 = vpack.c.b16 %v2452, %v2451
        %v2467 = vpack.c.b16 %v2454, %v2453
        %v2468 = vpack.c.b16 %v2456, %v2455
        %v2469 = vpack.c.b16 %v2458, %v2457
        %v2470 = vpack.c.b16 %v2459, %v2459
        %vm2481 = vcmask 326656
        %v2483 = vsel %vm2481, %v2366, 0
        %v2486 = vsel %vm2481, %v2368, 0
        %v2489 = vsel %vm2481, %v2370, 0
        %v2492 = vsel %vm2481, %v2372, 0
        %v2495 = vsel %vm2481, %v2374, 0
        %v2498 = vsel %vm2481, %v2376, 0
        %v2501 = vsel %vm2481, %v2378, 0
        %v2504 = vsel %vm2481, %v2380, 0
        %v2507 = vsel %vm2481, %v2382, 0
        %v2510 = vsel %vm2481, %v2384, 0
        %v2513 = vsel %vm2481, %v2386, 0
        %v2516 = vsel %vm2481, %v2388, 0
        %v2519 = vsel %vm2481, %v2390, 0
        %v2522 = vsel %vm2481, %v2392, 0
        %v2525 = vsel %vm2481, %v2394, 0
        %v2528 = vsel %vm2481, %v2396, 0
        %vm2530 = vcmask 1043456
        %v2532 = vsel %vm2530, %v2470, 0
        %2534 = vmatprep.subr.bf16.mxu0 0
        %2535 = vmatpush1.bf16.msra.mxu0 %v2460
        %2536 = vmatprep.subr.bf16.mxu0 0
        %2537 = vmatpush1.bf16.msra.mxu0 %v2461
        %2538 = vmatprep.subr.bf16.mxu0 0
        %2539 = vmatpush1.bf16.msra.mxu0 %v2462
        %2540 = vmatprep.subr.bf16.mxu0 0
        %2541 = vmatpush1.bf16.msra.mxu0 %v2463
        %2542 = vmatprep.subr.bf16.mxu0 0
        %2543 = vmatpush1.bf16.msra.mxu0 %v2464
        %2544 = vmatprep.subr.bf16.mxu0 0
        %2545 = vmatpush1.bf16.msra.mxu0 %v2465
        %2546 = vmatprep.subr.bf16.mxu0 0
        %2547 = vmatpush1.bf16.msra.mxu0 %v2466
        %2548 = vmatprep.subr.bf16.mxu0 0
        %2549 = vmatpush1.bf16.msra.mxu0 %v2467
        %2550 = vmatprep.subr.bf16.mxu0 0
        %2551 = vmatpush1.bf16.msra.mxu0 %v2468
        %2552 = vmatprep.subr.bf16.mxu0 0
        %2553 = vmatpush1.bf16.msra.mxu0 %v2469
        %2554 = vmatprep.subr.bf16.mxu0 0
        %2555 = vmatpush1.bf16.msra.mxu0 %v2532
        %2556 = vmatprep.subr.bf16.mxu0 0
        %2557 = vmatpush1.bf16.msra.mxu0 0
        %2558 = vmatprep.subr.bf16.mxu0 0
        %2559 = vmatpush1.bf16.msra.mxu0 0
        %2560 = vmatprep.subr.bf16.mxu0 0
        %2561 = vmatpush1.bf16.msra.mxu0 0
        %2562 = vmatprep.subr.bf16.mxu0 0
        %2563 = vmatpush1.bf16.msra.mxu0 0
        %2564 = vmatprep.subr.bf16.mxu0 0
        %2565 = vmatpush1.bf16.msra.mxu0 0
        %2566 = vmatprep.mubr.bf16.mxu0 %v2483
        %2567 = vmatmul.mubr.bf16.gmra.mrb[0].mxu0 %v2365
        %v2568 = vpop.f32.mrb[0].mxu0
        %v2569 = vadd.f32 0.0, %v2568
        %v2570 = vpop.f32.mrb[0].mxu0
        %v2571 = vpop.f32.mrb[0].mxu0
        %v2572 = vadd.f32 0.0, %v2571
        %v2573 = vpop.f32.mrb[0].mxu0
        %2574 = vmatprep.mubr.bf16.mxu0 %v2486
        %2575 = vmatmul.mubr.bf16.gmra.mrb[0].mxu0 %v2367
        %v2576 = vpop.f32.mrb[0].mxu0
        %v2577 = vadd.f32 0.0, %v2576
        %v2578 = vpop.f32.mrb[0].mxu0
        %v2579 = vpop.f32.mrb[0].mxu0
        %v2580 = vadd.f32 0.0, %v2579
        %v2581 = vpop.f32.mrb[0].mxu0
        %2582 = vmatprep.mubr.bf16.mxu0 %v2489
        %2583 = vmatmul.mubr.bf16.gmra.mrb[0].mxu0 %v2369
        %v2584 = vpop.f32.mrb[0].mxu0
        %v2585 = vadd.f32 0.0, %v2584
        %v2586 = vpop.f32.mrb[0].mxu0
        %v2587 = vpop.f32.mrb[0].mxu0
        %v2588 = vadd.f32 0.0, %v2587
        %v2589 = vpop.f32.mrb[0].mxu0
        %2590 = vmatprep.mubr.bf16.mxu0 %v2492
        %2591 = vmatmul.mubr.bf16.gmra.mrb[0].mxu0 %v2371
        %v2592 = vpop.f32.mrb[0].mxu0
        %v2593 = vadd.f32 0.0, %v2592
        %v2594 = vpop.f32.mrb[0].mxu0
        %v2595 = vpop.f32.mrb[0].mxu0
        %v2596 = vadd.f32 0.0, %v2595
        %v2597 = vpop.f32.mrb[0].mxu0
        %2598 = vmatprep.mubr.bf16.mxu0 %v2495
        %2599 = vmatmul.mubr.bf16.gmra.mrb[0].mxu0 %v2373
        %v2600 = vpop.f32.mrb[0].mxu0
        %v2601 = vadd.f32 0.0, %v2600
        %v2602 = vpop.f32.mrb[0].mxu0
        %v2603 = vpop.f32.mrb[0].mxu0
        %v2604 = vadd.f32 0.0, %v2603
        %v2605 = vpop.f32.mrb[0].mxu0
        %2606 = vmatprep.mubr.bf16.mxu0 %v2498
        %2607 = vmatmul.mubr.bf16.gmra.mrb[0].mxu0 %v2375
        %v2608 = vpop.f32.mrb[0].mxu0
        %v2609 = vadd.f32 0.0, %v2608
        %v2610 = vpop.f32.mrb[0].mxu0
        %v2611 = vpop.f32.mrb[0].mxu0
        %v2612 = vadd.f32 0.0, %v2611
        %v2613 = vpop.f32.mrb[0].mxu0
        %2614 = vmatprep.mubr.bf16.mxu0 %v2501
        %2615 = vmatmul.mubr.bf16.gmra.mrb[0].mxu0 %v2377
        %v2616 = vpop.f32.mrb[0].mxu0
        %v2617 = vadd.f32 0.0, %v2616
        %v2618 = vpop.f32.mrb[0].mxu0
        %v2619 = vpop.f32.mrb[0].mxu0
        %v2620 = vadd.f32 0.0, %v2619
        %v2621 = vpop.f32.mrb[0].mxu0
        %2622 = vmatprep.mubr.bf16.mxu0 %v2504
        %2623 = vmatmul.mubr.bf16.gmra.mrb[0].mxu0 %v2379
        %v2624 = vpop.f32.mrb[0].mxu0
        %v2625 = vadd.f32 0.0, %v2624
        %v2626 = vpop.f32.mrb[0].mxu0
        %v2627 = vpop.f32.mrb[0].mxu0
        %v2628 = vadd.f32 0.0, %v2627
        %v2629 = vpop.f32.mrb[0].mxu0
        %2630 = vmatprep.mubr.bf16.mxu0 %v2507
        %2631 = vmatmul.mubr.bf16.gmra.mrb[0].mxu0 %v2381
        %v2632 = vpop.f32.mrb[0].mxu0
        %v2633 = vadd.f32 0.0, %v2632
        %v2634 = vpop.f32.mrb[0].mxu0
        %v2635 = vpop.f32.mrb[0].mxu0
        %v2636 = vadd.f32 0.0, %v2635
        %v2637 = vpop.f32.mrb[0].mxu0
        %2638 = vmatprep.mubr.bf16.mxu0 %v2510
        %2639 = vmatmul.mubr.bf16.gmra.mrb[0].mxu0 %v2383
        %v2640 = vpop.f32.mrb[0].mxu0
        %v2641 = vadd.f32 0.0, %v2640
        %v2642 = vpop.f32.mrb[0].mxu0
        %v2643 = vpop.f32.mrb[0].mxu0
        %v2644 = vadd.f32 0.0, %v2643
        %v2645 = vpop.f32.mrb[0].mxu0
        %2646 = vmatprep.mubr.bf16.mxu0 %v2513
        %2647 = vmatmul.mubr.bf16.gmra.mrb[0].mxu0 %v2385
        %v2648 = vpop.f32.mrb[0].mxu0
        %v2649 = vadd.f32 0.0, %v2648
        %v2650 = vpop.f32.mrb[0].mxu0
        %v2651 = vpop.f32.mrb[0].mxu0
        %v2652 = vadd.f32 0.0, %v2651
        %v2653 = vpop.f32.mrb[0].mxu0
        %2654 = vmatprep.mubr.bf16.mxu0 %v2516
        %2655 = vmatmul.mubr.bf16.gmra.mrb[0].mxu0 %v2387
        %v2656 = vpop.f32.mrb[0].mxu0
        %v2657 = vadd.f32 0.0, %v2656
        %v2658 = vpop.f32.mrb[0].mxu0
        %v2659 = vpop.f32.mrb[0].mxu0
        %v2660 = vadd.f32 0.0, %v2659
        %v2661 = vpop.f32.mrb[0].mxu0
        %2662 = vmatprep.mubr.bf16.mxu0 %v2519
        %2663 = vmatmul.mubr.bf16.gmra.mrb[0].mxu0 %v2389
        %v2664 = vpop.f32.mrb[0].mxu0
        %v2665 = vadd.f32 0.0, %v2664
        %v2666 = vpop.f32.mrb[0].mxu0
        %v2667 = vpop.f32.mrb[0].mxu0
        %v2668 = vadd.f32 0.0, %v2667
        %v2669 = vpop.f32.mrb[0].mxu0
        %2670 = vmatprep.mubr.bf16.mxu0 %v2522
        %2671 = vmatmul.mubr.bf16.gmra.mrb[0].mxu0 %v2391
        %v2672 = vpop.f32.mrb[0].mxu0
        %v2673 = vadd.f32 0.0, %v2672
        %v2674 = vpop.f32.mrb[0].mxu0
        %v2675 = vpop.f32.mrb[0].mxu0
        %v2676 = vadd.f32 0.0, %v2675
        %v2677 = vpop.f32.mrb[0].mxu0
        %2678 = vmatprep.mubr.bf16.mxu0 %v2525
        %2679 = vmatmul.mubr.bf16.gmra.mrb[0].mxu0 %v2393
        %v2680 = vpop.f32.mrb[0].mxu0
        %v2681 = vadd.f32 0.0, %v2680
        %v2682 = vpop.f32.mrb[0].mxu0
        %v2683 = vpop.f32.mrb[0].mxu0
        %v2684 = vadd.f32 0.0, %v2683
        %v2685 = vpop.f32.mrb[0].mxu0
        %2686 = vmatprep.mubr.bf16.mxu0 %v2528
        %2687 = vmatmul.mubr.bf16.gmra.mrb[0].mxu0 %v2395
        %v2688 = vpop.f32.mrb[0].mxu0
        %v2689 = vadd.f32 0.0, %v2688
        %v2690 = vpop.f32.mrb[0].mxu0
        %v2691 = vpop.f32.mrb[0].mxu0
        %v2692 = vadd.f32 0.0, %v2691
        %v2693 = vpop.f32.mrb[0].mxu0
        %2694 = vdwg.mxu0
        %s2695 = scalar_lea.vmem %s3, 84
        %v2696 = vld [vmem:[%s2695] sm:$0xf]
        %v2697 = vld [vmem:[%s2695 + $0x4] sm:$0xf]
        %v2698 = vld [vmem:[%s2695 + $0x8] sm:$0xf]
        %v2699 = vld [vmem:[%s2695 + $0xc] sm:$0xf]
        %v2700 = vld [vmem:[%s2695 + $0x10] sm:$0xf]
        %v2701 = vld [vmem:[%s2695 + $0x14] sm:$0xf]
        %v2702 = vld [vmem:[%s2695 + $0x18] sm:$0xf]
        %v2703 = vld [vmem:[%s2695 + $0x1c] sm:$0xf]
        %v2704 = vld [vmem:[%s2695 + $0x20] sm:$0xf]
        %v2705 = vld [vmem:[%s2695 + $0x24] sm:$0xf]
        %v2706 = vld [vmem:[%s2695 + $0x28] sm:$0xf]
        %v2707 = vld [vmem:[%s2695 + $0x2c] sm:$0xf]
        %v2708 = vld [vmem:[%s2695 + $0x30] sm:$0xf]
        %v2709 = vld [vmem:[%s2695 + $0x34] sm:$0xf]
        %v2710 = vld [vmem:[%s2695 + $0x38] sm:$0xf]
        %v2711 = vld [vmem:[%s2695 + $0x3c] sm:$0xf]
        %v2712 = vld [vmem:[%s2695 + $0x40] sm:$0xf]
        %v2713 = vld [vmem:[%s2695 + $0x44] sm:$0xf]
        %v2714 = vld [vmem:[%s2695 + $0x48] sm:$0xf]
        %v2715 = vld [vmem:[%s2695 + $0x4c] sm:$0xf]
        %v2716 = vld [vmem:[%s2695 + $0x50] sm:$0xf]
        %v2738 = vunpack.c.l.b16 %v2696
        %v2739 = vunpack.c.l.b16 %v2697
        %v2740 = vunpack.c.l.b16 %v2698
        %v2741 = vunpack.c.l.b16 %v2699
        %v2742 = vunpack.c.l.b16 %v2700
        %v2743 = vunpack.c.l.b16 %v2701
        %v2744 = vunpack.c.l.b16 %v2702
        %v2745 = vunpack.c.l.b16 %v2703
        %v2746 = vunpack.c.l.b16 %v2704
        %v2747 = vunpack.c.l.b16 %v2705
        %v2748 = vunpack.c.l.b16 %v2706
        %v2749 = vunpack.c.l.b16 %v2707
        %v2750 = vunpack.c.l.b16 %v2708
        %v2751 = vunpack.c.l.b16 %v2709
        %v2752 = vunpack.c.l.b16 %v2710
        %v2753 = vunpack.c.l.b16 %v2711
        %v2754 = vunpack.c.l.b16 %v2712
        %v2755 = vunpack.c.l.b16 %v2713
        %v2756 = vunpack.c.l.b16 %v2714
        %v2757 = vunpack.c.l.b16 %v2715
        %v2758 = vunpack.c.l.b16 %v2716
        %v2759 = vpack.c.b16 %v2739, %v2738
        %v2760 = vpack.c.b16 %v2741, %v2740
        %v2761 = vpack.c.b16 %v2743, %v2742
        %v2762 = vpack.c.b16 %v2745, %v2744
        %v2763 = vpack.c.b16 %v2747, %v2746
        %v2764 = vpack.c.b16 %v2749, %v2748
        %v2765 = vpack.c.b16 %v2751, %v2750
        %v2766 = vpack.c.b16 %v2753, %v2752
        %v2767 = vpack.c.b16 %v2755, %v2754
        %v2768 = vpack.c.b16 %v2757, %v2756
        %v2769 = vpack.c.b16 %v2758, %v2758
        %v2781 = vsel %vm2530, %v2769, 0
        %2783 = vmatprep.subr.bf16.mxu0 0
        %2784 = vmatpush1.bf16.msra.mxu0 %v2759
        %2785 = vmatprep.subr.bf16.mxu0 0
        %2786 = vmatpush1.bf16.msra.mxu0 %v2760
        %2787 = vmatprep.subr.bf16.mxu0 0
        %2788 = vmatpush1.bf16.msra.mxu0 %v2761
        %2789 = vmatprep.subr.bf16.mxu0 0
        %2790 = vmatpush1.bf16.msra.mxu0 %v2762
        %2791 = vmatprep.subr.bf16.mxu0 0
        %2792 = vmatpush1.bf16.msra.mxu0 %v2763
        %2793 = vmatprep.subr.bf16.mxu0 0
        %2794 = vmatpush1.bf16.msra.mxu0 %v2764
        %2795 = vmatprep.subr.bf16.mxu0 0
        %2796 = vmatpush1.bf16.msra.mxu0 %v2765
        %2797 = vmatprep.subr.bf16.mxu0 0
        %2798 = vmatpush1.bf16.msra.mxu0 %v2766
        %2799 = vmatprep.subr.bf16.mxu0 0
        %2800 = vmatpush1.bf16.msra.mxu0 %v2767
        %2801 = vmatprep.subr.bf16.mxu0 0
        %2802 = vmatpush1.bf16.msra.mxu0 %v2768
        %2803 = vmatprep.subr.bf16.mxu0 0
        %2804 = vmatpush1.bf16.msra.mxu0 %v2781
        %2805 = vmatprep.subr.bf16.mxu0 0
        %2806 = vmatpush1.bf16.msra.mxu0 0
        %2807 = vmatprep.subr.bf16.mxu0 0
        %2808 = vmatpush1.bf16.msra.mxu0 0
        %2809 = vmatprep.subr.bf16.mxu0 0
        %2810 = vmatpush1.bf16.msra.mxu0 0
        %2811 = vmatprep.subr.bf16.mxu0 0
        %2812 = vmatpush1.bf16.msra.mxu0 0
        %2813 = vmatprep.subr.bf16.mxu0 0
        %2814 = vmatpush1.bf16.msra.mxu0 0
        %2815 = vmatprep.mubr.bf16.mxu0 %v2483
        %2816 = vmatmul.mubr.bf16.gmra.mrb[0].mxu0 %v2365
        %v2817 = vpop.f32.mrb[0].mxu0
        %v2818 = vadd.f32 0.0, %v2817
        %v2819 = vpop.f32.mrb[0].mxu0
        %v2820 = vpop.f32.mrb[0].mxu0
        %v2821 = vadd.f32 0.0, %v2820
        %v2822 = vpop.f32.mrb[0].mxu0
        %2823 = vmatprep.mubr.bf16.mxu0 %v2486
        %2824 = vmatmul.mubr.bf16.gmra.mrb[0].mxu0 %v2367
        %v2825 = vpop.f32.mrb[0].mxu0
        %v2826 = vadd.f32 0.0, %v2825
        %v2827 = vpop.f32.mrb[0].mxu0
        %v2828 = vpop.f32.mrb[0].mxu0
        %v2829 = vadd.f32 0.0, %v2828
        %v2830 = vpop.f32.mrb[0].mxu0
        %2831 = vmatprep.mubr.bf16.mxu0 %v2489
        %2832 = vmatmul.mubr.bf16.gmra.mrb[0].mxu0 %v2369
        %v2833 = vpop.f32.mrb[0].mxu0
        %v2834 = vadd.f32 0.0, %v2833
        %v2835 = vpop.f32.mrb[0].mxu0
        %v2836 = vpop.f32.mrb[0].mxu0
        %v2837 = vadd.f32 0.0, %v2836
        %v2838 = vpop.f32.mrb[0].mxu0
        %2839 = vmatprep.mubr.bf16.mxu0 %v2492
        %2840 = vmatmul.mubr.bf16.gmra.mrb[0].mxu0 %v2371
        %v2841 = vpop.f32.mrb[0].mxu0
        %v2842 = vadd.f32 0.0, %v2841
        %v2843 = vpop.f32.mrb[0].mxu0
        %v2844 = vpop.f32.mrb[0].mxu0
        %v2845 = vadd.f32 0.0, %v2844
        %v2846 = vpop.f32.mrb[0].mxu0
        %2847 = vmatprep.mubr.bf16.mxu0 %v2495
        %2848 = vmatmul.mubr.bf16.gmra.mrb[0].mxu0 %v2373
        %v2849 = vpop.f32.mrb[0].mxu0
        %v2850 = vadd.f32 0.0, %v2849
        %v2851 = vpop.f32.mrb[0].mxu0
        %v2852 = vpop.f32.mrb[0].mxu0
        %v2853 = vadd.f32 0.0, %v2852
        %v2854 = vpop.f32.mrb[0].mxu0
        %2855 = vmatprep.mubr.bf16.mxu0 %v2498
        %2856 = vmatmul.mubr.bf16.gmra.mrb[0].mxu0 %v2375
        %v2857 = vpop.f32.mrb[0].mxu0
        %v2858 = vadd.f32 0.0, %v2857
        %v2859 = vpop.f32.mrb[0].mxu0
        %v2860 = vpop.f32.mrb[0].mxu0
        %v2861 = vadd.f32 0.0, %v2860
        %v2862 = vpop.f32.mrb[0].mxu0
        %2863 = vmatprep.mubr.bf16.mxu0 %v2501
        %2864 = vmatmul.mubr.bf16.gmra.mrb[0].mxu0 %v2377
        %v2865 = vpop.f32.mrb[0].mxu0
        %v2866 = vadd.f32 0.0, %v2865
        %v2867 = vpop.f32.mrb[0].mxu0
        %v2868 = vpop.f32.mrb[0].mxu0
        %v2869 = vadd.f32 0.0, %v2868
        %v2870 = vpop.f32.mrb[0].mxu0
        %2871 = vmatprep.mubr.bf16.mxu0 %v2504
        %2872 = vmatmul.mubr.bf16.gmra.mrb[0].mxu0 %v2379
        %v2873 = vpop.f32.mrb[0].mxu0
        %v2874 = vadd.f32 0.0, %v2873
        %v2875 = vpop.f32.mrb[0].mxu0
        %v2876 = vpop.f32.mrb[0].mxu0
        %v2877 = vadd.f32 0.0, %v2876
        %v2878 = vpop.f32.mrb[0].mxu0
        %2879 = vmatprep.mubr.bf16.mxu0 %v2507
        %2880 = vmatmul.mubr.bf16.gmra.mrb[0].mxu0 %v2381
        %v2881 = vpop.f32.mrb[0].mxu0
        %v2882 = vadd.f32 0.0, %v2881
        %v2883 = vpop.f32.mrb[0].mxu0
        %v2884 = vpop.f32.mrb[0].mxu0
        %v2885 = vadd.f32 0.0, %v2884
        %v2886 = vpop.f32.mrb[0].mxu0
        %2887 = vmatprep.mubr.bf16.mxu0 %v2510
        %2888 = vmatmul.mubr.bf16.gmra.mrb[0].mxu0 %v2383
        %v2889 = vpop.f32.mrb[0].mxu0
        %v2890 = vadd.f32 0.0, %v2889
        %v2891 = vpop.f32.mrb[0].mxu0
        %v2892 = vpop.f32.mrb[0].mxu0
        %v2893 = vadd.f32 0.0, %v2892
        %v2894 = vpop.f32.mrb[0].mxu0
        %2895 = vmatprep.mubr.bf16.mxu0 %v2513
        %2896 = vmatmul.mubr.bf16.gmra.mrb[0].mxu0 %v2385
        %v2897 = vpop.f32.mrb[0].mxu0
        %v2898 = vadd.f32 0.0, %v2897
        %v2899 = vpop.f32.mrb[0].mxu0
        %v2900 = vpop.f32.mrb[0].mxu0
        %v2901 = vadd.f32 0.0, %v2900
        %v2902 = vpop.f32.mrb[0].mxu0
        %2903 = vmatprep.mubr.bf16.mxu0 %v2516
        %2904 = vmatmul.mubr.bf16.gmra.mrb[0].mxu0 %v2387
        %v2905 = vpop.f32.mrb[0].mxu0
        %v2906 = vadd.f32 0.0, %v2905
        %v2907 = vpop.f32.mrb[0].mxu0
        %v2908 = vpop.f32.mrb[0].mxu0
        %v2909 = vadd.f32 0.0, %v2908
        %v2910 = vpop.f32.mrb[0].mxu0
        %2911 = vmatprep.mubr.bf16.mxu0 %v2519
        %2912 = vmatmul.mubr.bf16.gmra.mrb[0].mxu0 %v2389
        %v2913 = vpop.f32.mrb[0].mxu0
        %v2914 = vadd.f32 0.0, %v2913
        %v2915 = vpop.f32.mrb[0].mxu0
        %v2916 = vpop.f32.mrb[0].mxu0
        %v2917 = vadd.f32 0.0, %v2916
        %v2918 = vpop.f32.mrb[0].mxu0
        %2919 = vmatprep.mubr.bf16.mxu0 %v2522
        %2920 = vmatmul.mubr.bf16.gmra.mrb[0].mxu0 %v2391
        %v2921 = vpop.f32.mrb[0].mxu0
        %v2922 = vadd.f32 0.0, %v2921
        %v2923 = vpop.f32.mrb[0].mxu0
        %v2924 = vpop.f32.mrb[0].mxu0
        %v2925 = vadd.f32 0.0, %v2924
        %v2926 = vpop.f32.mrb[0].mxu0
        %2927 = vmatprep.mubr.bf16.mxu0 %v2525
        %2928 = vmatmul.mubr.bf16.gmra.mrb[0].mxu0 %v2393
        %v2929 = vpop.f32.mrb[0].mxu0
        %v2930 = vadd.f32 0.0, %v2929
        %v2931 = vpop.f32.mrb[0].mxu0
        %v2932 = vpop.f32.mrb[0].mxu0
        %v2933 = vadd.f32 0.0, %v2932
        %v2934 = vpop.f32.mrb[0].mxu0
        %2935 = vmatprep.mubr.bf16.mxu0 %v2528
        %2936 = vmatmul.mubr.bf16.gmra.mrb[0].mxu0 %v2395
        %v2937 = vpop.f32.mrb[0].mxu0
        %v2938 = vadd.f32 0.0, %v2937
        %v2939 = vpop.f32.mrb[0].mxu0
        %v2940 = vpop.f32.mrb[0].mxu0
        %v2941 = vadd.f32 0.0, %v2940
        %v2942 = vpop.f32.mrb[0].mxu0
        %2943 = vdwg.mxu0
        %v2944 = vmax.f32 %v2569, %v2818
        %v2945 = vmax.f32 %v2572, %v2821
        %v2946 = vmax.f32 %v2577, %v2826
        %v2947 = vmax.f32 %v2580, %v2829
        %v2948 = vmax.f32 %v2585, %v2834
        %v2949 = vmax.f32 %v2588, %v2837
        %v2950 = vmax.f32 %v2593, %v2842
        %v2951 = vmax.f32 %v2596, %v2845
        %v2952 = vmax.f32 %v2601, %v2850
        %v2953 = vmax.f32 %v2604, %v2853
        %v2954 = vmax.f32 %v2609, %v2858
        %v2955 = vmax.f32 %v2612, %v2861
        %v2956 = vmax.f32 %v2617, %v2866
        %v2957 = vmax.f32 %v2620, %v2869
        %v2958 = vmax.f32 %v2625, %v2874
        %v2959 = vmax.f32 %v2628, %v2877
        %v2960 = vmax.f32 %v2633, %v2882
        %v2961 = vmax.f32 %v2636, %v2885
        %v2962 = vmax.f32 %v2641, %v2890
        %v2963 = vmax.f32 %v2644, %v2893
        %v2964 = vmax.f32 %v2649, %v2898
        %v2965 = vmax.f32 %v2652, %v2901
        %v2966 = vmax.f32 %v2657, %v2906
        %v2967 = vmax.f32 %v2660, %v2909
        %v2968 = vmax.f32 %v2665, %v2914
        %v2969 = vmax.f32 %v2668, %v2917
        %v2970 = vmax.f32 %v2673, %v2922
        %v2971 = vmax.f32 %v2676, %v2925
        %v2972 = vmax.f32 %v2681, %v2930
        %v2973 = vmax.f32 %v2684, %v2933
        %v2974 = vmax.f32 %v2689, %v2938
        %v2975 = vmax.f32 %v2692, %v2941
        %vm2976 = vcmask 687104
        %2977 = vst.msk [vmem:[#allocation2] sm:$0xff] %vm2976, %v2944
        %2978 = vst.msk [vmem:[#allocation2 + $0x8] sm:$0xff] %vm2976, %v2945
        %2979 = vst.msk [vmem:[#allocation2 + $0x10] sm:$0xff] %vm2976, %v2946
        %2980 = vst.msk [vmem:[#allocation2 + $0x18] sm:$0xff] %vm2976, %v2947
        %2981 = vst.msk [vmem:[#allocation2 + $0x20] sm:$0xff] %vm2976, %v2948
        %2982 = vst.msk [vmem:[#allocation2 + $0x28] sm:$0xff] %vm2976, %v2949
        %2983 = vst.msk [vmem:[#allocation2 + $0x30] sm:$0xff] %vm2976, %v2950
        %2984 = vst.msk [vmem:[#allocation2 + $0x38] sm:$0xff] %vm2976, %v2951
        %2985 = vst.msk [vmem:[#allocation2 + $0x40] sm:$0xff] %vm2976, %v2952
        %2986 = vst.msk [vmem:[#allocation2 + $0x48] sm:$0xff] %vm2976, %v2953
        %2987 = vst.msk [vmem:[#allocation2 + $0x50] sm:$0xff] %vm2976, %v2954
        %2988 = vst.msk [vmem:[#allocation2 + $0x58] sm:$0xff] %vm2976, %v2955
        %2989 = vst.msk [vmem:[#allocation2 + $0x60] sm:$0xff] %vm2976, %v2956
        %2990 = vst.msk [vmem:[#allocation2 + $0x68] sm:$0xff] %vm2976, %v2957
        %2991 = vst.msk [vmem:[#allocation2 + $0x70] sm:$0xff] %vm2976, %v2958
        %2992 = vst.msk [vmem:[#allocation2 + $0x78] sm:$0xff] %vm2976, %v2959
        %2993 = vst.msk [vmem:[#allocation2 + $0x80] sm:$0xff] %vm2976, %v2960
        %2994 = vst.msk [vmem:[#allocation2 + $0x88] sm:$0xff] %vm2976, %v2961
        %2995 = vst.msk [vmem:[#allocation2 + $0x90] sm:$0xff] %vm2976, %v2962
        %2996 = vst.msk [vmem:[#allocation2 + $0x98] sm:$0xff] %vm2976, %v2963
        %2997 = vst.msk [vmem:[#allocation2 + $0xa0] sm:$0xff] %vm2976, %v2964
        %2998 = vst.msk [vmem:[#allocation2 + $0xa8] sm:$0xff] %vm2976, %v2965
        %2999 = vst.msk [vmem:[#allocation2 + $0xb0] sm:$0xff] %vm2976, %v2966
        %3000 = vst.msk [vmem:[#allocation2 + $0xb8] sm:$0xff] %vm2976, %v2967
        %3001 = vst.msk [vmem:[#allocation2 + $0xc0] sm:$0xff] %vm2976, %v2968
        %3002 = vst.msk [vmem:[#allocation2 + $0xc8] sm:$0xff] %vm2976, %v2969
        %3003 = vst.msk [vmem:[#allocation2 + $0xd0] sm:$0xff] %vm2976, %v2970
        %3004 = vst.msk [vmem:[#allocation2 + $0xd8] sm:$0xff] %vm2976, %v2971
        %3005 = vst.msk [vmem:[#allocation2 + $0xe0] sm:$0xff] %vm2976, %v2972
        %3006 = vst.msk [vmem:[#allocation2 + $0xe8] sm:$0xff] %vm2976, %v2973
        %3007 = vst.msk [vmem:[#allocation2 + $0xf0] sm:$0xff] %vm2976, %v2974
        %vm3008 = vcmask 683008
        %3009 = vst.msk [vmem:[#allocation2 + $0xf8] sm:$0xf] %vm3008, %v2975
        %3010 = vst.msk [vmem:[#allocation2 + $0xfc] sm:$0xf] %vm3008, 0.0
        %v3011 = vld [vmem:[#allocation2] ss:$2 sm:$0xff]
        %s3012 = scalar_lea.vmem [#allocation2], 16
        %v3013 = vld [vmem:[%s3012] ss:$2 sm:$0xff]
        %s3014 = scalar_lea.vmem [#allocation2], 32
        %v3015 = vld [vmem:[%s3014] ss:$2 sm:$0xff]
        %s3016 = scalar_lea.vmem [#allocation2], 48
        %v3017 = vld [vmem:[%s3016] ss:$2 sm:$0xff]
        %s3018 = scalar_lea.vmem [#allocation2], 64
        %v3019 = vld [vmem:[%s3018] ss:$2 sm:$0xff]
        %s3020 = scalar_lea.vmem [#allocation2], 80
        %v3021 = vld [vmem:[%s3020] ss:$2 sm:$0xff]
        %s3022 = scalar_lea.vmem [#allocation2], 96
        %v3023 = vld [vmem:[%s3022] ss:$2 sm:$0xff]
        %s3024 = scalar_lea.vmem [#allocation2], 112
        %v3025 = vld [vmem:[%s3024] ss:$2 sm:$0xff]
        %s3026 = scalar_lea.vmem [#allocation2], 128
        %v3027 = vld [vmem:[%s3026] ss:$2 sm:$0xff]
        %s3028 = scalar_lea.vmem [#allocation2], 144
        %v3029 = vld [vmem:[%s3028] ss:$2 sm:$0xff]
        %s3030 = scalar_lea.vmem [#allocation2], 160
        %v3031 = vld [vmem:[%s3030] ss:$2 sm:$0xff]
        %s3032 = scalar_lea.vmem [#allocation2], 176
        %v3033 = vld [vmem:[%s3032] ss:$2 sm:$0xff]
        %s3034 = scalar_lea.vmem [#allocation2], 192
        %v3035 = vld [vmem:[%s3034] ss:$2 sm:$0xff]
        %s3036 = scalar_lea.vmem [#allocation2], 208
        %v3037 = vld [vmem:[%s3036] ss:$2 sm:$0xff]
        %s3038 = scalar_lea.vmem [#allocation2], 224
        %v3039 = vld [vmem:[%s3038] ss:$2 sm:$0xff]
        %s3040 = scalar_lea.vmem [#allocation2], 240
        %v3041 = vld [vmem:[%s3040] ss:$2 sm:$0xff]
        %s3042 = scalar_lea.vmem [#allocation2], 1
        %v3043 = vld [vmem:[%s3042] ss:$2 sm:$0xff]
        %s3044 = scalar_lea.vmem [#allocation2], 17
        %v3045 = vld [vmem:[%s3044] ss:$2 sm:$0xff]
        %s3046 = scalar_lea.vmem [#allocation2], 33
        %v3047 = vld [vmem:[%s3046] ss:$2 sm:$0xff]
        %s3048 = scalar_lea.vmem [#allocation2], 49
        %v3049 = vld [vmem:[%s3048] ss:$2 sm:$0xff]
        %s3050 = scalar_lea.vmem [#allocation2], 65
        %v3051 = vld [vmem:[%s3050] ss:$2 sm:$0xff]
        %s3052 = scalar_lea.vmem [#allocation2], 81
        %v3053 = vld [vmem:[%s3052] ss:$2 sm:$0xff]
        %s3054 = scalar_lea.vmem [#allocation2], 97
        %v3055 = vld [vmem:[%s3054] ss:$2 sm:$0xff]
        %s3056 = scalar_lea.vmem [#allocation2], 113
        %v3057 = vld [vmem:[%s3056] ss:$2 sm:$0xff]
        %s3058 = scalar_lea.vmem [#allocation2], 129
        %v3059 = vld [vmem:[%s3058] ss:$2 sm:$0xff]
        %s3060 = scalar_lea.vmem [#allocation2], 145
        %v3061 = vld [vmem:[%s3060] ss:$2 sm:$0xff]
        %s3062 = scalar_lea.vmem [#allocation2], 161
        %v3063 = vld [vmem:[%s3062] ss:$2 sm:$0xff]
        %s3064 = scalar_lea.vmem [#allocation2], 177
        %v3065 = vld [vmem:[%s3064] ss:$2 sm:$0xff]
        %s3066 = scalar_lea.vmem [#allocation2], 193
        %v3067 = vld [vmem:[%s3066] ss:$2 sm:$0xff]
        %s3068 = scalar_lea.vmem [#allocation2], 209
        %v3069 = vld [vmem:[%s3068] ss:$2 sm:$0xff]
        %s3070 = scalar_lea.vmem [#allocation2], 225
        %v3071 = vld [vmem:[%s3070] ss:$2 sm:$0xff]
        %s3072 = scalar_lea.vmem [#allocation2], 241
        %v3073 = vld [vmem:[%s3072] ss:$2 sm:$0xff]
        %v3074 = vmax.f32 %v3011, %v3043
        %v3075 = vmax.f32 %v3013, %v3045
        %v3076 = vmax.f32 %v3015, %v3047
        %v3077 = vmax.f32 %v3017, %v3049
        %v3078 = vmax.f32 %v3019, %v3051
        %v3079 = vmax.f32 %v3021, %v3053
        %v3080 = vmax.f32 %v3023, %v3055
        %v3081 = vmax.f32 %v3025, %v3057
        %v3082 = vmax.f32 %v3027, %v3059
        %v3083 = vmax.f32 %v3029, %v3061
        %v3084 = vmax.f32 %v3031, %v3063
        %v3085 = vmax.f32 %v3033, %v3065
        %v3086 = vmax.f32 %v3035, %v3067
        %v3087 = vmax.f32 %v3037, %v3069
        %v3088 = vmax.f32 %v3039, %v3071
        %v3089 = vmax.f32 %v3041, %v3073
        %3090 = vst.msk [vmem:[#allocation3] sm:$0xff] %vm2976, %v3074
        %3091 = vst.msk [vmem:[#allocation3 + $0x8] sm:$0xff] %vm2976, %v3075
        %3092 = vst.msk [vmem:[#allocation3 + $0x10] sm:$0xff] %vm2976, %v3076
        %3093 = vst.msk [vmem:[#allocation3 + $0x18] sm:$0xff] %vm2976, %v3077
        %3094 = vst.msk [vmem:[#allocation3 + $0x20] sm:$0xff] %vm2976, %v3078
        %3095 = vst.msk [vmem:[#allocation3 + $0x28] sm:$0xff] %vm2976, %v3079
        %3096 = vst.msk [vmem:[#allocation3 + $0x30] sm:$0xff] %vm2976, %v3080
        %3097 = vst.msk [vmem:[#allocation3 + $0x38] sm:$0xff] %vm2976, %v3081
        %3098 = vst.msk [vmem:[#allocation3 + $0x40] sm:$0xff] %vm2976, %v3082
        %3099 = vst.msk [vmem:[#allocation3 + $0x48] sm:$0xff] %vm2976, %v3083
        %3100 = vst.msk [vmem:[#allocation3 + $0x50] sm:$0xff] %vm2976, %v3084
        %3101 = vst.msk [vmem:[#allocation3 + $0x58] sm:$0xff] %vm2976, %v3085
        %3102 = vst.msk [vmem:[#allocation3 + $0x60] sm:$0xff] %vm2976, %v3086
        %3103 = vst.msk [vmem:[#allocation3 + $0x68] sm:$0xff] %vm2976, %v3087
        %3104 = vst.msk [vmem:[#allocation3 + $0x70] sm:$0xff] %vm2976, %v3088
        %3105 = vst.msk [vmem:[#allocation3 + $0x78] sm:$0xff] %vm2976, %v3089
        %v3106 = vld [vmem:[#allocation3] sm:$0xff]
        %v3107 = vld [vmem:[#allocation3 + $0x8] sm:$0xff]
        %v3108 = vld [vmem:[#allocation3 + $0x10] sm:$0xff]
        %v3109 = vld [vmem:[#allocation3 + $0x18] sm:$0xff]
        %v3110 = vld [vmem:[#allocation3 + $0x20] sm:$0xff]
        %v3111 = vld [vmem:[#allocation3 + $0x28] sm:$0xff]
        %v3112 = vld [vmem:[#allocation3 + $0x30] sm:$0xff]
        %v3113 = vld [vmem:[#allocation3 + $0x38] sm:$0xff]
        %v3114 = vld [vmem:[#allocation3 + $0x40] sm:$0xff]
        %v3115 = vld [vmem:[#allocation3 + $0x48] sm:$0xff]
        %v3116 = vld [vmem:[#allocation3 + $0x50] sm:$0xff]
        %v3117 = vld [vmem:[#allocation3 + $0x58] sm:$0xff]
        %v3118 = vld [vmem:[#allocation3 + $0x60] sm:$0xff]
        %v3119 = vld [vmem:[#allocation3 + $0x68] sm:$0xff]
        %v3120 = vld [vmem:[#allocation3 + $0x70] sm:$0xff]
        %v3121 = vld [vmem:[#allocation3 + $0x78] sm:$0xf]
        %v3122 = vpack.c.bf16 %v3107, %v3106
        %v3123 = vpack.c.bf16 %v3109, %v3108
        %v3124 = vpack.c.bf16 %v3111, %v3110
        %v3125 = vpack.c.bf16 %v3113, %v3112
        %v3126 = vpack.c.bf16 %v3115, %v3114
        %v3127 = vpack.c.bf16 %v3117, %v3116
        %v3128 = vpack.c.bf16 %v3119, %v3118
        %v3129 = vpack.c.bf16 %v3121, %v3120
        %v3130 = vld [vmem:[%s4] sm:$0xff]
        %v3131 = vld [vmem:[%s4 + $0x8] sm:$0xff]
        %v3132 = vld [vmem:[%s4 + $0x10] sm:$0xff]
        %v3133 = vld [vmem:[%s4 + $0x18] sm:$0xff]
        %v3134 = vld [vmem:[%s4 + $0x20] sm:$0xff]
        %v3135 = vld [vmem:[%s4 + $0x28] sm:$0xff]
        %v3136 = vld [vmem:[%s4 + $0x30] sm:$0xff]
        %v3137 = vld [vmem:[%s4 + $0x38] sm:$0xff]
        %v3138 = vld [vmem:[%s4 + $0x40] sm:$0xff]
        %v3139 = vld [vmem:[%s4 + $0x48] sm:$0xff]
        %v3140 = vld [vmem:[%s4 + $0x50] sm:$0x33]
        %v3141 = vld [vmem:[#allocation3 + $0x1] sm:$0xff]
        %v3142 = vld [vmem:[#allocation3 + $0x9] sm:$0xff]
        %v3143 = vld [vmem:[#allocation3 + $0x11] sm:$0xff]
        %v3144 = vld [vmem:[#allocation3 + $0x19] sm:$0xff]
        %v3145 = vld [vmem:[#allocation3 + $0x21] sm:$0xff]
        %v3146 = vld [vmem:[#allocation3 + $0x29] sm:$0xff]
        %v3147 = vld [vmem:[#allocation3 + $0x31] sm:$0xff]
        %v3148 = vld [vmem:[#allocation3 + $0x39] sm:$0xff]
        %v3149 = vld [vmem:[#allocation3 + $0x41] sm:$0xff]
        %v3150 = vld [vmem:[#allocation3 + $0x49] sm:$0xff]
        %v3151 = vld [vmem:[#allocation3 + $0x51] sm:$0xff]
        %v3152 = vld [vmem:[#allocation3 + $0x59] sm:$0xff]
        %v3153 = vld [vmem:[#allocation3 + $0x61] sm:$0xff]
        %v3154 = vld [vmem:[#allocation3 + $0x69] sm:$0xff]
        %v3155 = vld [vmem:[#allocation3 + $0x71] sm:$0xff]
        %v3156 = vld [vmem:[#allocation3 + $0x79] sm:$0xf]
        %v3157 = vpack.c.bf16 %v3142, %v3141
        %v3158 = vpack.c.bf16 %v3144, %v3143
        %v3159 = vpack.c.bf16 %v3146, %v3145
        %v3160 = vpack.c.bf16 %v3148, %v3147
        %v3161 = vpack.c.bf16 %v3150, %v3149
        %v3162 = vpack.c.bf16 %v3152, %v3151
        %v3163 = vpack.c.bf16 %v3154, %v3153
        %v3164 = vpack.c.bf16 %v3156, %v3155
        %s3165 = scalar_lea.vmem %s4, 88
        %v3166 = vld [vmem:[%s3165] sm:$0xff]
        %v3167 = vld [vmem:[%s3165 + $0x8] sm:$0xff]
        %v3168 = vld [vmem:[%s3165 + $0x10] sm:$0xff]
        %v3169 = vld [vmem:[%s3165 + $0x18] sm:$0xff]
        %v3170 = vld [vmem:[%s3165 + $0x20] sm:$0xff]
        %v3171 = vld [vmem:[%s3165 + $0x28] sm:$0xff]
        %v3172 = vld [vmem:[%s3165 + $0x30] sm:$0xff]
        %v3173 = vld [vmem:[%s3165 + $0x38] sm:$0xff]
        %v3174 = vld [vmem:[%s3165 + $0x40] sm:$0xff]
        %v3175 = vld [vmem:[%s3165 + $0x48] sm:$0xff]
        %v3176 = vld [vmem:[%s3165 + $0x50] sm:$0x33]
        %v3188 = vunpack.c.l.b16 %v3166
        %v3189 = vunpack.c.h.b16 %v3166
        %v3190 = vunpack.c.l.b16 %v3167
        %v3191 = vunpack.c.h.b16 %v3167
        %v3192 = vunpack.c.l.b16 %v3168
        %v3193 = vunpack.c.h.b16 %v3168
        %v3194 = vunpack.c.l.b16 %v3169
        %v3195 = vunpack.c.h.b16 %v3169
        %v3196 = vunpack.c.l.b16 %v3170
        %v3197 = vunpack.c.h.b16 %v3170
        %v3198 = vunpack.c.l.b16 %v3171
        %v3199 = vunpack.c.h.b16 %v3171
        %v3200 = vunpack.c.l.b16 %v3172
        %v3201 = vunpack.c.h.b16 %v3172
        %v3202 = vunpack.c.l.b16 %v3173
        %v3203 = vunpack.c.h.b16 %v3173
        %v3204 = vunpack.c.l.b16 %v3174
        %v3205 = vunpack.c.h.b16 %v3174
        %v3206 = vunpack.c.l.b16 %v3175
        %v3207 = vunpack.c.h.b16 %v3175
        %v3208 = vunpack.c.l.b16 %v3176
        %v3209 = vunpack.c.h.b16 %v3176
        %v3210 = vpack.c.b16 %v3190, %v3188
        %v3211 = vpack.c.b16 %v3191, %v3189
        %v3212 = vpack.c.b16 %v3194, %v3192
        %v3213 = vpack.c.b16 %v3195, %v3193
        %v3214 = vpack.c.b16 %v3198, %v3196
        %v3215 = vpack.c.b16 %v3199, %v3197
        %v3216 = vpack.c.b16 %v3202, %v3200
        %v3217 = vpack.c.b16 %v3203, %v3201
        %v3218 = vpack.c.b16 %v3206, %v3204
        %v3219 = vpack.c.b16 %v3207, %v3205
        %v3220 = vpack.c.b16 %v3208, %v3208
        %v3221 = vpack.c.b16 %v3209, %v3209
        %v3233 = vsel %vm2976, %v3157, 0
        %v3236 = vsel %vm2976, %v3158, 0
        %v3239 = vsel %vm2976, %v3159, 0
        %v3242 = vsel %vm2976, %v3160, 0
        %v3245 = vsel %vm2976, %v3161, 0
        %v3248 = vsel %vm2976, %v3162, 0
        %v3251 = vsel %vm2976, %v3163, 0
        %v3254 = vsel %vm2976, %v3164, 0
        %vm3256 = vcmask 1041408
        %v3258 = vsel %vm3256, %v3220, 0
        %v3261 = vsel %vm3256, %v3221, 0
        %3263 = vmatprep.subr.bf16.mxu0 %v3211
        %3264 = vmatpush1.bf16.msra.mxu0 %v3210
        %3265 = vmatprep.subr.bf16.mxu0 %v3213
        %3266 = vmatpush1.bf16.msra.mxu0 %v3212
        %3267 = vmatprep.subr.bf16.mxu0 %v3215
        %3268 = vmatpush1.bf16.msra.mxu0 %v3214
        %3269 = vmatprep.subr.bf16.mxu0 %v3217
        %3270 = vmatpush1.bf16.msra.mxu0 %v3216
        %3271 = vmatprep.subr.bf16.mxu0 %v3219
        %3272 = vmatpush1.bf16.msra.mxu0 %v3218
        %3273 = vmatprep.subr.bf16.mxu0 %v3261
        %3274 = vmatpush1.bf16.msra.mxu0 %v3258
        %3275 = vmatprep.subr.bf16.mxu0 0
        %3276 = vmatpush1.bf16.msra.mxu0 0
        %3277 = vmatprep.subr.bf16.mxu0 0
        %3278 = vmatpush1.bf16.msra.mxu0 0
        %3279 = vmatprep.subr.bf16.mxu0 0
        %3280 = vmatpush1.bf16.msra.mxu0 0
        %3281 = vmatprep.subr.bf16.mxu0 0
        %3282 = vmatpush1.bf16.msra.mxu0 0
        %3283 = vmatprep.subr.bf16.mxu0 0
        %3284 = vmatpush1.bf16.msra.mxu0 0
        %3285 = vmatprep.subr.bf16.mxu0 0
        %3286 = vmatpush1.bf16.msra.mxu0 0
        %3287 = vmatprep.subr.bf16.mxu0 0
        %3288 = vmatpush1.bf16.msra.mxu0 0
        %3289 = vmatprep.subr.bf16.mxu0 0
        %3290 = vmatpush1.bf16.msra.mxu0 0
        %3291 = vmatprep.subr.bf16.mxu0 0
        %3292 = vmatpush1.bf16.msra.mxu0 0
        %3293 = vmatprep.subr.bf16.mxu0 0
        %3294 = vmatpush1.bf16.msra.mxu0 0
        %3295 = vmatprep.mubr.bf16.mxu0 0
        %3296 = vmatmul.mubr.bf16.gmra.mrb[0].mxu0 %v3233
        %v3297 = vpop.f32.mrb[0].mxu0
        %v3298 = vadd.f32 0.0, %v3297
        %v3299 = vpop.f32.mrb[0].mxu0
        %v3300 = vadd.f32 0.0, %v3299
        %v3301 = vpop.f32.mrb[0].mxu0
        %v3302 = vadd.f32 0.0, %v3301
        %v3303 = vpop.f32.mrb[0].mxu0
        %v3304 = vadd.f32 0.0, %v3303
        %3305 = vmatprep.mubr.bf16.mxu0 0
        %3306 = vmatmul.mubr.bf16.gmra.mrb[0].mxu0 %v3236
        %v3307 = vpop.f32.mrb[0].mxu0
        %v3308 = vadd.f32 0.0, %v3307
        %v3309 = vpop.f32.mrb[0].mxu0
        %v3310 = vadd.f32 0.0, %v3309
        %v3311 = vpop.f32.mrb[0].mxu0
        %v3312 = vadd.f32 0.0, %v3311
        %v3313 = vpop.f32.mrb[0].mxu0
        %v3314 = vadd.f32 0.0, %v3313
        %3315 = vmatprep.mubr.bf16.mxu0 0
        %3316 = vmatmul.mubr.bf16.gmra.mrb[0].mxu0 %v3239
        %v3317 = vpop.f32.mrb[0].mxu0
        %v3318 = vadd.f32 0.0, %v3317
        %v3319 = vpop.f32.mrb[0].mxu0
        %v3320 = vadd.f32 0.0, %v3319
        %v3321 = vpop.f32.mrb[0].mxu0
        %v3322 = vadd.f32 0.0, %v3321
        %v3323 = vpop.f32.mrb[0].mxu0
        %v3324 = vadd.f32 0.0, %v3323
        %3325 = vmatprep.mubr.bf16.mxu0 0
        %3326 = vmatmul.mubr.bf16.gmra.mrb[0].mxu0 %v3242
        %v3327 = vpop.f32.mrb[0].mxu0
        %v3328 = vadd.f32 0.0, %v3327
        %v3329 = vpop.f32.mrb[0].mxu0
        %v3330 = vadd.f32 0.0, %v3329
        %v3331 = vpop.f32.mrb[0].mxu0
        %v3332 = vadd.f32 0.0, %v3331
        %v3333 = vpop.f32.mrb[0].mxu0
        %v3334 = vadd.f32 0.0, %v3333
        %3335 = vmatprep.mubr.bf16.mxu0 0
        %3336 = vmatmul.mubr.bf16.gmra.mrb[0].mxu0 %v3245
        %v3337 = vpop.f32.mrb[0].mxu0
        %v3338 = vadd.f32 0.0, %v3337
        %v3339 = vpop.f32.mrb[0].mxu0
        %v3340 = vadd.f32 0.0, %v3339
        %v3341 = vpop.f32.mrb[0].mxu0
        %v3342 = vadd.f32 0.0, %v3341
        %v3343 = vpop.f32.mrb[0].mxu0
        %v3344 = vadd.f32 0.0, %v3343
        %3345 = vmatprep.mubr.bf16.mxu0 0
        %3346 = vmatmul.mubr.bf16.gmra.mrb[0].mxu0 %v3248
        %v3347 = vpop.f32.mrb[0].mxu0
        %v3348 = vadd.f32 0.0, %v3347
        %v3349 = vpop.f32.mrb[0].mxu0
        %v3350 = vadd.f32 0.0, %v3349
        %v3351 = vpop.f32.mrb[0].mxu0
        %v3352 = vadd.f32 0.0, %v3351
        %v3353 = vpop.f32.mrb[0].mxu0
        %v3354 = vadd.f32 0.0, %v3353
        %3355 = vmatprep.mubr.bf16.mxu0 0
        %3356 = vmatmul.mubr.bf16.gmra.mrb[0].mxu0 %v3251
        %v3357 = vpop.f32.mrb[0].mxu0
        %v3358 = vadd.f32 0.0, %v3357
        %v3359 = vpop.f32.mrb[0].mxu0
        %v3360 = vadd.f32 0.0, %v3359
        %v3361 = vpop.f32.mrb[0].mxu0
        %v3362 = vadd.f32 0.0, %v3361
        %v3363 = vpop.f32.mrb[0].mxu0
        %v3364 = vadd.f32 0.0, %v3363
        %3365 = vmatprep.mubr.bf16.mxu0 0
        %3366 = vmatmul.mubr.bf16.gmra.mrb[0].mxu0 %v3254
        %v3367 = vpop.f32.mrb[0].mxu0
        %v3368 = vadd.f32 0.0, %v3367
        %v3369 = vpop.f32.mrb[0].mxu0
        %v3370 = vadd.f32 0.0, %v3369
        %v3371 = vpop.f32.mrb[0].mxu0
        %v3372 = vadd.f32 0.0, %v3371
        %v3373 = vpop.f32.mrb[0].mxu0
        %v3374 = vadd.f32 0.0, %v3373
        %3375 = vdwg.mxu0
        %v3387 = vunpack.c.l.b16 %v3130
        %v3388 = vunpack.c.h.b16 %v3130
        %v3389 = vunpack.c.l.b16 %v3131
        %v3390 = vunpack.c.h.b16 %v3131
        %v3391 = vunpack.c.l.b16 %v3132
        %v3392 = vunpack.c.h.b16 %v3132
        %v3393 = vunpack.c.l.b16 %v3133
        %v3394 = vunpack.c.h.b16 %v3133
        %v3395 = vunpack.c.l.b16 %v3134
        %v3396 = vunpack.c.h.b16 %v3134
        %v3397 = vunpack.c.l.b16 %v3135
        %v3398 = vunpack.c.h.b16 %v3135
        %v3399 = vunpack.c.l.b16 %v3136
        %v3400 = vunpack.c.h.b16 %v3136
        %v3401 = vunpack.c.l.b16 %v3137
        %v3402 = vunpack.c.h.b16 %v3137
        %v3403 = vunpack.c.l.b16 %v3138
        %v3404 = vunpack.c.h.b16 %v3138
        %v3405 = vunpack.c.l.b16 %v3139
        %v3406 = vunpack.c.h.b16 %v3139
        %v3407 = vunpack.c.l.b16 %v3140
        %v3408 = vunpack.c.h.b16 %v3140
        %v3409 = vpack.c.b16 %v3389, %v3387
        %v3410 = vpack.c.b16 %v3390, %v3388
        %v3411 = vpack.c.b16 %v3393, %v3391
        %v3412 = vpack.c.b16 %v3394, %v3392
        %v3413 = vpack.c.b16 %v3397, %v3395
        %v3414 = vpack.c.b16 %v3398, %v3396
        %v3415 = vpack.c.b16 %v3401, %v3399
        %v3416 = vpack.c.b16 %v3402, %v3400
        %v3417 = vpack.c.b16 %v3405, %v3403
        %v3418 = vpack.c.b16 %v3406, %v3404
        %v3419 = vpack.c.b16 %v3407, %v3407
        %v3420 = vpack.c.b16 %v3408, %v3408
        %v3432 = vsel %vm2976, %v3122, 0
        %v3435 = vsel %vm2976, %v3123, 0
        %v3438 = vsel %vm2976, %v3124, 0
        %v3441 = vsel %vm2976, %v3125, 0
        %v3444 = vsel %vm2976, %v3126, 0
        %v3447 = vsel %vm2976, %v3127, 0
        %v3450 = vsel %vm2976, %v3128, 0
        %v3453 = vsel %vm2976, %v3129, 0
        %v3456 = vsel %vm3256, %v3419, 0
        %v3459 = vsel %vm3256, %v3420, 0
        %3461 = vmatprep.subr.bf16.mxu0 %v3410
        %3462 = vmatpush1.bf16.msra.mxu0 %v3409
        %3463 = vmatprep.subr.bf16.mxu0 %v3412
        %3464 = vmatpush1.bf16.msra.mxu0 %v3411
        %3465 = vmatprep.subr.bf16.mxu0 %v3414
        %3466 = vmatpush1.bf16.msra.mxu0 %v3413
        %3467 = vmatprep.subr.bf16.mxu0 %v3416
        %3468 = vmatpush1.bf16.msra.mxu0 %v3415
        %3469 = vmatprep.subr.bf16.mxu0 %v3418
        %3470 = vmatpush1.bf16.msra.mxu0 %v3417
        %3471 = vmatprep.subr.bf16.mxu0 %v3459
        %3472 = vmatpush1.bf16.msra.mxu0 %v3456
        %3473 = vmatprep.subr.bf16.mxu0 0
        %3474 = vmatpush1.bf16.msra.mxu0 0
        %3475 = vmatprep.subr.bf16.mxu0 0
        %3476 = vmatpush1.bf16.msra.mxu0 0
        %3477 = vmatprep.subr.bf16.mxu0 0
        %3478 = vmatpush1.bf16.msra.mxu0 0
        %3479 = vmatprep.subr.bf16.mxu0 0
        %3480 = vmatpush1.bf16.msra.mxu0 0
        %3481 = vmatprep.subr.bf16.mxu0 0
        %3482 = vmatpush1.bf16.msra.mxu0 0
        %3483 = vmatprep.subr.bf16.mxu0 0
        %3484 = vmatpush1.bf16.msra.mxu0 0
        %3485 = vmatprep.subr.bf16.mxu0 0
        %3486 = vmatpush1.bf16.msra.mxu0 0
        %3487 = vmatprep.subr.bf16.mxu0 0
        %3488 = vmatpush1.bf16.msra.mxu0 0
        %3489 = vmatprep.subr.bf16.mxu0 0
        %3490 = vmatpush1.bf16.msra.mxu0 0
        %3491 = vmatprep.subr.bf16.mxu0 0
        %3492 = vmatpush1.bf16.msra.mxu0 0
        %3493 = vmatprep.mubr.bf16.mxu0 0
        %3494 = vmatmul.mubr.bf16.gmra.mrb[0].mxu0 %v3432
        %v3495 = vpop.f32.mrb[0].mxu0
        %v3496 = vadd.f32 %v3298, %v3495
        %v3497 = vpop.f32.mrb[0].mxu0
        %v3498 = vadd.f32 %v3300, %v3497
        %v3499 = vpop.f32.mrb[0].mxu0
        %v3500 = vadd.f32 %v3302, %v3499
        %v3501 = vpop.f32.mrb[0].mxu0
        %v3502 = vadd.f32 %v3304, %v3501
        %3503 = vmatprep.mubr.bf16.mxu0 0
        %3504 = vmatmul.mubr.bf16.gmra.mrb[0].mxu0 %v3435
        %v3505 = vpop.f32.mrb[0].mxu0
        %v3506 = vadd.f32 %v3308, %v3505
        %v3507 = vpop.f32.mrb[0].mxu0
        %v3508 = vadd.f32 %v3310, %v3507
        %v3509 = vpop.f32.mrb[0].mxu0
        %v3510 = vadd.f32 %v3312, %v3509
        %v3511 = vpop.f32.mrb[0].mxu0
        %v3512 = vadd.f32 %v3314, %v3511
        %3513 = vmatprep.mubr.bf16.mxu0 0
        %3514 = vmatmul.mubr.bf16.gmra.mrb[0].mxu0 %v3438
        %v3515 = vpop.f32.mrb[0].mxu0
        %v3516 = vadd.f32 %v3318, %v3515
        %v3517 = vpop.f32.mrb[0].mxu0
        %v3518 = vadd.f32 %v3320, %v3517
        %v3519 = vpop.f32.mrb[0].mxu0
        %v3520 = vadd.f32 %v3322, %v3519
        %v3521 = vpop.f32.mrb[0].mxu0
        %v3522 = vadd.f32 %v3324, %v3521
        %3523 = vmatprep.mubr.bf16.mxu0 0
        %3524 = vmatmul.mubr.bf16.gmra.mrb[0].mxu0 %v3441
        %v3525 = vpop.f32.mrb[0].mxu0
        %v3526 = vadd.f32 %v3328, %v3525
        %v3527 = vpop.f32.mrb[0].mxu0
        %v3528 = vadd.f32 %v3330, %v3527
        %v3529 = vpop.f32.mrb[0].mxu0
        %v3530 = vadd.f32 %v3332, %v3529
        %v3531 = vpop.f32.mrb[0].mxu0
        %v3532 = vadd.f32 %v3334, %v3531
        %3533 = vmatprep.mubr.bf16.mxu0 0
        %3534 = vmatmul.mubr.bf16.gmra.mrb[0].mxu0 %v3444
        %v3535 = vpop.f32.mrb[0].mxu0
        %v3536 = vadd.f32 %v3338, %v3535
        %v3537 = vpop.f32.mrb[0].mxu0
        %v3538 = vadd.f32 %v3340, %v3537
        %v3539 = vpop.f32.mrb[0].mxu0
        %v3540 = vadd.f32 %v3342, %v3539
        %v3541 = vpop.f32.mrb[0].mxu0
        %v3542 = vadd.f32 %v3344, %v3541
        %3543 = vmatprep.mubr.bf16.mxu0 0
        %3544 = vmatmul.mubr.bf16.gmra.mrb[0].mxu0 %v3447
        %v3545 = vpop.f32.mrb[0].mxu0
        %v3546 = vadd.f32 %v3348, %v3545
        %v3547 = vpop.f32.mrb[0].mxu0
        %v3548 = vadd.f32 %v3350, %v3547
        %v3549 = vpop.f32.mrb[0].mxu0
        %v3550 = vadd.f32 %v3352, %v3549
        %v3551 = vpop.f32.mrb[0].mxu0
        %v3552 = vadd.f32 %v3354, %v3551
        %3553 = vmatprep.mubr.bf16.mxu0 0
        %3554 = vmatmul.mubr.bf16.gmra.mrb[0].mxu0 %v3450
        %v3555 = vpop.f32.mrb[0].mxu0
        %v3556 = vadd.f32 %v3358, %v3555
        %v3557 = vpop.f32.mrb[0].mxu0
        %v3558 = vadd.f32 %v3360, %v3557
        %v3559 = vpop.f32.mrb[0].mxu0
        %v3560 = vadd.f32 %v3362, %v3559
        %v3561 = vpop.f32.mrb[0].mxu0
        %v3562 = vadd.f32 %v3364, %v3561
        %3563 = vmatprep.mubr.bf16.mxu0 0
        %3564 = vmatmul.mubr.bf16.gmra.mrb[0].mxu0 %v3453
        %v3565 = vpop.f32.mrb[0].mxu0
        %v3566 = vadd.f32 %v3368, %v3565
        %v3567 = vpop.f32.mrb[0].mxu0
        %v3568 = vadd.f32 %v3370, %v3567
        %v3569 = vpop.f32.mrb[0].mxu0
        %v3570 = vadd.f32 %v3372, %v3569
        %v3571 = vpop.f32.mrb[0].mxu0
        %v3572 = vadd.f32 %v3374, %v3571
        %3573 = vdwg.mxu0
        %v3574 = vld [vmem:[#allocation3 + $0x2] sm:$0xff]
        %v3575 = vld [vmem:[#allocation3 + $0xa] sm:$0xff]
        %v3576 = vld [vmem:[#allocation3 + $0x12] sm:$0xff]
        %v3577 = vld [vmem:[#allocation3 + $0x1a] sm:$0xff]
        %v3578 = vld [vmem:[#allocation3 + $0x22] sm:$0xff]
        %v3579 = vld [vmem:[#allocation3 + $0x2a] sm:$0xff]
        %v3580 = vld [vmem:[#allocation3 + $0x32] sm:$0xff]
        %v3581 = vld [vmem:[#allocation3 + $0x3a] sm:$0xff]
        %v3582 = vld [vmem:[#allocation3 + $0x42] sm:$0xff]
        %v3583 = vld [vmem:[#allocation3 + $0x4a] sm:$0xff]
        %v3584 = vld [vmem:[#allocation3 + $0x52] sm:$0xff]
        %v3585 = vld [vmem:[#allocation3 + $0x5a] sm:$0xff]
        %v3586 = vld [vmem:[#allocation3 + $0x62] sm:$0xff]
        %v3587 = vld [vmem:[#allocation3 + $0x6a] sm:$0xff]
        %v3588 = vld [vmem:[#allocation3 + $0x72] sm:$0xff]
        %v3589 = vld [vmem:[#allocation3 + $0x7a] sm:$0xf]
        %v3590 = vpack.c.bf16 %v3575, %v3574
        %v3591 = vpack.c.bf16 %v3577, %v3576
        %v3592 = vpack.c.bf16 %v3579, %v3578
        %v3593 = vpack.c.bf16 %v3581, %v3580
        %v3594 = vpack.c.bf16 %v3583, %v3582
        %v3595 = vpack.c.bf16 %v3585, %v3584
        %v3596 = vpack.c.bf16 %v3587, %v3586
        %v3597 = vpack.c.bf16 %v3589, %v3588
        %s3598 = scalar_lea.vmem %s4, 176
        %v3599 = vld [vmem:[%s3598] sm:$0xff]
        %v3600 = vld [vmem:[%s3598 + $0x8] sm:$0xff]
        %v3601 = vld [vmem:[%s3598 + $0x10] sm:$0xff]
        %v3602 = vld [vmem:[%s3598 + $0x18] sm:$0xff]
        %v3603 = vld [vmem:[%s3598 + $0x20] sm:$0xff]
        %v3604 = vld [vmem:[%s3598 + $0x28] sm:$0xff]
        %v3605 = vld [vmem:[%s3598 + $0x30] sm:$0xff]
        %v3606 = vld [vmem:[%s3598 + $0x38] sm:$0xff]
        %v3607 = vld [vmem:[%s3598 + $0x40] sm:$0xff]
        %v3608 = vld [vmem:[%s3598 + $0x48] sm:$0xff]
        %v3609 = vld [vmem:[%s3598 + $0x50] sm:$0x33]
        %v3621 = vunpack.c.l.b16 %v3599
        %v3622 = vunpack.c.h.b16 %v3599
        %v3623 = vunpack.c.l.b16 %v3600
        %v3624 = vunpack.c.h.b16 %v3600
        %v3625 = vunpack.c.l.b16 %v3601
        %v3626 = vunpack.c.h.b16 %v3601
        %v3627 = vunpack.c.l.b16 %v3602
        %v3628 = vunpack.c.h.b16 %v3602
        %v3629 = vunpack.c.l.b16 %v3603
        %v3630 = vunpack.c.h.b16 %v3603
        %v3631 = vunpack.c.l.b16 %v3604
        %v3632 = vunpack.c.h.b16 %v3604
        %v3633 = vunpack.c.l.b16 %v3605
        %v3634 = vunpack.c.h.b16 %v3605
        %v3635 = vunpack.c.l.b16 %v3606
        %v3636 = vunpack.c.h.b16 %v3606
        %v3637 = vunpack.c.l.b16 %v3607
        %v3638 = vunpack.c.h.b16 %v3607
        %v3639 = vunpack.c.l.b16 %v3608
        %v3640 = vunpack.c.h.b16 %v3608
        %v3641 = vunpack.c.l.b16 %v3609
        %v3642 = vunpack.c.h.b16 %v3609
        %v3643 = vpack.c.b16 %v3623, %v3621
        %v3644 = vpack.c.b16 %v3624, %v3622
        %v3645 = vpack.c.b16 %v3627, %v3625
        %v3646 = vpack.c.b16 %v3628, %v3626
        %v3647 = vpack.c.b16 %v3631, %v3629
        %v3648 = vpack.c.b16 %v3632, %v3630
        %v3649 = vpack.c.b16 %v3635, %v3633
        %v3650 = vpack.c.b16 %v3636, %v3634
        %v3651 = vpack.c.b16 %v3639, %v3637
        %v3652 = vpack.c.b16 %v3640, %v3638
        %v3653 = vpack.c.b16 %v3641, %v3641
        %v3654 = vpack.c.b16 %v3642, %v3642
        %v3666 = vsel %vm2976, %v3590, 0
        %v3669 = vsel %vm2976, %v3591, 0
        %v3672 = vsel %vm2976, %v3592, 0
        %v3675 = vsel %vm2976, %v3593, 0
        %v3678 = vsel %vm2976, %v3594, 0
        %v3681 = vsel %vm2976, %v3595, 0
        %v3684 = vsel %vm2976, %v3596, 0
        %v3687 = vsel %vm2976, %v3597, 0
        %v3690 = vsel %vm3256, %v3653, 0
        %v3693 = vsel %vm3256, %v3654, 0
        %3695 = vmatprep.subr.bf16.mxu0 %v3644
        %3696 = vmatpush1.bf16.msra.mxu0 %v3643
        %3697 = vmatprep.subr.bf16.mxu0 %v3646
        %3698 = vmatpush1.bf16.msra.mxu0 %v3645
        %3699 = vmatprep.subr.bf16.mxu0 %v3648
        %3700 = vmatpush1.bf16.msra.mxu0 %v3647
        %3701 = vmatprep.subr.bf16.mxu0 %v3650
        %3702 = vmatpush1.bf16.msra.mxu0 %v3649
        %3703 = vmatprep.subr.bf16.mxu0 %v3652
        %3704 = vmatpush1.bf16.msra.mxu0 %v3651
        %3705 = vmatprep.subr.bf16.mxu0 %v3693
        %3706 = vmatpush1.bf16.msra.mxu0 %v3690
        %3707 = vmatprep.subr.bf16.mxu0 0
        %3708 = vmatpush1.bf16.msra.mxu0 0
        %3709 = vmatprep.subr.bf16.mxu0 0
        %3710 = vmatpush1.bf16.msra.mxu0 0
        %3711 = vmatprep.subr.bf16.mxu0 0
        %3712 = vmatpush1.bf16.msra.mxu0 0
        %3713 = vmatprep.subr.bf16.mxu0 0
        %3714 = vmatpush1.bf16.msra.mxu0 0
        %3715 = vmatprep.subr.bf16.mxu0 0
        %3716 = vmatpush1.bf16.msra.mxu0 0
        %3717 = vmatprep.subr.bf16.mxu0 0
        %3718 = vmatpush1.bf16.msra.mxu0 0
        %3719 = vmatprep.subr.bf16.mxu0 0
        %3720 = vmatpush1.bf16.msra.mxu0 0
        %3721 = vmatprep.subr.bf16.mxu0 0
        %3722 = vmatpush1.bf16.msra.mxu0 0
        %3723 = vmatprep.subr.bf16.mxu0 0
        %3724 = vmatpush1.bf16.msra.mxu0 0
        %3725 = vmatprep.subr.bf16.mxu0 0
        %3726 = vmatpush1.bf16.msra.mxu0 0
        %3727 = vmatprep.mubr.bf16.mxu0 0
        %3728 = vmatmul.mubr.bf16.gmra.mrb[0].mxu0 %v3666
        %v3729 = vpop.f32.mrb[0].mxu0
        %v3730 = vadd.f32 0.0, %v3729
        %v3731 = vpop.f32.mrb[0].mxu0
        %v3732 = vadd.f32 0.0, %v3731
        %v3733 = vpop.f32.mrb[0].mxu0
        %v3734 = vadd.f32 0.0, %v3733
        %v3735 = vpop.f32.mrb[0].mxu0
        %v3736 = vadd.f32 0.0, %v3735
        %3737 = vmatprep.mubr.bf16.mxu0 0
        %3738 = vmatmul.mubr.bf16.gmra.mrb[0].mxu0 %v3669
        %v3739 = vpop.f32.mrb[0].mxu0
        %v3740 = vadd.f32 0.0, %v3739
        %v3741 = vpop.f32.mrb[0].mxu0
        %v3742 = vadd.f32 0.0, %v3741
        %v3743 = vpop.f32.mrb[0].mxu0
        %v3744 = vadd.f32 0.0, %v3743
        %v3745 = vpop.f32.mrb[0].mxu0
        %v3746 = vadd.f32 0.0, %v3745
        %3747 = vmatprep.mubr.bf16.mxu0 0
        %3748 = vmatmul.mubr.bf16.gmra.mrb[0].mxu0 %v3672
        %v3749 = vpop.f32.mrb[0].mxu0
        %v3750 = vadd.f32 0.0, %v3749
        %v3751 = vpop.f32.mrb[0].mxu0
        %v3752 = vadd.f32 0.0, %v3751
        %v3753 = vpop.f32.mrb[0].mxu0
        %v3754 = vadd.f32 0.0, %v3753
        %v3755 = vpop.f32.mrb[0].mxu0
        %v3756 = vadd.f32 0.0, %v3755
        %3757 = vmatprep.mubr.bf16.mxu0 0
        %3758 = vmatmul.mubr.bf16.gmra.mrb[0].mxu0 %v3675
        %v3759 = vpop.f32.mrb[0].mxu0
        %v3760 = vadd.f32 0.0, %v3759
        %v3761 = vpop.f32.mrb[0].mxu0
        %v3762 = vadd.f32 0.0, %v3761
        %v3763 = vpop.f32.mrb[0].mxu0
        %v3764 = vadd.f32 0.0, %v3763
        %v3765 = vpop.f32.mrb[0].mxu0
        %v3766 = vadd.f32 0.0, %v3765
        %3767 = vmatprep.mubr.bf16.mxu0 0
        %3768 = vmatmul.mubr.bf16.gmra.mrb[0].mxu0 %v3678
        %v3769 = vpop.f32.mrb[0].mxu0
        %v3770 = vadd.f32 0.0, %v3769
        %v3771 = vpop.f32.mrb[0].mxu0
        %v3772 = vadd.f32 0.0, %v3771
        %v3773 = vpop.f32.mrb[0].mxu0
        %v3774 = vadd.f32 0.0, %v3773
        %v3775 = vpop.f32.mrb[0].mxu0
        %v3776 = vadd.f32 0.0, %v3775
        %3777 = vmatprep.mubr.bf16.mxu0 0
        %3778 = vmatmul.mubr.bf16.gmra.mrb[0].mxu0 %v3681
        %v3779 = vpop.f32.mrb[0].mxu0
        %v3780 = vadd.f32 0.0, %v3779
        %v3781 = vpop.f32.mrb[0].mxu0
        %v3782 = vadd.f32 0.0, %v3781
        %v3783 = vpop.f32.mrb[0].mxu0
        %v3784 = vadd.f32 0.0, %v3783
        %v3785 = vpop.f32.mrb[0].mxu0
        %v3786 = vadd.f32 0.0, %v3785
        %3787 = vmatprep.mubr.bf16.mxu0 0
        %3788 = vmatmul.mubr.bf16.gmra.mrb[0].mxu0 %v3684
        %v3789 = vpop.f32.mrb[0].mxu0
        %v3790 = vadd.f32 0.0, %v3789
        %v3791 = vpop.f32.mrb[0].mxu0
        %v3792 = vadd.f32 0.0, %v3791
        %v3793 = vpop.f32.mrb[0].mxu0
        %v3794 = vadd.f32 0.0, %v3793
        %v3795 = vpop.f32.mrb[0].mxu0
        %v3796 = vadd.f32 0.0, %v3795
        %3797 = vmatprep.mubr.bf16.mxu0 0
        %3798 = vmatmul.mubr.bf16.gmra.mrb[0].mxu0 %v3687
        %v3799 = vpop.f32.mrb[0].mxu0
        %v3800 = vadd.f32 0.0, %v3799
        %v3801 = vpop.f32.mrb[0].mxu0
        %v3802 = vadd.f32 0.0, %v3801
        %v3803 = vpop.f32.mrb[0].mxu0
        %v3804 = vadd.f32 0.0, %v3803
        %v3805 = vpop.f32.mrb[0].mxu0
        %v3806 = vadd.f32 0.0, %v3805
        %3807 = vdwg.mxu0
        %v3808 = vadd.f32 %v3496, %v3730
        %v3809 = vadd.f32 %v3498, %v3732
        %v3810 = vadd.f32 %v3500, %v3734
        %v3811 = vadd.f32 %v3502, %v3736
        %v3812 = vadd.f32 %v3506, %v3740
        %v3813 = vadd.f32 %v3508, %v3742
        %v3814 = vadd.f32 %v3510, %v3744
        %v3815 = vadd.f32 %v3512, %v3746
        %v3816 = vadd.f32 %v3516, %v3750
        %v3817 = vadd.f32 %v3518, %v3752
        %v3818 = vadd.f32 %v3520, %v3754
        %v3819 = vadd.f32 %v3522, %v3756
        %v3820 = vadd.f32 %v3526, %v3760
        %v3821 = vadd.f32 %v3528, %v3762
        %v3822 = vadd.f32 %v3530, %v3764
        %v3823 = vadd.f32 %v3532, %v3766
        %v3824 = vadd.f32 %v3536, %v3770
        %v3825 = vadd.f32 %v3538, %v3772
        %v3826 = vadd.f32 %v3540, %v3774
        %v3827 = vadd.f32 %v3542, %v3776
        %v3828 = vadd.f32 %v3546, %v3780
        %v3829 = vadd.f32 %v3548, %v3782
        %v3830 = vadd.f32 %v3550, %v3784
        %v3831 = vadd.f32 %v3552, %v3786
        %v3832 = vadd.f32 %v3556, %v3790
        %v3833 = vadd.f32 %v3558, %v3792
        %v3834 = vadd.f32 %v3560, %v3794
        %v3835 = vadd.f32 %v3562, %v3796
        %v3836 = vadd.f32 %v3566, %v3800
        %v3837 = vadd.f32 %v3568, %v3802
        %v3838 = vadd.f32 %v3570, %v3804
        %v3839 = vadd.f32 %v3572, %v3806
        %v3840 = vld [vmem:[#allocation3 + $0x3] sm:$0xff]
        %v3841 = vld [vmem:[#allocation3 + $0xb] sm:$0xff]
        %v3842 = vld [vmem:[#allocation3 + $0x13] sm:$0xff]
        %v3843 = vld [vmem:[#allocation3 + $0x1b] sm:$0xff]
        %v3844 = vld [vmem:[#allocation3 + $0x23] sm:$0xff]
        %v3845 = vld [vmem:[#allocation3 + $0x2b] sm:$0xff]
        %v3846 = vld [vmem:[#allocation3 + $0x33] sm:$0xff]
        %v3847 = vld [vmem:[#allocation3 + $0x3b] sm:$0xff]
        %v3848 = vld [vmem:[#allocation3 + $0x43] sm:$0xff]
        %v3849 = vld [vmem:[#allocation3 + $0x4b] sm:$0xff]
        %v3850 = vld [vmem:[#allocation3 + $0x53] sm:$0xff]
        %v3851 = vld [vmem:[#allocation3 + $0x5b] sm:$0xff]
        %v3852 = vld [vmem:[#allocation3 + $0x63] sm:$0xff]
        %v3853 = vld [vmem:[#allocation3 + $0x6b] sm:$0xff]
        %v3854 = vld [vmem:[#allocation3 + $0x73] sm:$0xff]
        %v3855 = vld [vmem:[#allocation3 + $0x7b] sm:$0xf]
        %v3856 = vpack.c.bf16 %v3841, %v3840
        %v3857 = vpack.c.bf16 %v3843, %v3842
        %v3858 = vpack.c.bf16 %v3845, %v3844
        %v3859 = vpack.c.bf16 %v3847, %v3846
        %v3860 = vpack.c.bf16 %v3849, %v3848
        %v3861 = vpack.c.bf16 %v3851, %v3850
        %v3862 = vpack.c.bf16 %v3853, %v3852
        %v3863 = vpack.c.bf16 %v3855, %v3854
        %s3864 = scalar_lea.vmem %s4, 264
        %v3865 = vld [vmem:[%s3864] sm:$0xff]
        %v3866 = vld [vmem:[%s3864 + $0x8] sm:$0xff]
        %v3867 = vld [vmem:[%s3864 + $0x10] sm:$0xff]
        %v3868 = vld [vmem:[%s3864 + $0x18] sm:$0xff]
        %v3869 = vld [vmem:[%s3864 + $0x20] sm:$0xff]
        %v3870 = vld [vmem:[%s3864 + $0x28] sm:$0xff]
        %v3871 = vld [vmem:[%s3864 + $0x30] sm:$0xff]
        %v3872 = vld [vmem:[%s3864 + $0x38] sm:$0xff]
        %v3873 = vld [vmem:[%s3864 + $0x40] sm:$0xff]
        %v3874 = vld [vmem:[%s3864 + $0x48] sm:$0xff]
        %v3875 = vld [vmem:[%s3864 + $0x50] sm:$0x33]
        %v3887 = vunpack.c.l.b16 %v3865
        %v3888 = vunpack.c.h.b16 %v3865
        %v3889 = vunpack.c.l.b16 %v3866
        %v3890 = vunpack.c.h.b16 %v3866
        %v3891 = vunpack.c.l.b16 %v3867
        %v3892 = vunpack.c.h.b16 %v3867
        %v3893 = vunpack.c.l.b16 %v3868
        %v3894 = vunpack.c.h.b16 %v3868
        %v3895 = vunpack.c.l.b16 %v3869
        %v3896 = vunpack.c.h.b16 %v3869
        %v3897 = vunpack.c.l.b16 %v3870
        %v3898 = vunpack.c.h.b16 %v3870
        %v3899 = vunpack.c.l.b16 %v3871
        %v3900 = vunpack.c.h.b16 %v3871
        %v3901 = vunpack.c.l.b16 %v3872
        %v3902 = vunpack.c.h.b16 %v3872
        %v3903 = vunpack.c.l.b16 %v3873
        %v3904 = vunpack.c.h.b16 %v3873
        %v3905 = vunpack.c.l.b16 %v3874
        %v3906 = vunpack.c.h.b16 %v3874
        %v3907 = vunpack.c.l.b16 %v3875
        %v3908 = vunpack.c.h.b16 %v3875
        %v3909 = vpack.c.b16 %v3889, %v3887
        %v3910 = vpack.c.b16 %v3890, %v3888
        %v3911 = vpack.c.b16 %v3893, %v3891
        %v3912 = vpack.c.b16 %v3894, %v3892
        %v3913 = vpack.c.b16 %v3897, %v3895
        %v3914 = vpack.c.b16 %v3898, %v3896
        %v3915 = vpack.c.b16 %v3901, %v3899
        %v3916 = vpack.c.b16 %v3902, %v3900
        %v3917 = vpack.c.b16 %v3905, %v3903
        %v3918 = vpack.c.b16 %v3906, %v3904
        %v3919 = vpack.c.b16 %v3907, %v3907
        %v3920 = vpack.c.b16 %v3908, %v3908
        %v3932 = vsel %vm2976, %v3856, 0
        %v3935 = vsel %vm2976, %v3857, 0
        %v3938 = vsel %vm2976, %v3858, 0
        %v3941 = vsel %vm2976, %v3859, 0
        %v3944 = vsel %vm2976, %v3860, 0
        %v3947 = vsel %vm2976, %v3861, 0
        %v3950 = vsel %vm2976, %v3862, 0
        %v3953 = vsel %vm2976, %v3863, 0
        %v3956 = vsel %vm3256, %v3919, 0
        %v3959 = vsel %vm3256, %v3920, 0
        %3961 = vmatprep.subr.bf16.mxu0 %v3910
        %3962 = vmatpush1.bf16.msra.mxu0 %v3909
        %3963 = vmatprep.subr.bf16.mxu0 %v3912
        %3964 = vmatpush1.bf16.msra.mxu0 %v3911
        %3965 = vmatprep.subr.bf16.mxu0 %v3914
        %3966 = vmatpush1.bf16.msra.mxu0 %v3913
        %3967 = vmatprep.subr.bf16.mxu0 %v3916
        %3968 = vmatpush1.bf16.msra.mxu0 %v3915
        %3969 = vmatprep.subr.bf16.mxu0 %v3918
        %3970 = vmatpush1.bf16.msra.mxu0 %v3917
        %3971 = vmatprep.subr.bf16.mxu0 %v3959
        %3972 = vmatpush1.bf16.msra.mxu0 %v3956
        %3973 = vmatprep.subr.bf16.mxu0 0
        %3974 = vmatpush1.bf16.msra.mxu0 0
        %3975 = vmatprep.subr.bf16.mxu0 0
        %3976 = vmatpush1.bf16.msra.mxu0 0
        %3977 = vmatprep.subr.bf16.mxu0 0
        %3978 = vmatpush1.bf16.msra.mxu0 0
        %3979 = vmatprep.subr.bf16.mxu0 0
        %3980 = vmatpush1.bf16.msra.mxu0 0
        %3981 = vmatprep.subr.bf16.mxu0 0
        %3982 = vmatpush1.bf16.msra.mxu0 0
        %3983 = vmatprep.subr.bf16.mxu0 0
        %3984 = vmatpush1.bf16.msra.mxu0 0
        %3985 = vmatprep.subr.bf16.mxu0 0
        %3986 = vmatpush1.bf16.msra.mxu0 0
        %3987 = vmatprep.subr.bf16.mxu0 0
        %3988 = vmatpush1.bf16.msra.mxu0 0
        %3989 = vmatprep.subr.bf16.mxu0 0
        %3990 = vmatpush1.bf16.msra.mxu0 0
        %3991 = vmatprep.subr.bf16.mxu0 0
        %3992 = vmatpush1.bf16.msra.mxu0 0
        %3993 = vmatprep.mubr.bf16.mxu0 0
        %3994 = vmatmul.mubr.bf16.gmra.mrb[0].mxu0 %v3932
        %v3995 = vpop.f32.mrb[0].mxu0
        %v3996 = vadd.f32 0.0, %v3995
        %v3997 = vpop.f32.mrb[0].mxu0
        %v3998 = vadd.f32 0.0, %v3997
        %v3999 = vpop.f32.mrb[0].mxu0
        %v4000 = vadd.f32 0.0, %v3999
        %v4001 = vpop.f32.mrb[0].mxu0
        %v4002 = vadd.f32 0.0, %v4001
        %4003 = vmatprep.mubr.bf16.mxu0 0
        %4004 = vmatmul.mubr.bf16.gmra.mrb[0].mxu0 %v3935
        %v4005 = vpop.f32.mrb[0].mxu0
        %v4006 = vadd.f32 0.0, %v4005
        %v4007 = vpop.f32.mrb[0].mxu0
        %v4008 = vadd.f32 0.0, %v4007
        %v4009 = vpop.f32.mrb[0].mxu0
        %v4010 = vadd.f32 0.0, %v4009
        %v4011 = vpop.f32.mrb[0].mxu0
        %v4012 = vadd.f32 0.0, %v4011
        %4013 = vmatprep.mubr.bf16.mxu0 0
        %4014 = vmatmul.mubr.bf16.gmra.mrb[0].mxu0 %v3938
        %v4015 = vpop.f32.mrb[0].mxu0
        %v4016 = vadd.f32 0.0, %v4015
        %v4017 = vpop.f32.mrb[0].mxu0
        %v4018 = vadd.f32 0.0, %v4017
        %v4019 = vpop.f32.mrb[0].mxu0
        %v4020 = vadd.f32 0.0, %v4019
        %v4021 = vpop.f32.mrb[0].mxu0
        %v4022 = vadd.f32 0.0, %v4021
        %4023 = vmatprep.mubr.bf16.mxu0 0
        %4024 = vmatmul.mubr.bf16.gmra.mrb[0].mxu0 %v3941
        %v4025 = vpop.f32.mrb[0].mxu0
        %v4026 = vadd.f32 0.0, %v4025
        %v4027 = vpop.f32.mrb[0].mxu0
        %v4028 = vadd.f32 0.0, %v4027
        %v4029 = vpop.f32.mrb[0].mxu0
        %v4030 = vadd.f32 0.0, %v4029
        %v4031 = vpop.f32.mrb[0].mxu0
        %v4032 = vadd.f32 0.0, %v4031
        %4033 = vmatprep.mubr.bf16.mxu0 0
        %4034 = vmatmul.mubr.bf16.gmra.mrb[0].mxu0 %v3944
        %v4035 = vpop.f32.mrb[0].mxu0
        %v4036 = vadd.f32 0.0, %v4035
        %v4037 = vpop.f32.mrb[0].mxu0
        %v4038 = vadd.f32 0.0, %v4037
        %v4039 = vpop.f32.mrb[0].mxu0
        %v4040 = vadd.f32 0.0, %v4039
        %v4041 = vpop.f32.mrb[0].mxu0
        %v4042 = vadd.f32 0.0, %v4041
        %4043 = vmatprep.mubr.bf16.mxu0 0
        %4044 = vmatmul.mubr.bf16.gmra.mrb[0].mxu0 %v3947
        %v4045 = vpop.f32.mrb[0].mxu0
        %v4046 = vadd.f32 0.0, %v4045
        %v4047 = vpop.f32.mrb[0].mxu0
        %v4048 = vadd.f32 0.0, %v4047
        %v4049 = vpop.f32.mrb[0].mxu0
        %v4050 = vadd.f32 0.0, %v4049
        %v4051 = vpop.f32.mrb[0].mxu0
        %v4052 = vadd.f32 0.0, %v4051
        %4053 = vmatprep.mubr.bf16.mxu0 0
        %4054 = vmatmul.mubr.bf16.gmra.mrb[0].mxu0 %v3950
        %v4055 = vpop.f32.mrb[0].mxu0
        %v4056 = vadd.f32 0.0, %v4055
        %v4057 = vpop.f32.mrb[0].mxu0
        %v4058 = vadd.f32 0.0, %v4057
        %v4059 = vpop.f32.mrb[0].mxu0
        %v4060 = vadd.f32 0.0, %v4059
        %v4061 = vpop.f32.mrb[0].mxu0
        %v4062 = vadd.f32 0.0, %v4061
        %4063 = vmatprep.mubr.bf16.mxu0 0
        %4064 = vmatmul.mubr.bf16.gmra.mrb[0].mxu0 %v3953
        %v4065 = vpop.f32.mrb[0].mxu0
        %v4066 = vadd.f32 0.0, %v4065
        %v4067 = vpop.f32.mrb[0].mxu0
        %v4068 = vadd.f32 0.0, %v4067
        %v4069 = vpop.f32.mrb[0].mxu0
        %v4070 = vadd.f32 0.0, %v4069
        %v4071 = vpop.f32.mrb[0].mxu0
        %v4072 = vadd.f32 0.0, %v4071
        %4073 = vdwg.mxu0
        %v4074 = vadd.f32 %v3808, %v3996
        %v4075 = vadd.f32 %v3809, %v3998
        %v4076 = vadd.f32 %v3810, %v4000
        %v4077 = vadd.f32 %v3811, %v4002
        %v4078 = vadd.f32 %v3812, %v4006
        %v4079 = vadd.f32 %v3813, %v4008
        %v4080 = vadd.f32 %v3814, %v4010
        %v4081 = vadd.f32 %v3815, %v4012
        %v4082 = vadd.f32 %v3816, %v4016
        %v4083 = vadd.f32 %v3817, %v4018
        %v4084 = vadd.f32 %v3818, %v4020
        %v4085 = vadd.f32 %v3819, %v4022
        %v4086 = vadd.f32 %v3820, %v4026
        %v4087 = vadd.f32 %v3821, %v4028
        %v4088 = vadd.f32 %v3822, %v4030
        %v4089 = vadd.f32 %v3823, %v4032
        %v4090 = vadd.f32 %v3824, %v4036
        %v4091 = vadd.f32 %v3825, %v4038
        %v4092 = vadd.f32 %v3826, %v4040
        %v4093 = vadd.f32 %v3827, %v4042
        %v4094 = vadd.f32 %v3828, %v4046
        %v4095 = vadd.f32 %v3829, %v4048
        %v4096 = vadd.f32 %v3830, %v4050
        %v4097 = vadd.f32 %v3831, %v4052
        %v4098 = vadd.f32 %v3832, %v4056
        %v4099 = vadd.f32 %v3833, %v4058
        %v4100 = vadd.f32 %v3834, %v4060
        %v4101 = vadd.f32 %v3835, %v4062
        %v4102 = vadd.f32 %v3836, %v4066
        %v4103 = vadd.f32 %v3837, %v4068
        %v4104 = vadd.f32 %v3838, %v4070
        %v4105 = vadd.f32 %v3839, %v4072
        %v4106 = vld [vmem:[#allocation3 + $0x4] sm:$0xff]
        %v4107 = vld [vmem:[#allocation3 + $0xc] sm:$0xff]
        %v4108 = vld [vmem:[#allocation3 + $0x14] sm:$0xff]
        %v4109 = vld [vmem:[#allocation3 + $0x1c] sm:$0xff]
        %v4110 = vld [vmem:[#allocation3 + $0x24] sm:$0xff]
        %v4111 = vld [vmem:[#allocation3 + $0x2c] sm:$0xff]
        %v4112 = vld [vmem:[#allocation3 + $0x34] sm:$0xff]
        %v4113 = vld [vmem:[#allocation3 + $0x3c] sm:$0xff]
        %v4114 = vld [vmem:[#allocation3 + $0x44] sm:$0xff]
        %v4115 = vld [vmem:[#allocation3 + $0x4c] sm:$0xff]
        %v4116 = vld [vmem:[#allocation3 + $0x54] sm:$0xff]
        %v4117 = vld [vmem:[#allocation3 + $0x5c] sm:$0xff]
        %v4118 = vld [vmem:[#allocation3 + $0x64] sm:$0xff]
        %v4119 = vld [vmem:[#allocation3 + $0x6c] sm:$0xff]
        %v4120 = vld [vmem:[#allocation3 + $0x74] sm:$0xff]
        %v4121 = vld [vmem:[#allocation3 + $0x7c] sm:$0xf]
        %v4122 = vpack.c.bf16 %v4107, %v4106
        %v4123 = vpack.c.bf16 %v4109, %v4108
        %v4124 = vpack.c.bf16 %v4111, %v4110
        %v4125 = vpack.c.bf16 %v4113, %v4112
        %v4126 = vpack.c.bf16 %v4115, %v4114
        %v4127 = vpack.c.bf16 %v4117, %v4116
        %v4128 = vpack.c.bf16 %v4119, %v4118
        %v4129 = vpack.c.bf16 %v4121, %v4120
        %s4130 = scalar_lea.vmem %s4, 352
        %v4131 = vld [vmem:[%s4130] sm:$0xff]
        %v4132 = vld [vmem:[%s4130 + $0x8] sm:$0xff]
        %v4133 = vld [vmem:[%s4130 + $0x10] sm:$0xff]
        %v4134 = vld [vmem:[%s4130 + $0x18] sm:$0xff]
        %v4135 = vld [vmem:[%s4130 + $0x20] sm:$0xff]
        %v4136 = vld [vmem:[%s4130 + $0x28] sm:$0xff]
        %v4137 = vld [vmem:[%s4130 + $0x30] sm:$0xff]
        %v4138 = vld [vmem:[%s4130 + $0x38] sm:$0xff]
        %v4139 = vld [vmem:[%s4130 + $0x40] sm:$0xff]
        %v4140 = vld [vmem:[%s4130 + $0x48] sm:$0xff]
        %v4141 = vld [vmem:[%s4130 + $0x50] sm:$0x33]
        %v4153 = vunpack.c.l.b16 %v4131
        %v4154 = vunpack.c.h.b16 %v4131
        %v4155 = vunpack.c.l.b16 %v4132
        %v4156 = vunpack.c.h.b16 %v4132
        %v4157 = vunpack.c.l.b16 %v4133
        %v4158 = vunpack.c.h.b16 %v4133
        %v4159 = vunpack.c.l.b16 %v4134
        %v4160 = vunpack.c.h.b16 %v4134
        %v4161 = vunpack.c.l.b16 %v4135
        %v4162 = vunpack.c.h.b16 %v4135
        %v4163 = vunpack.c.l.b16 %v4136
        %v4164 = vunpack.c.h.b16 %v4136
        %v4165 = vunpack.c.l.b16 %v4137
        %v4166 = vunpack.c.h.b16 %v4137
        %v4167 = vunpack.c.l.b16 %v4138
        %v4168 = vunpack.c.h.b16 %v4138
        %v4169 = vunpack.c.l.b16 %v4139
        %v4170 = vunpack.c.h.b16 %v4139
        %v4171 = vunpack.c.l.b16 %v4140
        %v4172 = vunpack.c.h.b16 %v4140
        %v4173 = vunpack.c.l.b16 %v4141
        %v4174 = vunpack.c.h.b16 %v4141
        %v4175 = vpack.c.b16 %v4155, %v4153
        %v4176 = vpack.c.b16 %v4156, %v4154
        %v4177 = vpack.c.b16 %v4159, %v4157
        %v4178 = vpack.c.b16 %v4160, %v4158
        %v4179 = vpack.c.b16 %v4163, %v4161
        %v4180 = vpack.c.b16 %v4164, %v4162
        %v4181 = vpack.c.b16 %v4167, %v4165
        %v4182 = vpack.c.b16 %v4168, %v4166
        %v4183 = vpack.c.b16 %v4171, %v4169
        %v4184 = vpack.c.b16 %v4172, %v4170
        %v4185 = vpack.c.b16 %v4173, %v4173
        %v4186 = vpack.c.b16 %v4174, %v4174
        %v4198 = vsel %vm2976, %v4122, 0
        %v4201 = vsel %vm2976, %v4123, 0
        %v4204 = vsel %vm2976, %v4124, 0
        %v4207 = vsel %vm2976, %v4125, 0
        %v4210 = vsel %vm2976, %v4126, 0
        %v4213 = vsel %vm2976, %v4127, 0
        %v4216 = vsel %vm2976, %v4128, 0
        %v4219 = vsel %vm2976, %v4129, 0
        %v4222 = vsel %vm3256, %v4185, 0
        %v4225 = vsel %vm3256, %v4186, 0
        %4227 = vmatprep.subr.bf16.mxu0 %v4176
        %4228 = vmatpush1.bf16.msra.mxu0 %v4175
        %4229 = vmatprep.subr.bf16.mxu0 %v4178
        %4230 = vmatpush1.bf16.msra.mxu0 %v4177
        %4231 = vmatprep.subr.bf16.mxu0 %v4180
        %4232 = vmatpush1.bf16.msra.mxu0 %v4179
        %4233 = vmatprep.subr.bf16.mxu0 %v4182
        %4234 = vmatpush1.bf16.msra.mxu0 %v4181
        %4235 = vmatprep.subr.bf16.mxu0 %v4184
        %4236 = vmatpush1.bf16.msra.mxu0 %v4183
        %4237 = vmatprep.subr.bf16.mxu0 %v4225
        %4238 = vmatpush1.bf16.msra.mxu0 %v4222
        %4239 = vmatprep.subr.bf16.mxu0 0
        %4240 = vmatpush1.bf16.msra.mxu0 0
        %4241 = vmatprep.subr.bf16.mxu0 0
        %4242 = vmatpush1.bf16.msra.mxu0 0
        %4243 = vmatprep.subr.bf16.mxu0 0
        %4244 = vmatpush1.bf16.msra.mxu0 0
        %4245 = vmatprep.subr.bf16.mxu0 0
        %4246 = vmatpush1.bf16.msra.mxu0 0
        %4247 = vmatprep.subr.bf16.mxu0 0
        %4248 = vmatpush1.bf16.msra.mxu0 0
        %4249 = vmatprep.subr.bf16.mxu0 0
        %4250 = vmatpush1.bf16.msra.mxu0 0
        %4251 = vmatprep.subr.bf16.mxu0 0
        %4252 = vmatpush1.bf16.msra.mxu0 0
        %4253 = vmatprep.subr.bf16.mxu0 0
        %4254 = vmatpush1.bf16.msra.mxu0 0
        %4255 = vmatprep.subr.bf16.mxu0 0
        %4256 = vmatpush1.bf16.msra.mxu0 0
        %4257 = vmatprep.subr.bf16.mxu0 0
        %4258 = vmatpush1.bf16.msra.mxu0 0
        %4259 = vmatprep.mubr.bf16.mxu0 0
        %4260 = vmatmul.mubr.bf16.gmra.mrb[0].mxu0 %v4198
        %v4261 = vpop.f32.mrb[0].mxu0
        %v4262 = vadd.f32 0.0, %v4261
        %v4263 = vpop.f32.mrb[0].mxu0
        %v4264 = vadd.f32 0.0, %v4263
        %v4265 = vpop.f32.mrb[0].mxu0
        %v4266 = vadd.f32 0.0, %v4265
        %v4267 = vpop.f32.mrb[0].mxu0
        %v4268 = vadd.f32 0.0, %v4267
        %4269 = vmatprep.mubr.bf16.mxu0 0
        %4270 = vmatmul.mubr.bf16.gmra.mrb[0].mxu0 %v4201
        %v4271 = vpop.f32.mrb[0].mxu0
        %v4272 = vadd.f32 0.0, %v4271
        %v4273 = vpop.f32.mrb[0].mxu0
        %v4274 = vadd.f32 0.0, %v4273
        %v4275 = vpop.f32.mrb[0].mxu0
        %v4276 = vadd.f32 0.0, %v4275
        %v4277 = vpop.f32.mrb[0].mxu0
        %v4278 = vadd.f32 0.0, %v4277
        %4279 = vmatprep.mubr.bf16.mxu0 0
        %4280 = vmatmul.mubr.bf16.gmra.mrb[0].mxu0 %v4204
        %v4281 = vpop.f32.mrb[0].mxu0
        %v4282 = vadd.f32 0.0, %v4281
        %v4283 = vpop.f32.mrb[0].mxu0
        %v4284 = vadd.f32 0.0, %v4283
        %v4285 = vpop.f32.mrb[0].mxu0
        %v4286 = vadd.f32 0.0, %v4285
        %v4287 = vpop.f32.mrb[0].mxu0
        %v4288 = vadd.f32 0.0, %v4287
        %4289 = vmatprep.mubr.bf16.mxu0 0
        %4290 = vmatmul.mubr.bf16.gmra.mrb[0].mxu0 %v4207
        %v4291 = vpop.f32.mrb[0].mxu0
        %v4292 = vadd.f32 0.0, %v4291
        %v4293 = vpop.f32.mrb[0].mxu0
        %v4294 = vadd.f32 0.0, %v4293
        %v4295 = vpop.f32.mrb[0].mxu0
        %v4296 = vadd.f32 0.0, %v4295
        %v4297 = vpop.f32.mrb[0].mxu0
        %v4298 = vadd.f32 0.0, %v4297
        %4299 = vmatprep.mubr.bf16.mxu0 0
        %4300 = vmatmul.mubr.bf16.gmra.mrb[0].mxu0 %v4210
        %v4301 = vpop.f32.mrb[0].mxu0
        %v4302 = vadd.f32 0.0, %v4301
        %v4303 = vpop.f32.mrb[0].mxu0
        %v4304 = vadd.f32 0.0, %v4303
        %v4305 = vpop.f32.mrb[0].mxu0
        %v4306 = vadd.f32 0.0, %v4305
        %v4307 = vpop.f32.mrb[0].mxu0
        %v4308 = vadd.f32 0.0, %v4307
        %4309 = vmatprep.mubr.bf16.mxu0 0
        %4310 = vmatmul.mubr.bf16.gmra.mrb[0].mxu0 %v4213
        %v4311 = vpop.f32.mrb[0].mxu0
        %v4312 = vadd.f32 0.0, %v4311
        %v4313 = vpop.f32.mrb[0].mxu0
        %v4314 = vadd.f32 0.0, %v4313
        %v4315 = vpop.f32.mrb[0].mxu0
        %v4316 = vadd.f32 0.0, %v4315
        %v4317 = vpop.f32.mrb[0].mxu0
        %v4318 = vadd.f32 0.0, %v4317
        %4319 = vmatprep.mubr.bf16.mxu0 0
        %4320 = vmatmul.mubr.bf16.gmra.mrb[0].mxu0 %v4216
        %v4321 = vpop.f32.mrb[0].mxu0
        %v4322 = vadd.f32 0.0, %v4321
        %v4323 = vpop.f32.mrb[0].mxu0
        %v4324 = vadd.f32 0.0, %v4323
        %v4325 = vpop.f32.mrb[0].mxu0
        %v4326 = vadd.f32 0.0, %v4325
        %v4327 = vpop.f32.mrb[0].mxu0
        %v4328 = vadd.f32 0.0, %v4327
        %4329 = vmatprep.mubr.bf16.mxu0 0
        %4330 = vmatmul.mubr.bf16.gmra.mrb[0].mxu0 %v4219
        %v4331 = vpop.f32.mrb[0].mxu0
        %v4332 = vadd.f32 0.0, %v4331
        %v4333 = vpop.f32.mrb[0].mxu0
        %v4334 = vadd.f32 0.0, %v4333
        %v4335 = vpop.f32.mrb[0].mxu0
        %v4336 = vadd.f32 0.0, %v4335
        %v4337 = vpop.f32.mrb[0].mxu0
        %v4338 = vadd.f32 0.0, %v4337
        %4339 = vdwg.mxu0
        %v4340 = vadd.f32 %v4074, %v4262
        %v4341 = vadd.f32 %v4075, %v4264
        %v4342 = vadd.f32 %v4076, %v4266
        %v4343 = vadd.f32 %v4077, %v4268
        %v4344 = vadd.f32 %v4078, %v4272
        %v4345 = vadd.f32 %v4079, %v4274
        %v4346 = vadd.f32 %v4080, %v4276
        %v4347 = vadd.f32 %v4081, %v4278
        %v4348 = vadd.f32 %v4082, %v4282
        %v4349 = vadd.f32 %v4083, %v4284
        %v4350 = vadd.f32 %v4084, %v4286
        %v4351 = vadd.f32 %v4085, %v4288
        %v4352 = vadd.f32 %v4086, %v4292
        %v4353 = vadd.f32 %v4087, %v4294
        %v4354 = vadd.f32 %v4088, %v4296
        %v4355 = vadd.f32 %v4089, %v4298
        %v4356 = vadd.f32 %v4090, %v4302
        %v4357 = vadd.f32 %v4091, %v4304
        %v4358 = vadd.f32 %v4092, %v4306
        %v4359 = vadd.f32 %v4093, %v4308
        %v4360 = vadd.f32 %v4094, %v4312
        %v4361 = vadd.f32 %v4095, %v4314
        %v4362 = vadd.f32 %v4096, %v4316
        %v4363 = vadd.f32 %v4097, %v4318
        %v4364 = vadd.f32 %v4098, %v4322
        %v4365 = vadd.f32 %v4099, %v4324
        %v4366 = vadd.f32 %v4100, %v4326
        %v4367 = vadd.f32 %v4101, %v4328
        %v4368 = vadd.f32 %v4102, %v4332
        %v4369 = vadd.f32 %v4103, %v4334
        %v4370 = vadd.f32 %v4104, %v4336
        %v4371 = vadd.f32 %v4105, %v4338
        %v4372 = vld [vmem:[%s5] sm:$0x3]
        %v4374 = vlaneseq
        %v4375 = vshrl.u32 %v4374, 7
        %v4376 = vsub.s32 0, %v4375
        %v4377 = vrot.slane %v4372, %v4376
        %v4378 = vlaneseq
        %v4379 = vshrl.u32 %v4378, 7
        %v4380 = vsub.s32 1, %v4379
        %v4381 = vrot.slane %v4372, %v4380
        %v4384 = vadd.f32 %v4340, %v4377
        %v4385 = vadd.f32 %v4341, %v4381
        %v4386 = vadd.f32 %v4342, %v4377
        %v4387 = vadd.f32 %v4343, %v4381
        %v4388 = vadd.f32 %v4344, %v4377
        %v4389 = vadd.f32 %v4345, %v4381
        %v4390 = vadd.f32 %v4346, %v4377
        %v4391 = vadd.f32 %v4347, %v4381
        %v4392 = vadd.f32 %v4348, %v4377
        %v4393 = vadd.f32 %v4349, %v4381
        %v4394 = vadd.f32 %v4350, %v4377
        %v4395 = vadd.f32 %v4351, %v4381
        %v4396 = vadd.f32 %v4352, %v4377
        %v4397 = vadd.f32 %v4353, %v4381
        %v4398 = vadd.f32 %v4354, %v4377
        %v4399 = vadd.f32 %v4355, %v4381
        %v4400 = vadd.f32 %v4356, %v4377
        %v4401 = vadd.f32 %v4357, %v4381
        %v4402 = vadd.f32 %v4358, %v4377
        %v4403 = vadd.f32 %v4359, %v4381
        %v4404 = vadd.f32 %v4360, %v4377
        %v4405 = vadd.f32 %v4361, %v4381
        %v4406 = vadd.f32 %v4362, %v4377
        %v4407 = vadd.f32 %v4363, %v4381
        %v4408 = vadd.f32 %v4364, %v4377
        %v4409 = vadd.f32 %v4365, %v4381
        %v4410 = vadd.f32 %v4366, %v4377
        %v4411 = vadd.f32 %v4367, %v4381
        %v4412 = vadd.f32 %v4368, %v4377
        %v4413 = vadd.f32 %v4369, %v4381
        %v4414 = vadd.f32 %v4370, %v4377
        %v4415 = vadd.f32 %v4371, %v4381
        %v4416 = vmax.f32 %v4384, 0.0
        %v4417 = vmax.f32 %v4385, 0.0
        %v4418 = vmax.f32 %v4386, 0.0
        %v4419 = vmax.f32 %v4387, 0.0
        %v4420 = vmax.f32 %v4388, 0.0
        %v4421 = vmax.f32 %v4389, 0.0
        %v4422 = vmax.f32 %v4390, 0.0
        %v4423 = vmax.f32 %v4391, 0.0
        %v4424 = vmax.f32 %v4392, 0.0
        %v4425 = vmax.f32 %v4393, 0.0
        %v4426 = vmax.f32 %v4394, 0.0
        %v4427 = vmax.f32 %v4395, 0.0
        %v4428 = vmax.f32 %v4396, 0.0
        %v4429 = vmax.f32 %v4397, 0.0
        %v4430 = vmax.f32 %v4398, 0.0
        %v4431 = vmax.f32 %v4399, 0.0
        %v4432 = vmax.f32 %v4400, 0.0
        %v4433 = vmax.f32 %v4401, 0.0
        %v4434 = vmax.f32 %v4402, 0.0
        %v4435 = vmax.f32 %v4403, 0.0
        %v4436 = vmax.f32 %v4404, 0.0
        %v4437 = vmax.f32 %v4405, 0.0
        %v4438 = vmax.f32 %v4406, 0.0
        %v4439 = vmax.f32 %v4407, 0.0
        %v4440 = vmax.f32 %v4408, 0.0
        %v4441 = vmax.f32 %v4409, 0.0
        %v4442 = vmax.f32 %v4410, 0.0
        %v4443 = vmax.f32 %v4411, 0.0
        %v4444 = vmax.f32 %v4412, 0.0
        %v4445 = vmax.f32 %v4413, 0.0
        %v4446 = vmax.f32 %v4414, 0.0
        %v4447 = vmax.f32 %v4415, 0.0
        %v4448 = vpack.c.bf16 %v4418, %v4416
        %v4449 = vpack.c.bf16 %v4419, %v4417
        %v4450 = vpack.c.bf16 %v4422, %v4420
        %v4451 = vpack.c.bf16 %v4423, %v4421
        %v4452 = vpack.c.bf16 %v4426, %v4424
        %v4453 = vpack.c.bf16 %v4427, %v4425
        %v4454 = vpack.c.bf16 %v4430, %v4428
        %v4455 = vpack.c.bf16 %v4431, %v4429
        %v4456 = vpack.c.bf16 %v4434, %v4432
        %v4457 = vpack.c.bf16 %v4435, %v4433
        %v4458 = vpack.c.bf16 %v4438, %v4436
        %v4459 = vpack.c.bf16 %v4439, %v4437
        %v4460 = vpack.c.bf16 %v4442, %v4440
        %v4461 = vpack.c.bf16 %v4443, %v4441
        %v4462 = vpack.c.bf16 %v4446, %v4444
        %v4463 = vpack.c.bf16 %v4447, %v4445
        %v4464 = vld [vmem:[%s6] sm:$0xf]
        %v4465 = vld [vmem:[%s6 + $0x4] sm:$0xf]
        %v4466 = vld [vmem:[%s6 + $0x8] sm:$0xf]
        %v4467 = vld [vmem:[%s6 + $0xc] sm:$0xf]
        %v4468 = vld [vmem:[%s6 + $0x10] sm:$0xf]
        %v4469 = vld [vmem:[%s6 + $0x14] sm:$0xf]
        %v4470 = vld [vmem:[%s6 + $0x18] sm:$0xf]
        %v4471 = vld [vmem:[%s6 + $0x1c] sm:$0xf]
        %v4472 = vld [vmem:[%s6 + $0x20] sm:$0xf]
        %v4473 = vld [vmem:[%s6 + $0x24] sm:$0xf]
        %v4474 = vld [vmem:[%s6 + $0x28] sm:$0xf]
        %v4475 = vld [vmem:[%s6 + $0x2c] sm:$0xf]
        %v4476 = vld [vmem:[%s6 + $0x30] sm:$0xf]
        %v4477 = vld [vmem:[%s6 + $0x34] sm:$0xf]
        %v4478 = vld [vmem:[%s6 + $0x38] sm:$0xf]
        %v4479 = vld [vmem:[%s6 + $0x3c] sm:$0xf]
        %v4480 = vld [vmem:[%s6 + $0x40] sm:$0xf]
        %v4481 = vld [vmem:[%s6 + $0x44] sm:$0xf]
        %v4482 = vld [vmem:[%s6 + $0x48] sm:$0xf]
        %v4483 = vld [vmem:[%s6 + $0x4c] sm:$0xf]
        %v4504 = vunpack.c.l.b16 %v4464
        %v4505 = vunpack.c.l.b16 %v4465
        %v4506 = vunpack.c.l.b16 %v4466
        %v4507 = vunpack.c.l.b16 %v4467
        %v4508 = vunpack.c.l.b16 %v4468
        %v4509 = vunpack.c.l.b16 %v4469
        %v4510 = vunpack.c.l.b16 %v4470
        %v4511 = vunpack.c.l.b16 %v4471
        %v4512 = vunpack.c.l.b16 %v4472
        %v4513 = vunpack.c.l.b16 %v4473
        %v4514 = vunpack.c.l.b16 %v4474
        %v4515 = vunpack.c.l.b16 %v4475
        %v4516 = vunpack.c.l.b16 %v4476
        %v4517 = vunpack.c.l.b16 %v4477
        %v4518 = vunpack.c.l.b16 %v4478
        %v4519 = vunpack.c.l.b16 %v4479
        %v4520 = vunpack.c.l.b16 %v4480
        %v4521 = vunpack.c.l.b16 %v4481
        %v4522 = vunpack.c.l.b16 %v4482
        %v4523 = vunpack.c.l.b16 %v4483
        %v4524 = vpack.c.b16 %v4505, %v4504
        %v4525 = vpack.c.b16 %v4507, %v4506
        %v4526 = vpack.c.b16 %v4509, %v4508
        %v4527 = vpack.c.b16 %v4511, %v4510
        %v4528 = vpack.c.b16 %v4513, %v4512
        %v4529 = vpack.c.b16 %v4515, %v4514
        %v4530 = vpack.c.b16 %v4517, %v4516
        %v4531 = vpack.c.b16 %v4519, %v4518
        %v4532 = vpack.c.b16 %v4521, %v4520
        %v4533 = vpack.c.b16 %v4523, %v4522
        %vm4544 = vcmask 261120
        %v4546 = vsel %vm4544, %v4449, 0
        %v4549 = vsel %vm4544, %v4451, 0
        %v4552 = vsel %vm4544, %v4453, 0
        %v4555 = vsel %vm4544, %v4455, 0
        %v4558 = vsel %vm4544, %v4457, 0
        %v4561 = vsel %vm4544, %v4459, 0
        %v4564 = vsel %vm4544, %v4461, 0
        %v4567 = vsel %vm4544, %v4463, 0
        %4569 = vmatprep.subr.bf16.mxu0 0
        %4570 = vmatpush1.bf16.msra.mxu0 %v4524
        %4571 = vmatprep.subr.bf16.mxu0 0
        %4572 = vmatpush1.bf16.msra.mxu0 %v4525
        %4573 = vmatprep.subr.bf16.mxu0 0
        %4574 = vmatpush1.bf16.msra.mxu0 %v4526
        %4575 = vmatprep.subr.bf16.mxu0 0
        %4576 = vmatpush1.bf16.msra.mxu0 %v4527
        %4577 = vmatprep.subr.bf16.mxu0 0
        %4578 = vmatpush1.bf16.msra.mxu0 %v4528
        %4579 = vmatprep.subr.bf16.mxu0 0
        %4580 = vmatpush1.bf16.msra.mxu0 %v4529
        %4581 = vmatprep.subr.bf16.mxu0 0
        %4582 = vmatpush1.bf16.msra.mxu0 %v4530
        %4583 = vmatprep.subr.bf16.mxu0 0
        %4584 = vmatpush1.bf16.msra.mxu0 %v4531
        %4585 = vmatprep.subr.bf16.mxu0 0
        %4586 = vmatpush1.bf16.msra.mxu0 %v4532
        %4587 = vmatprep.subr.bf16.mxu0 0
        %4588 = vmatpush1.bf16.msra.mxu0 %v4533
        %4589 = vmatprep.subr.bf16.mxu0 0
        %4590 = vmatpush1.bf16.msra.mxu0 0
        %4591 = vmatprep.subr.bf16.mxu0 0
        %4592 = vmatpush1.bf16.msra.mxu0 0
        %4593 = vmatprep.subr.bf16.mxu0 0
        %4594 = vmatpush1.bf16.msra.mxu0 0
        %4595 = vmatprep.subr.bf16.mxu0 0
        %4596 = vmatpush1.bf16.msra.mxu0 0
        %4597 = vmatprep.subr.bf16.mxu0 0
        %4598 = vmatpush1.bf16.msra.mxu0 0
        %4599 = vmatprep.subr.bf16.mxu0 0
        %4600 = vmatpush1.bf16.msra.mxu0 0
        %4601 = vmatprep.mubr.bf16.mxu0 %v4546
        %4602 = vmatmul.mubr.bf16.gmra.mrb[0].mxu0 %v4448
        %v4603 = vpop.f32.mrb[0].mxu0
        %v4604 = vadd.f32 0.0, %v4603
        %v4605 = vpop.f32.mrb[0].mxu0
        %v4606 = vpop.f32.mrb[0].mxu0
        %v4607 = vadd.f32 0.0, %v4606
        %v4608 = vpop.f32.mrb[0].mxu0
        %4609 = vmatprep.mubr.bf16.mxu0 %v4549
        %4610 = vmatmul.mubr.bf16.gmra.mrb[0].mxu0 %v4450
        %v4611 = vpop.f32.mrb[0].mxu0
        %v4612 = vadd.f32 0.0, %v4611
        %v4613 = vpop.f32.mrb[0].mxu0
        %v4614 = vpop.f32.mrb[0].mxu0
        %v4615 = vadd.f32 0.0, %v4614
        %v4616 = vpop.f32.mrb[0].mxu0
        %4617 = vmatprep.mubr.bf16.mxu0 %v4552
        %4618 = vmatmul.mubr.bf16.gmra.mrb[0].mxu0 %v4452
        %v4619 = vpop.f32.mrb[0].mxu0
        %v4620 = vadd.f32 0.0, %v4619
        %v4621 = vpop.f32.mrb[0].mxu0
        %v4622 = vpop.f32.mrb[0].mxu0
        %v4623 = vadd.f32 0.0, %v4622
        %v4624 = vpop.f32.mrb[0].mxu0
        %4625 = vmatprep.mubr.bf16.mxu0 %v4555
        %4626 = vmatmul.mubr.bf16.gmra.mrb[0].mxu0 %v4454
        %v4627 = vpop.f32.mrb[0].mxu0
        %v4628 = vadd.f32 0.0, %v4627
        %v4629 = vpop.f32.mrb[0].mxu0
        %v4630 = vpop.f32.mrb[0].mxu0
        %v4631 = vadd.f32 0.0, %v4630
        %v4632 = vpop.f32.mrb[0].mxu0
        %4633 = vmatprep.mubr.bf16.mxu0 %v4558
        %4634 = vmatmul.mubr.bf16.gmra.mrb[0].mxu0 %v4456
        %v4635 = vpop.f32.mrb[0].mxu0
        %v4636 = vadd.f32 0.0, %v4635
        %v4637 = vpop.f32.mrb[0].mxu0
        %v4638 = vpop.f32.mrb[0].mxu0
        %v4639 = vadd.f32 0.0, %v4638
        %v4640 = vpop.f32.mrb[0].mxu0
        %4641 = vmatprep.mubr.bf16.mxu0 %v4561
        %4642 = vmatmul.mubr.bf16.gmra.mrb[0].mxu0 %v4458
        %v4643 = vpop.f32.mrb[0].mxu0
        %v4644 = vadd.f32 0.0, %v4643
        %v4645 = vpop.f32.mrb[0].mxu0
        %v4646 = vpop.f32.mrb[0].mxu0
        %v4647 = vadd.f32 0.0, %v4646
        %v4648 = vpop.f32.mrb[0].mxu0
        %4649 = vmatprep.mubr.bf16.mxu0 %v4564
        %4650 = vmatmul.mubr.bf16.gmra.mrb[0].mxu0 %v4460
        %v4651 = vpop.f32.mrb[0].mxu0
        %v4652 = vadd.f32 0.0, %v4651
        %v4653 = vpop.f32.mrb[0].mxu0
        %v4654 = vpop.f32.mrb[0].mxu0
        %v4655 = vadd.f32 0.0, %v4654
        %v4656 = vpop.f32.mrb[0].mxu0
        %4657 = vmatprep.mubr.bf16.mxu0 %v4567
        %4658 = vmatmul.mubr.bf16.gmra.mrb[0].mxu0 %v4462
        %v4659 = vpop.f32.mrb[0].mxu0
        %v4660 = vadd.f32 0.0, %v4659
        %v4661 = vpop.f32.mrb[0].mxu0
        %v4662 = vpop.f32.mrb[0].mxu0
        %v4663 = vadd.f32 0.0, %v4662
        %v4664 = vpop.f32.mrb[0].mxu0
        %4665 = vdwg.mxu0
        %s4666 = scalar_lea.vmem %s6, 80
        %v4667 = vld [vmem:[%s4666] sm:$0xf]
        %v4668 = vld [vmem:[%s4666 + $0x4] sm:$0xf]
        %v4669 = vld [vmem:[%s4666 + $0x8] sm:$0xf]
        %v4670 = vld [vmem:[%s4666 + $0xc] sm:$0xf]
        %v4671 = vld [vmem:[%s4666 + $0x10] sm:$0xf]
        %v4672 = vld [vmem:[%s4666 + $0x14] sm:$0xf]
        %v4673 = vld [vmem:[%s4666 + $0x18] sm:$0xf]
        %v4674 = vld [vmem:[%s4666 + $0x1c] sm:$0xf]
        %v4675 = vld [vmem:[%s4666 + $0x20] sm:$0xf]
        %v4676 = vld [vmem:[%s4666 + $0x24] sm:$0xf]
        %v4677 = vld [vmem:[%s4666 + $0x28] sm:$0xf]
        %v4678 = vld [vmem:[%s4666 + $0x2c] sm:$0xf]
        %v4679 = vld [vmem:[%s4666 + $0x30] sm:$0xf]
        %v4680 = vld [vmem:[%s4666 + $0x34] sm:$0xf]
        %v4681 = vld [vmem:[%s4666 + $0x38] sm:$0xf]
        %v4682 = vld [vmem:[%s4666 + $0x3c] sm:$0xf]
        %v4683 = vld [vmem:[%s4666 + $0x40] sm:$0xf]
        %v4684 = vld [vmem:[%s4666 + $0x44] sm:$0xf]
        %v4685 = vld [vmem:[%s4666 + $0x48] sm:$0xf]
        %v4686 = vld [vmem:[%s4666 + $0x4c] sm:$0xf]
        %v4707 = vunpack.c.l.b16 %v4667
        %v4708 = vunpack.c.l.b16 %v4668
        %v4709 = vunpack.c.l.b16 %v4669
        %v4710 = vunpack.c.l.b16 %v4670
        %v4711 = vunpack.c.l.b16 %v4671
        %v4712 = vunpack.c.l.b16 %v4672
        %v4713 = vunpack.c.l.b16 %v4673
        %v4714 = vunpack.c.l.b16 %v4674
        %v4715 = vunpack.c.l.b16 %v4675
        %v4716 = vunpack.c.l.b16 %v4676
        %v4717 = vunpack.c.l.b16 %v4677
        %v4718 = vunpack.c.l.b16 %v4678
        %v4719 = vunpack.c.l.b16 %v4679
        %v4720 = vunpack.c.l.b16 %v4680
        %v4721 = vunpack.c.l.b16 %v4681
        %v4722 = vunpack.c.l.b16 %v4682
        %v4723 = vunpack.c.l.b16 %v4683
        %v4724 = vunpack.c.l.b16 %v4684
        %v4725 = vunpack.c.l.b16 %v4685
        %v4726 = vunpack.c.l.b16 %v4686
        %v4727 = vpack.c.b16 %v4708, %v4707
        %v4728 = vpack.c.b16 %v4710, %v4709
        %v4729 = vpack.c.b16 %v4712, %v4711
        %v4730 = vpack.c.b16 %v4714, %v4713
        %v4731 = vpack.c.b16 %v4716, %v4715
        %v4732 = vpack.c.b16 %v4718, %v4717
        %v4733 = vpack.c.b16 %v4720, %v4719
        %v4734 = vpack.c.b16 %v4722, %v4721
        %v4735 = vpack.c.b16 %v4724, %v4723
        %v4736 = vpack.c.b16 %v4726, %v4725
        %4747 = vmatprep.subr.bf16.mxu0 0
        %4748 = vmatpush1.bf16.msra.mxu0 %v4727
        %4749 = vmatprep.subr.bf16.mxu0 0
        %4750 = vmatpush1.bf16.msra.mxu0 %v4728
        %4751 = vmatprep.subr.bf16.mxu0 0
        %4752 = vmatpush1.bf16.msra.mxu0 %v4729
        %4753 = vmatprep.subr.bf16.mxu0 0
        %4754 = vmatpush1.bf16.msra.mxu0 %v4730
        %4755 = vmatprep.subr.bf16.mxu0 0
        %4756 = vmatpush1.bf16.msra.mxu0 %v4731
        %4757 = vmatprep.subr.bf16.mxu0 0
        %4758 = vmatpush1.bf16.msra.mxu0 %v4732
        %4759 = vmatprep.subr.bf16.mxu0 0
        %4760 = vmatpush1.bf16.msra.mxu0 %v4733
        %4761 = vmatprep.subr.bf16.mxu0 0
        %4762 = vmatpush1.bf16.msra.mxu0 %v4734
        %4763 = vmatprep.subr.bf16.mxu0 0
        %4764 = vmatpush1.bf16.msra.mxu0 %v4735
        %4765 = vmatprep.subr.bf16.mxu0 0
        %4766 = vmatpush1.bf16.msra.mxu0 %v4736
        %4767 = vmatprep.subr.bf16.mxu0 0
        %4768 = vmatpush1.bf16.msra.mxu0 0
        %4769 = vmatprep.subr.bf16.mxu0 0
        %4770 = vmatpush1.bf16.msra.mxu0 0
        %4771 = vmatprep.subr.bf16.mxu0 0
        %4772 = vmatpush1.bf16.msra.mxu0 0
        %4773 = vmatprep.subr.bf16.mxu0 0
        %4774 = vmatpush1.bf16.msra.mxu0 0
        %4775 = vmatprep.subr.bf16.mxu0 0
        %4776 = vmatpush1.bf16.msra.mxu0 0
        %4777 = vmatprep.subr.bf16.mxu0 0
        %4778 = vmatpush1.bf16.msra.mxu0 0
        %4779 = vmatprep.mubr.bf16.mxu0 %v4546
        %4780 = vmatmul.mubr.bf16.gmra.mrb[0].mxu0 %v4448
        %v4781 = vpop.f32.mrb[0].mxu0
        %v4782 = vadd.f32 0.0, %v4781
        %v4783 = vpop.f32.mrb[0].mxu0
        %v4784 = vpop.f32.mrb[0].mxu0
        %v4785 = vadd.f32 0.0, %v4784
        %v4786 = vpop.f32.mrb[0].mxu0
        %4787 = vmatprep.mubr.bf16.mxu0 %v4549
        %4788 = vmatmul.mubr.bf16.gmra.mrb[0].mxu0 %v4450
        %v4789 = vpop.f32.mrb[0].mxu0
        %v4790 = vadd.f32 0.0, %v4789
        %v4791 = vpop.f32.mrb[0].mxu0
        %v4792 = vpop.f32.mrb[0].mxu0
        %v4793 = vadd.f32 0.0, %v4792
        %v4794 = vpop.f32.mrb[0].mxu0
        %4795 = vmatprep.mubr.bf16.mxu0 %v4552
        %4796 = vmatmul.mubr.bf16.gmra.mrb[0].mxu0 %v4452
        %v4797 = vpop.f32.mrb[0].mxu0
        %v4798 = vadd.f32 0.0, %v4797
        %v4799 = vpop.f32.mrb[0].mxu0
        %v4800 = vpop.f32.mrb[0].mxu0
        %v4801 = vadd.f32 0.0, %v4800
        %v4802 = vpop.f32.mrb[0].mxu0
        %4803 = vmatprep.mubr.bf16.mxu0 %v4555
        %4804 = vmatmul.mubr.bf16.gmra.mrb[0].mxu0 %v4454
        %v4805 = vpop.f32.mrb[0].mxu0
        %v4806 = vadd.f32 0.0, %v4805
        %v4807 = vpop.f32.mrb[0].mxu0
        %v4808 = vpop.f32.mrb[0].mxu0
        %v4809 = vadd.f32 0.0, %v4808
        %v4810 = vpop.f32.mrb[0].mxu0
        %4811 = vmatprep.mubr.bf16.mxu0 %v4558
        %4812 = vmatmul.mubr.bf16.gmra.mrb[0].mxu0 %v4456
        %v4813 = vpop.f32.mrb[0].mxu0
        %v4814 = vadd.f32 0.0, %v4813
        %v4815 = vpop.f32.mrb[0].mxu0
        %v4816 = vpop.f32.mrb[0].mxu0
        %v4817 = vadd.f32 0.0, %v4816
        %v4818 = vpop.f32.mrb[0].mxu0
        %4819 = vmatprep.mubr.bf16.mxu0 %v4561
        %4820 = vmatmul.mubr.bf16.gmra.mrb[0].mxu0 %v4458
        %v4821 = vpop.f32.mrb[0].mxu0
        %v4822 = vadd.f32 0.0, %v4821
        %v4823 = vpop.f32.mrb[0].mxu0
        %v4824 = vpop.f32.mrb[0].mxu0
        %v4825 = vadd.f32 0.0, %v4824
        %v4826 = vpop.f32.mrb[0].mxu0
        %4827 = vmatprep.mubr.bf16.mxu0 %v4564
        %4828 = vmatmul.mubr.bf16.gmra.mrb[0].mxu0 %v4460
        %v4829 = vpop.f32.mrb[0].mxu0
        %v4830 = vadd.f32 0.0, %v4829
        %v4831 = vpop.f32.mrb[0].mxu0
        %v4832 = vpop.f32.mrb[0].mxu0
        %v4833 = vadd.f32 0.0, %v4832
        %v4834 = vpop.f32.mrb[0].mxu0
        %4835 = vmatprep.mubr.bf16.mxu0 %v4567
        %4836 = vmatmul.mubr.bf16.gmra.mrb[0].mxu0 %v4462
        %v4837 = vpop.f32.mrb[0].mxu0
        %v4838 = vadd.f32 0.0, %v4837
        %v4839 = vpop.f32.mrb[0].mxu0
        %v4840 = vpop.f32.mrb[0].mxu0
        %v4841 = vadd.f32 0.0, %v4840
        %v4842 = vpop.f32.mrb[0].mxu0
        %4843 = vdwg.mxu0
        %v4844 = vmax.f32 %v4604, %v4782
        %v4845 = vmax.f32 %v4607, %v4785
        %v4846 = vmax.f32 %v4612, %v4790
        %v4847 = vmax.f32 %v4615, %v4793
        %v4848 = vmax.f32 %v4620, %v4798
        %v4849 = vmax.f32 %v4623, %v4801
        %v4850 = vmax.f32 %v4628, %v4806
        %v4851 = vmax.f32 %v4631, %v4809
        %v4852 = vmax.f32 %v4636, %v4814
        %v4853 = vmax.f32 %v4639, %v4817
        %v4854 = vmax.f32 %v4644, %v4822
        %v4855 = vmax.f32 %v4647, %v4825
        %v4856 = vmax.f32 %v4652, %v4830
        %v4857 = vmax.f32 %v4655, %v4833
        %v4858 = vmax.f32 %v4660, %v4838
        %v4859 = vmax.f32 %v4663, %v4841
        %vm4860 = vcmask 654336
        %4861 = vst.msk [vmem:[#allocation4] sm:$0xff] %vm4860, %v4844
        %4862 = vst.msk [vmem:[#allocation4 + $0x8] sm:$0xff] %vm4860, %v4845
        %4863 = vst.msk [vmem:[#allocation4 + $0x10] sm:$0xff] %vm4860, %v4846
        %4864 = vst.msk [vmem:[#allocation4 + $0x18] sm:$0xff] %vm4860, %v4847
        %4865 = vst.msk [vmem:[#allocation4 + $0x20] sm:$0xff] %vm4860, %v4848
        %4866 = vst.msk [vmem:[#allocation4 + $0x28] sm:$0xff] %vm4860, %v4849
        %4867 = vst.msk [vmem:[#allocation4 + $0x30] sm:$0xff] %vm4860, %v4850
        %4868 = vst.msk [vmem:[#allocation4 + $0x38] sm:$0xff] %vm4860, %v4851
        %4869 = vst.msk [vmem:[#allocation4 + $0x40] sm:$0xff] %vm4860, %v4852
        %4870 = vst.msk [vmem:[#allocation4 + $0x48] sm:$0xff] %vm4860, %v4853
        %4871 = vst.msk [vmem:[#allocation4 + $0x50] sm:$0xff] %vm4860, %v4854
        %4872 = vst.msk [vmem:[#allocation4 + $0x58] sm:$0xff] %vm4860, %v4855
        %4873 = vst.msk [vmem:[#allocation4 + $0x60] sm:$0xff] %vm4860, %v4856
        %4874 = vst.msk [vmem:[#allocation4 + $0x68] sm:$0xff] %vm4860, %v4857
        %4875 = vst.msk [vmem:[#allocation4 + $0x70] sm:$0xff] %vm4860, %v4858
        %vm4876 = vcmask 650240
        %4877 = vst.msk [vmem:[#allocation4 + $0x78] sm:$0xf] %vm4876, %v4859
        %4878 = vst.msk [vmem:[#allocation4 + $0x7c] sm:$0xf] %vm4876, 0.0
        %v4879 = vld [vmem:[#allocation4] ss:$2 sm:$0xff]
        %s4880 = scalar_lea.vmem [#allocation4], 16
        %v4881 = vld [vmem:[%s4880] ss:$2 sm:$0xff]
        %s4882 = scalar_lea.vmem [#allocation4], 32
        %v4883 = vld [vmem:[%s4882] ss:$2 sm:$0xff]
        %s4884 = scalar_lea.vmem [#allocation4], 48
        %v4885 = vld [vmem:[%s4884] ss:$2 sm:$0xff]
        %s4886 = scalar_lea.vmem [#allocation4], 64
        %v4887 = vld [vmem:[%s4886] ss:$2 sm:$0xff]
        %s4888 = scalar_lea.vmem [#allocation4], 80
        %v4889 = vld [vmem:[%s4888] ss:$2 sm:$0xff]
        %s4890 = scalar_lea.vmem [#allocation4], 96
        %v4891 = vld [vmem:[%s4890] ss:$2 sm:$0xff]
        %s4892 = scalar_lea.vmem [#allocation4], 112
        %v4893 = vld [vmem:[%s4892] ss:$2 sm:$0xff]
        %s4894 = scalar_lea.vmem [#allocation4], 1
        %v4895 = vld [vmem:[%s4894] ss:$2 sm:$0xff]
        %s4896 = scalar_lea.vmem [#allocation4], 17
        %v4897 = vld [vmem:[%s4896] ss:$2 sm:$0xff]
        %s4898 = scalar_lea.vmem [#allocation4], 33
        %v4899 = vld [vmem:[%s4898] ss:$2 sm:$0xff]
        %s4900 = scalar_lea.vmem [#allocation4], 49
        %v4901 = vld [vmem:[%s4900] ss:$2 sm:$0xff]
        %s4902 = scalar_lea.vmem [#allocation4], 65
        %v4903 = vld [vmem:[%s4902] ss:$2 sm:$0xff]
        %s4904 = scalar_lea.vmem [#allocation4], 81
        %v4905 = vld [vmem:[%s4904] ss:$2 sm:$0xff]
        %s4906 = scalar_lea.vmem [#allocation4], 97
        %v4907 = vld [vmem:[%s4906] ss:$2 sm:$0xff]
        %s4908 = scalar_lea.vmem [#allocation4], 113
        %v4909 = vld [vmem:[%s4908] ss:$2 sm:$0xff]
        %v4910 = vmax.f32 %v4879, %v4895
        %v4911 = vmax.f32 %v4881, %v4897
        %v4912 = vmax.f32 %v4883, %v4899
        %v4913 = vmax.f32 %v4885, %v4901
        %v4914 = vmax.f32 %v4887, %v4903
        %v4915 = vmax.f32 %v4889, %v4905
        %v4916 = vmax.f32 %v4891, %v4907
        %v4917 = vmax.f32 %v4893, %v4909
        %4918 = vst.msk [vmem:[#allocation5] sm:$0xff] %vm4860, %v4910
        %4919 = vst.msk [vmem:[#allocation5 + $0x8] sm:$0xff] %vm4860, %v4911
        %4920 = vst.msk [vmem:[#allocation5 + $0x10] sm:$0xff] %vm4860, %v4912
        %4921 = vst.msk [vmem:[#allocation5 + $0x18] sm:$0xff] %vm4860, %v4913
        %4922 = vst.msk [vmem:[#allocation5 + $0x20] sm:$0xff] %vm4860, %v4914
        %4923 = vst.msk [vmem:[#allocation5 + $0x28] sm:$0xff] %vm4860, %v4915
        %4924 = vst.msk [vmem:[#allocation5 + $0x30] sm:$0xff] %vm4860, %v4916
        %4925 = vst.msk [vmem:[#allocation5 + $0x38] sm:$0xff] %vm4860, %v4917
        %v4926 = vld [vmem:[#allocation5] ss:$8 sm:$0xf]
        %v4927 = vld [vmem:[#allocation5] ss:$8 sm:$0xf0]
        %v4928 = vor.u32 %v4926, %v4927
        %v4929 = vpack.c.bf16 %v4928, %v4928
        %v4930 = vld [vmem:[%s7] sm:$0xf]
        %v4931 = vld [vmem:[%s7 + $0x4] sm:$0xf]
        %v4932 = vld [vmem:[%s7 + $0x8] sm:$0xf]
        %v4933 = vld [vmem:[%s7 + $0xc] sm:$0xf]
        %v4934 = vld [vmem:[%s7 + $0x10] sm:$0xf]
        %v4935 = vld [vmem:[%s7 + $0x14] sm:$0xf]
        %v4936 = vld [vmem:[%s7 + $0x18] sm:$0xf]
        %v4937 = vld [vmem:[%s7 + $0x1c] sm:$0xf]
        %v4938 = vld [vmem:[%s7 + $0x20] sm:$0xf]
        %v4939 = vld [vmem:[%s7 + $0x24] sm:$0xf]
        %s4940 = scalar_lea.vmem [#allocation5], 1
        %v4941 = vld [vmem:[%s4940] ss:$8 sm:$0xf]
        %v4942 = vld [vmem:[%s4940] ss:$8 sm:$0xf0]
        %v4943 = vor.u32 %v4941, %v4942
        %v4944 = vpack.c.bf16 %v4943, %v4943
        %v4945 = vld [vmem:[%s7 + $0x28] sm:$0xf]
        %v4946 = vld [vmem:[%s7 + $0x2c] sm:$0xf]
        %v4947 = vld [vmem:[%s7 + $0x30] sm:$0xf]
        %v4948 = vld [vmem:[%s7 + $0x34] sm:$0xf]
        %v4949 = vld [vmem:[%s7 + $0x38] sm:$0xf]
        %v4950 = vld [vmem:[%s7 + $0x3c] sm:$0xf]
        %v4951 = vld [vmem:[%s7 + $0x40] sm:$0xf]
        %v4952 = vld [vmem:[%s7 + $0x44] sm:$0xf]
        %v4953 = vld [vmem:[%s7 + $0x48] sm:$0xf]
        %v4954 = vld [vmem:[%s7 + $0x4c] sm:$0xf]
        %v4965 = vunpack.c.l.b16 %v4945
        %v4966 = vunpack.c.l.b16 %v4946
        %v4967 = vunpack.c.l.b16 %v4947
        %v4968 = vunpack.c.l.b16 %v4948
        %v4969 = vunpack.c.l.b16 %v4949
        %v4970 = vunpack.c.l.b16 %v4950
        %v4971 = vunpack.c.l.b16 %v4951
        %v4972 = vunpack.c.l.b16 %v4952
        %v4973 = vunpack.c.l.b16 %v4953
        %v4974 = vunpack.c.l.b16 %v4954
        %v4975 = vpack.c.b16 %v4966, %v4965
        %v4976 = vpack.c.b16 %v4968, %v4967
        %v4977 = vpack.c.b16 %v4970, %v4969
        %v4978 = vpack.c.b16 %v4972, %v4971
        %v4979 = vpack.c.b16 %v4974, %v4973
        %v4986 = vsel %vm4860, %v4944, 0
        %4988 = vmatprep.subr.bf16.mxu0 0
        %4989 = vmatpush1.bf16.msra.mxu0 %v4975
        %4990 = vmatprep.subr.bf16.mxu0 0
        %4991 = vmatpush1.bf16.msra.mxu0 %v4976
        %4992 = vmatprep.subr.bf16.mxu0 0
        %4993 = vmatpush1.bf16.msra.mxu0 %v4977
        %4994 = vmatprep.subr.bf16.mxu0 0
        %4995 = vmatpush1.bf16.msra.mxu0 %v4978
        %4996 = vmatprep.subr.bf16.mxu0 0
        %4997 = vmatpush1.bf16.msra.mxu0 %v4979
        %4998 = vmatprep.subr.bf16.mxu0 0
        %4999 = vmatpush1.bf16.msra.mxu0 0
        %5000 = vmatprep.subr.bf16.mxu0 0
        %5001 = vmatpush1.bf16.msra.mxu0 0
        %5002 = vmatprep.subr.bf16.mxu0 0
        %5003 = vmatpush1.bf16.msra.mxu0 0
        %5004 = vmatprep.subr.bf16.mxu0 0
        %5005 = vmatpush1.bf16.msra.mxu0 0
        %5006 = vmatprep.subr.bf16.mxu0 0
        %5007 = vmatpush1.bf16.msra.mxu0 0
        %5008 = vmatprep.subr.bf16.mxu0 0
        %5009 = vmatpush1.bf16.msra.mxu0 0
        %5010 = vmatprep.subr.bf16.mxu0 0
        %5011 = vmatpush1.bf16.msra.mxu0 0
        %5012 = vmatprep.subr.bf16.mxu0 0
        %5013 = vmatpush1.bf16.msra.mxu0 0
        %5014 = vmatprep.subr.bf16.mxu0 0
        %5015 = vmatpush1.bf16.msra.mxu0 0
        %5016 = vmatprep.subr.bf16.mxu0 0
        %5017 = vmatpush1.bf16.msra.mxu0 0
        %5018 = vmatprep.subr.bf16.mxu0 0
        %5019 = vmatpush1.bf16.msra.mxu0 0
        %5020 = vmatprep.mubr.bf16.mxu0 0
        %5021 = vmatmul.mubr.bf16.gmra.mrb[0].mxu0 %v4986
        %v5022 = vpop.f32.mrb[0].mxu0
        %v5023 = vadd.f32 0.0, %v5022
        %v5024 = vpop.f32.mrb[0].mxu0
        %v5025 = vpop.f32.mrb[0].mxu0
        %v5026 = vpop.f32.mrb[0].mxu0
        %5027 = vdwg.mxu0
        %v5038 = vunpack.c.l.b16 %v4930
        %v5039 = vunpack.c.l.b16 %v4931
        %v5040 = vunpack.c.l.b16 %v4932
        %v5041 = vunpack.c.l.b16 %v4933
        %v5042 = vunpack.c.l.b16 %v4934
        %v5043 = vunpack.c.l.b16 %v4935
        %v5044 = vunpack.c.l.b16 %v4936
        %v5045 = vunpack.c.l.b16 %v4937
        %v5046 = vunpack.c.l.b16 %v4938
        %v5047 = vunpack.c.l.b16 %v4939
        %v5048 = vpack.c.b16 %v5039, %v5038
        %v5049 = vpack.c.b16 %v5041, %v5040
        %v5050 = vpack.c.b16 %v5043, %v5042
        %v5051 = vpack.c.b16 %v5045, %v5044
        %v5052 = vpack.c.b16 %v5047, %v5046
        %v5059 = vsel %vm4860, %v4929, 0
        %5061 = vmatprep.subr.bf16.mxu0 0
        %5062 = vmatpush1.bf16.msra.mxu0 %v5048
        %5063 = vmatprep.subr.bf16.mxu0 0
        %5064 = vmatpush1.bf16.msra.mxu0 %v5049
        %5065 = vmatprep.subr.bf16.mxu0 0
        %5066 = vmatpush1.bf16.msra.mxu0 %v5050
        %5067 = vmatprep.subr.bf16.mxu0 0
        %5068 = vmatpush1.bf16.msra.mxu0 %v5051
        %5069 = vmatprep.subr.bf16.mxu0 0
        %5070 = vmatpush1.bf16.msra.mxu0 %v5052
        %5071 = vmatprep.subr.bf16.mxu0 0
        %5072 = vmatpush1.bf16.msra.mxu0 0
        %5073 = vmatprep.subr.bf16.mxu0 0
        %5074 = vmatpush1.bf16.msra.mxu0 0
        %5075 = vmatprep.subr.bf16.mxu0 0
        %5076 = vmatpush1.bf16.msra.mxu0 0
        %5077 = vmatprep.subr.bf16.mxu0 0
        %5078 = vmatpush1.bf16.msra.mxu0 0
        %5079 = vmatprep.subr.bf16.mxu0 0
        %5080 = vmatpush1.bf16.msra.mxu0 0
        %5081 = vmatprep.subr.bf16.mxu0 0
        %5082 = vmatpush1.bf16.msra.mxu0 0
        %5083 = vmatprep.subr.bf16.mxu0 0
        %5084 = vmatpush1.bf16.msra.mxu0 0
        %5085 = vmatprep.subr.bf16.mxu0 0
        %5086 = vmatpush1.bf16.msra.mxu0 0
        %5087 = vmatprep.subr.bf16.mxu0 0
        %5088 = vmatpush1.bf16.msra.mxu0 0
        %5089 = vmatprep.subr.bf16.mxu0 0
        %5090 = vmatpush1.bf16.msra.mxu0 0
        %5091 = vmatprep.subr.bf16.mxu0 0
        %5092 = vmatpush1.bf16.msra.mxu0 0
        %5093 = vmatprep.mubr.bf16.mxu0 0
        %5094 = vmatmul.mubr.bf16.gmra.mrb[0].mxu0 %v5059
        %v5095 = vpop.f32.mrb[0].mxu0
        %v5096 = vadd.f32 %v5023, %v5095
        %v5097 = vpop.f32.mrb[0].mxu0
        %v5098 = vpop.f32.mrb[0].mxu0
        %v5099 = vpop.f32.mrb[0].mxu0
        %5100 = vdwg.mxu0
        %s5101 = scalar_lea.vmem [#allocation5], 2
        %v5102 = vld [vmem:[%s5101] ss:$8 sm:$0xf]
        %v5103 = vld [vmem:[%s5101] ss:$8 sm:$0xf0]
        %v5104 = vor.u32 %v5102, %v5103
        %v5105 = vpack.c.bf16 %v5104, %v5104
        %v5106 = vld [vmem:[%s7 + $0x50] sm:$0xf]
        %v5107 = vld [vmem:[%s7 + $0x54] sm:$0xf]
        %v5108 = vld [vmem:[%s7 + $0x58] sm:$0xf]
        %v5109 = vld [vmem:[%s7 + $0x5c] sm:$0xf]
        %v5110 = vld [vmem:[%s7 + $0x60] sm:$0xf]
        %v5111 = vld [vmem:[%s7 + $0x64] sm:$0xf]
        %v5112 = vld [vmem:[%s7 + $0x68] sm:$0xf]
        %v5113 = vld [vmem:[%s7 + $0x6c] sm:$0xf]
        %v5114 = vld [vmem:[%s7 + $0x70] sm:$0xf]
        %v5115 = vld [vmem:[%s7 + $0x74] sm:$0xf]
        %v5126 = vunpack.c.l.b16 %v5106
        %v5127 = vunpack.c.l.b16 %v5107
        %v5128 = vunpack.c.l.b16 %v5108
        %v5129 = vunpack.c.l.b16 %v5109
        %v5130 = vunpack.c.l.b16 %v5110
        %v5131 = vunpack.c.l.b16 %v5111
        %v5132 = vunpack.c.l.b16 %v5112
        %v5133 = vunpack.c.l.b16 %v5113
        %v5134 = vunpack.c.l.b16 %v5114
        %v5135 = vunpack.c.l.b16 %v5115
        %v5136 = vpack.c.b16 %v5127, %v5126
        %v5137 = vpack.c.b16 %v5129, %v5128
        %v5138 = vpack.c.b16 %v5131, %v5130
        %v5139 = vpack.c.b16 %v5133, %v5132
        %v5140 = vpack.c.b16 %v5135, %v5134
        %v5147 = vsel %vm4860, %v5105, 0
        %5149 = vmatprep.subr.bf16.mxu0 0
        %5150 = vmatpush1.bf16.msra.mxu0 %v5136
        %5151 = vmatprep.subr.bf16.mxu0 0
        %5152 = vmatpush1.bf16.msra.mxu0 %v5137
        %5153 = vmatprep.subr.bf16.mxu0 0
        %5154 = vmatpush1.bf16.msra.mxu0 %v5138
        %5155 = vmatprep.subr.bf16.mxu0 0
        %5156 = vmatpush1.bf16.msra.mxu0 %v5139
        %5157 = vmatprep.subr.bf16.mxu0 0
        %5158 = vmatpush1.bf16.msra.mxu0 %v5140
        %5159 = vmatprep.subr.bf16.mxu0 0
        %5160 = vmatpush1.bf16.msra.mxu0 0
        %5161 = vmatprep.subr.bf16.mxu0 0
        %5162 = vmatpush1.bf16.msra.mxu0 0
        %5163 = vmatprep.subr.bf16.mxu0 0
        %5164 = vmatpush1.bf16.msra.mxu0 0
        %5165 = vmatprep.subr.bf16.mxu0 0
        %5166 = vmatpush1.bf16.msra.mxu0 0
        %5167 = vmatprep.subr.bf16.mxu0 0
        %5168 = vmatpush1.bf16.msra.mxu0 0
        %5169 = vmatprep.subr.bf16.mxu0 0
        %5170 = vmatpush1.bf16.msra.mxu0 0
        %5171 = vmatprep.subr.bf16.mxu0 0
        %5172 = vmatpush1.bf16.msra.mxu0 0
        %5173 = vmatprep.subr.bf16.mxu0 0
        %5174 = vmatpush1.bf16.msra.mxu0 0
        %5175 = vmatprep.subr.bf16.mxu0 0
        %5176 = vmatpush1.bf16.msra.mxu0 0
        %5177 = vmatprep.subr.bf16.mxu0 0
        %5178 = vmatpush1.bf16.msra.mxu0 0
        %5179 = vmatprep.subr.bf16.mxu0 0
        %5180 = vmatpush1.bf16.msra.mxu0 0
        %5181 = vmatprep.mubr.bf16.mxu0 0
        %5182 = vmatmul.mubr.bf16.gmra.mrb[0].mxu0 %v5147
        %v5183 = vpop.f32.mrb[0].mxu0
        %v5184 = vadd.f32 0.0, %v5183
        %v5185 = vpop.f32.mrb[0].mxu0
        %v5186 = vpop.f32.mrb[0].mxu0
        %v5187 = vpop.f32.mrb[0].mxu0
        %5188 = vdwg.mxu0
        %v5189 = vadd.f32 %v5096, %v5184
        %s5190 = scalar_lea.vmem [#allocation5], 3
        %v5191 = vld [vmem:[%s5190] ss:$8 sm:$0xf]
        %v5192 = vld [vmem:[%s5190] ss:$8 sm:$0xf0]
        %v5193 = vor.u32 %v5191, %v5192
        %v5194 = vpack.c.bf16 %v5193, %v5193
        %v5195 = vld [vmem:[%s7 + $0x78] sm:$0xf]
        %v5196 = vld [vmem:[%s7 + $0x7c] sm:$0xf]
        %v5197 = vld [vmem:[%s7 + $0x80] sm:$0xf]
        %v5198 = vld [vmem:[%s7 + $0x84] sm:$0xf]
        %v5199 = vld [vmem:[%s7 + $0x88] sm:$0xf]
        %v5200 = vld [vmem:[%s7 + $0x8c] sm:$0xf]
        %v5201 = vld [vmem:[%s7 + $0x90] sm:$0xf]
        %v5202 = vld [vmem:[%s7 + $0x94] sm:$0xf]
        %v5203 = vld [vmem:[%s7 + $0x98] sm:$0xf]
        %v5204 = vld [vmem:[%s7 + $0x9c] sm:$0xf]
        %v5215 = vunpack.c.l.b16 %v5195
        %v5216 = vunpack.c.l.b16 %v5196
        %v5217 = vunpack.c.l.b16 %v5197
        %v5218 = vunpack.c.l.b16 %v5198
        %v5219 = vunpack.c.l.b16 %v5199
        %v5220 = vunpack.c.l.b16 %v5200
        %v5221 = vunpack.c.l.b16 %v5201
        %v5222 = vunpack.c.l.b16 %v5202
        %v5223 = vunpack.c.l.b16 %v5203
        %v5224 = vunpack.c.l.b16 %v5204
        %v5225 = vpack.c.b16 %v5216, %v5215
        %v5226 = vpack.c.b16 %v5218, %v5217
        %v5227 = vpack.c.b16 %v5220, %v5219
        %v5228 = vpack.c.b16 %v5222, %v5221
        %v5229 = vpack.c.b16 %v5224, %v5223
        %v5236 = vsel %vm4860, %v5194, 0
        %5238 = vmatprep.subr.bf16.mxu0 0
        %5239 = vmatpush1.bf16.msra.mxu0 %v5225
        %5240 = vmatprep.subr.bf16.mxu0 0
        %5241 = vmatpush1.bf16.msra.mxu0 %v5226
        %5242 = vmatprep.subr.bf16.mxu0 0
        %5243 = vmatpush1.bf16.msra.mxu0 %v5227
        %5244 = vmatprep.subr.bf16.mxu0 0
        %5245 = vmatpush1.bf16.msra.mxu0 %v5228
        %5246 = vmatprep.subr.bf16.mxu0 0
        %5247 = vmatpush1.bf16.msra.mxu0 %v5229
        %5248 = vmatprep.subr.bf16.mxu0 0
        %5249 = vmatpush1.bf16.msra.mxu0 0
        %5250 = vmatprep.subr.bf16.mxu0 0
        %5251 = vmatpush1.bf16.msra.mxu0 0
        %5252 = vmatprep.subr.bf16.mxu0 0
        %5253 = vmatpush1.bf16.msra.mxu0 0
        %5254 = vmatprep.subr.bf16.mxu0 0
        %5255 = vmatpush1.bf16.msra.mxu0 0
        %5256 = vmatprep.subr.bf16.mxu0 0
        %5257 = vmatpush1.bf16.msra.mxu0 0
        %5258 = vmatprep.subr.bf16.mxu0 0
        %5259 = vmatpush1.bf16.msra.mxu0 0
        %5260 = vmatprep.subr.bf16.mxu0 0
        %5261 = vmatpush1.bf16.msra.mxu0 0
        %5262 = vmatprep.subr.bf16.mxu0 0
        %5263 = vmatpush1.bf16.msra.mxu0 0
        %5264 = vmatprep.subr.bf16.mxu0 0
        %5265 = vmatpush1.bf16.msra.mxu0 0
        %5266 = vmatprep.subr.bf16.mxu0 0
        %5267 = vmatpush1.bf16.msra.mxu0 0
        %5268 = vmatprep.subr.bf16.mxu0 0
        %5269 = vmatpush1.bf16.msra.mxu0 0
        %5270 = vmatprep.mubr.bf16.mxu0 0
        %5271 = vmatmul.mubr.bf16.gmra.mrb[0].mxu0 %v5236
        %v5272 = vpop.f32.mrb[0].mxu0
        %v5273 = vadd.f32 0.0, %v5272
        %v5274 = vpop.f32.mrb[0].mxu0
        %v5275 = vpop.f32.mrb[0].mxu0
        %v5276 = vpop.f32.mrb[0].mxu0
        %5277 = vdwg.mxu0
        %v5278 = vadd.f32 %v5189, %v5273
        %s5279 = scalar_lea.vmem [#allocation5], 4
        %v5280 = vld [vmem:[%s5279] ss:$8 sm:$0xf]
        %v5281 = vld [vmem:[%s5279] ss:$8 sm:$0xf0]
        %v5282 = vor.u32 %v5280, %v5281
        %v5283 = vpack.c.bf16 %v5282, %v5282
        %v5284 = vld [vmem:[%s7 + $0xa0] sm:$0xf]
        %v5285 = vld [vmem:[%s7 + $0xa4] sm:$0xf]
        %v5286 = vld [vmem:[%s7 + $0xa8] sm:$0xf]
        %v5287 = vld [vmem:[%s7 + $0xac] sm:$0xf]
        %v5288 = vld [vmem:[%s7 + $0xb0] sm:$0xf]
        %v5289 = vld [vmem:[%s7 + $0xb4] sm:$0xf]
        %v5290 = vld [vmem:[%s7 + $0xb8] sm:$0xf]
        %v5291 = vld [vmem:[%s7 + $0xbc] sm:$0xf]
        %v5292 = vld [vmem:[%s7 + $0xc0] sm:$0xf]
        %v5293 = vld [vmem:[%s7 + $0xc4] sm:$0xf]
        %v5304 = vunpack.c.l.b16 %v5284
        %v5305 = vunpack.c.l.b16 %v5285
        %v5306 = vunpack.c.l.b16 %v5286
        %v5307 = vunpack.c.l.b16 %v5287
        %v5308 = vunpack.c.l.b16 %v5288
        %v5309 = vunpack.c.l.b16 %v5289
        %v5310 = vunpack.c.l.b16 %v5290
        %v5311 = vunpack.c.l.b16 %v5291
        %v5312 = vunpack.c.l.b16 %v5292
        %v5313 = vunpack.c.l.b16 %v5293
        %v5314 = vpack.c.b16 %v5305, %v5304
        %v5315 = vpack.c.b16 %v5307, %v5306
        %v5316 = vpack.c.b16 %v5309, %v5308
        %v5317 = vpack.c.b16 %v5311, %v5310
        %v5318 = vpack.c.b16 %v5313, %v5312
        %v5325 = vsel %vm4860, %v5283, 0
        %5327 = vmatprep.subr.bf16.mxu0 0
        %5328 = vmatpush1.bf16.msra.mxu0 %v5314
        %5329 = vmatprep.subr.bf16.mxu0 0
        %5330 = vmatpush1.bf16.msra.mxu0 %v5315
        %5331 = vmatprep.subr.bf16.mxu0 0
        %5332 = vmatpush1.bf16.msra.mxu0 %v5316
        %5333 = vmatprep.subr.bf16.mxu0 0
        %5334 = vmatpush1.bf16.msra.mxu0 %v5317
        %5335 = vmatprep.subr.bf16.mxu0 0
        %5336 = vmatpush1.bf16.msra.mxu0 %v5318
        %5337 = vmatprep.subr.bf16.mxu0 0
        %5338 = vmatpush1.bf16.msra.mxu0 0
        %5339 = vmatprep.subr.bf16.mxu0 0
        %5340 = vmatpush1.bf16.msra.mxu0 0
        %5341 = vmatprep.subr.bf16.mxu0 0
        %5342 = vmatpush1.bf16.msra.mxu0 0
        %5343 = vmatprep.subr.bf16.mxu0 0
        %5344 = vmatpush1.bf16.msra.mxu0 0
        %5345 = vmatprep.subr.bf16.mxu0 0
        %5346 = vmatpush1.bf16.msra.mxu0 0
        %5347 = vmatprep.subr.bf16.mxu0 0
        %5348 = vmatpush1.bf16.msra.mxu0 0
        %5349 = vmatprep.subr.bf16.mxu0 0
        %5350 = vmatpush1.bf16.msra.mxu0 0
        %5351 = vmatprep.subr.bf16.mxu0 0
        %5352 = vmatpush1.bf16.msra.mxu0 0
        %5353 = vmatprep.subr.bf16.mxu0 0
        %5354 = vmatpush1.bf16.msra.mxu0 0
        %5355 = vmatprep.subr.bf16.mxu0 0
        %5356 = vmatpush1.bf16.msra.mxu0 0
        %5357 = vmatprep.subr.bf16.mxu0 0
        %5358 = vmatpush1.bf16.msra.mxu0 0
        %5359 = vmatprep.mubr.bf16.mxu0 0
        %5360 = vmatmul.mubr.bf16.gmra.mrb[0].mxu0 %v5325
        %v5361 = vpop.f32.mrb[0].mxu0
        %v5362 = vadd.f32 0.0, %v5361
        %v5363 = vpop.f32.mrb[0].mxu0
        %v5364 = vpop.f32.mrb[0].mxu0
        %v5365 = vpop.f32.mrb[0].mxu0
        %5366 = vdwg.mxu0
        %v5367 = vadd.f32 %v5278, %v5362
        %v5368 = vld [vmem:[%s8] sm:$0x1]
        %v5370 = vlaneseq
        %v5371 = vshrl.u32 %v5370, 7
        %v5372 = vsub.s32 0, %v5371
        %v5373 = vrot.slane %v5368, %v5372
        %v5375 = vadd.f32 %v5367, %v5373
        %v5376 = vmax.f32 %v5375, 0.0
        %v5377 = vpack.c.bf16 %v5376, %v5376
        %v5378 = vld [vmem:[%s9] sm:$0xf]
        %v5379 = vld [vmem:[%s9 + $0x4] sm:$0xf]
        %v5380 = vld [vmem:[%s9 + $0x8] sm:$0xf]
        %v5381 = vld [vmem:[%s9 + $0xc] sm:$0xf]
        %v5382 = vld [vmem:[%s9 + $0x10] sm:$0xf]
        %v5383 = vld [vmem:[%s9 + $0x14] sm:$0xf]
        %v5384 = vld [vmem:[%s9 + $0x18] sm:$0xf]
        %v5385 = vld [vmem:[%s9 + $0x1c] sm:$0xf]
        %v5386 = vld [vmem:[%s9 + $0x20] sm:$0xf]
        %v5387 = vld [vmem:[%s9 + $0x24] sm:$0xf]
        %v5388 = vld [vmem:[%s9 + $0x28] sm:$0xf]
        %v5389 = vld [vmem:[%s9 + $0x2c] sm:$0xf]
        %v5390 = vld [vmem:[%s9 + $0x30] sm:$0xf]
        %v5391 = vld [vmem:[%s9 + $0x34] sm:$0xf]
        %v5392 = vld [vmem:[%s9 + $0x38] sm:$0xf]
        %v5393 = vld [vmem:[%s10] sm:$0x1]
        %v5395 = vlaneseq
        %v5396 = vshrl.u32 %v5395, 7
        %v5397 = vsub.s32 0, %v5396
        %v5398 = vrot.slane %v5393, %v5397
        %v5415 = vunpack.c.l.b16 %v5378
        %v5416 = vunpack.c.l.b16 %v5379
        %v5417 = vunpack.c.l.b16 %v5380
        %v5418 = vunpack.c.l.b16 %v5381
        %v5419 = vunpack.c.l.b16 %v5382
        %v5420 = vunpack.c.l.b16 %v5383
        %v5421 = vunpack.c.l.b16 %v5384
        %v5422 = vunpack.c.l.b16 %v5385
        %v5423 = vunpack.c.l.b16 %v5386
        %v5424 = vunpack.c.l.b16 %v5387
        %v5425 = vunpack.c.l.b16 %v5388
        %v5426 = vunpack.c.l.b16 %v5389
        %v5427 = vunpack.c.l.b16 %v5390
        %v5428 = vunpack.c.l.b16 %v5391
        %v5429 = vunpack.c.l.b16 %v5392
        %v5430 = vpack.c.b16 %v5416, %v5415
        %v5431 = vpack.c.b16 %v5418, %v5417
        %v5432 = vpack.c.b16 %v5420, %v5419
        %v5433 = vpack.c.b16 %v5422, %v5421
        %v5434 = vpack.c.b16 %v5424, %v5423
        %v5435 = vpack.c.b16 %v5426, %v5425
        %v5436 = vpack.c.b16 %v5428, %v5427
        %v5437 = vpack.c.b16 %v5429, %v5429
        %vm5445 = vcmask 982016
        %v5447 = vsel %vm5445, %v5377, 0
        %v5450 = vsel %vm2530, %v5437, 0
        %5452 = vmatprep.subr.bf16.mxu0 0
        %5453 = vmatpush1.bf16.msra.mxu0 %v5430
        %5454 = vmatprep.subr.bf16.mxu0 0
        %5455 = vmatpush1.bf16.msra.mxu0 %v5431
        %5456 = vmatprep.subr.bf16.mxu0 0
        %5457 = vmatpush1.bf16.msra.mxu0 %v5432
        %5458 = vmatprep.subr.bf16.mxu0 0
        %5459 = vmatpush1.bf16.msra.mxu0 %v5433
        %5460 = vmatprep.subr.bf16.mxu0 0
        %5461 = vmatpush1.bf16.msra.mxu0 %v5434
        %5462 = vmatprep.subr.bf16.mxu0 0
        %5463 = vmatpush1.bf16.msra.mxu0 %v5435
        %5464 = vmatprep.subr.bf16.mxu0 0
        %5465 = vmatpush1.bf16.msra.mxu0 %v5436
        %5466 = vmatprep.subr.bf16.mxu0 0
        %5467 = vmatpush1.bf16.msra.mxu0 %v5450
        %5468 = vmatprep.subr.bf16.mxu0 0
        %5469 = vmatpush1.bf16.msra.mxu0 0
        %5470 = vmatprep.subr.bf16.mxu0 0
        %5471 = vmatpush1.bf16.msra.mxu0 0
        %5472 = vmatprep.subr.bf16.mxu0 0
        %5473 = vmatpush1.bf16.msra.mxu0 0
        %5474 = vmatprep.subr.bf16.mxu0 0
        %5475 = vmatpush1.bf16.msra.mxu0 0
        %5476 = vmatprep.subr.bf16.mxu0 0
        %5477 = vmatpush1.bf16.msra.mxu0 0
        %5478 = vmatprep.subr.bf16.mxu0 0
        %5479 = vmatpush1.bf16.msra.mxu0 0
        %5480 = vmatprep.subr.bf16.mxu0 0
        %5481 = vmatpush1.bf16.msra.mxu0 0
        %5482 = vmatprep.subr.bf16.mxu0 0
        %5483 = vmatpush1.bf16.msra.mxu0 0
        %5484 = vmatprep.mubr.bf16.mxu0 0
        %5485 = vmatmul.mubr.bf16.gmra.mrb[0].mxu0 %v5447
        %v5486 = vpop.f32.mrb[0].mxu0
        %v5487 = vadd.f32 %v5398, %v5486
        %v5488 = vpop.f32.mrb[0].mxu0
        %v5489 = vpop.f32.mrb[0].mxu0
        %v5490 = vpop.f32.mrb[0].mxu0
        %5491 = vdwg.mxu0
        %v5492 = vmax.f32 %v5487, 0.0
        %v5493 = vpack.c.bf16 %v5492, %v5492
        %v5494 = vld [vmem:[%s11] sm:$0xf]
        %v5495 = vld [vmem:[%s11 + $0x4] sm:$0xf]
        %v5496 = vld [vmem:[%s11 + $0x8] sm:$0xf]
        %v5497 = vld [vmem:[%s11 + $0xc] sm:$0xf]
        %v5498 = vld [vmem:[%s11 + $0x10] sm:$0xf]
        %v5499 = vld [vmem:[%s11 + $0x14] sm:$0xf]
        %v5500 = vld [vmem:[%s11 + $0x18] sm:$0xf]
        %v5501 = vld [vmem:[%s11 + $0x1c] sm:$0xf]
        %v5502 = vld [vmem:[%s11 + $0x20] sm:$0xf]
        %v5503 = vld [vmem:[%s11 + $0x24] sm:$0xf]
        %v5504 = vld [vmem:[%s11 + $0x28] sm:$0x3]
        %v5505 = vld [vmem:[%s12] sm:$0x1]
        %v5507 = vlaneseq
        %v5508 = vshrl.u32 %v5507, 7
        %v5509 = vsub.s32 0, %v5508
        %v5510 = vrot.slane %v5505, %v5509
        %v5523 = vunpack.c.l.b16 %v5494
        %v5524 = vunpack.c.l.b16 %v5495
        %v5525 = vunpack.c.l.b16 %v5496
        %v5526 = vunpack.c.l.b16 %v5497
        %v5527 = vunpack.c.l.b16 %v5498
        %v5528 = vunpack.c.l.b16 %v5499
        %v5529 = vunpack.c.l.b16 %v5500
        %v5530 = vunpack.c.l.b16 %v5501
        %v5531 = vunpack.c.l.b16 %v5502
        %v5532 = vunpack.c.l.b16 %v5503
        %v5533 = vunpack.c.l.b16 %v5504
        %v5534 = vpack.c.b16 %v5524, %v5523
        %v5535 = vpack.c.b16 %v5526, %v5525
        %v5536 = vpack.c.b16 %v5528, %v5527
        %v5537 = vpack.c.b16 %v5530, %v5529
        %v5538 = vpack.c.b16 %v5532, %v5531
        %v5539 = vpack.c.b16 %v5533, %v5533
        %v5546 = vsel %vm2976, %v5493, 0
        %v5549 = vsel %vm3256, %v5539, 0
        %5551 = vmatprep.subr.bf16.mxu0 0
        %5552 = vmatpush1.bf16.msra.mxu0 %v5534
        %5553 = vmatprep.subr.bf16.mxu0 0
        %5554 = vmatpush1.bf16.msra.mxu0 %v5535
        %5555 = vmatprep.subr.bf16.mxu0 0
        %5556 = vmatpush1.bf16.msra.mxu0 %v5536
        %5557 = vmatprep.subr.bf16.mxu0 0
        %5558 = vmatpush1.bf16.msra.mxu0 %v5537
        %5559 = vmatprep.subr.bf16.mxu0 0
        %5560 = vmatpush1.bf16.msra.mxu0 %v5538
        %5561 = vmatprep.subr.bf16.mxu0 0
        %5562 = vmatpush1.bf16.msra.mxu0 %v5549
        %5563 = vmatprep.subr.bf16.mxu0 0
        %5564 = vmatpush1.bf16.msra.mxu0 0
        %5565 = vmatprep.subr.bf16.mxu0 0
        %5566 = vmatpush1.bf16.msra.mxu0 0
        %5567 = vmatprep.subr.bf16.mxu0 0
        %5568 = vmatpush1.bf16.msra.mxu0 0
        %5569 = vmatprep.subr.bf16.mxu0 0
        %5570 = vmatpush1.bf16.msra.mxu0 0
        %5571 = vmatprep.subr.bf16.mxu0 0
        %5572 = vmatpush1.bf16.msra.mxu0 0
        %5573 = vmatprep.subr.bf16.mxu0 0
        %5574 = vmatpush1.bf16.msra.mxu0 0
        %5575 = vmatprep.subr.bf16.mxu0 0
        %5576 = vmatpush1.bf16.msra.mxu0 0
        %5577 = vmatprep.subr.bf16.mxu0 0
        %5578 = vmatpush1.bf16.msra.mxu0 0
        %5579 = vmatprep.subr.bf16.mxu0 0
        %5580 = vmatpush1.bf16.msra.mxu0 0
        %5581 = vmatprep.subr.bf16.mxu0 0
        %5582 = vmatpush1.bf16.msra.mxu0 0
        %5583 = vmatprep.mubr.bf16.mxu0 0
        %5584 = vmatmul.mubr.bf16.gmra.mrb[0].mxu0 %v5546
        %v5585 = vpop.f32.mrb[0].mxu0
        %v5586 = vadd.f32 %v5510, %v5585
        %v5587 = vpop.f32.mrb[0].mxu0
        %v5588 = vpop.f32.mrb[0].mxu0
        %v5589 = vpop.f32.mrb[0].mxu0
        %5590 = vdwg.mxu0
        %5591 = vst [vmem:[%s434] sm:$0xff] %v5586
        %s5592 = sand.u32 %s313, 1
        %s5593 = scalar_lea.sflag [#allocation7], %s5592
        %s5594 = sand.u32 %s313, 1
        %s5595 = smul.addr %s5594, 8
        %s5596 = scalar_lea.vmem [#allocation6], %s5595
        // Predicated region
        $region73: #{tpu_custom_call.1} parent=71 // pred_check
          %p5597 = pneg %p323
        $region74: #{tpu_custom_call.1} parent=71 // pred_check_branch
          %5599 = sbr.rel (%p5597) target = $region76
        $region75: #{tpu_custom_call.1} parent=71 // pred_region
          %s5601 = ssub.s32 128, 128
          %5602 = vsyncadd %s5593, %s5601
          %s5603 = smul.addr %s27, 128
          %s5604 = scalar_lea.hbm %s13, %s5603
          %s5606 = sshll.u32 %s5596, 4
          %s5607 = int_to_ptr.vmem [resolvable:$true] %s5606
          %5609 = dma.vmem_to_hbm [thread:$0]  %s5607, 128, %s5604, %s5593
        $region76: #{tpu_custom_call.1} parent=71 // pred_fallthru
          _
      $region72: #{tpu_custom_call.1} parent=5 // pred_fallthru
        _
      %p5610 = scmp.le.s32.totalorder 2, %s22
      // Predicated region
      $region77: #{tpu_custom_call.1} parent=5 // pred_check
        %p5611 = pneg %p5610
      $region78: #{tpu_custom_call.1} parent=5 // pred_check_branch
        %5613 = sbr.rel (%p5611) target = $region80
      $region79: #{tpu_custom_call.1} parent=5 // pred_region
        %s5614 = ssub.s32 %s22, 2
        // Predicated region
        $region81: #{tpu_custom_call.1} parent=79 // pred_check
          %p5615 = pneg %p329
        $region82: #{tpu_custom_call.1} parent=79 // pred_check_branch
          %5617 = sbr.rel (%p5615) target = $region84
        $region83: #{tpu_custom_call.1} parent=79 // pred_region
          %s5618 = sand.u32 %s314, 1
          %s5619 = scalar_lea.sflag [#allocation7], %s5618
          %s5620 = sand.u32 %s314, 1
          %s5621 = smul.addr %s5620, 8
          %s5622 = scalar_lea.vmem [#allocation6], %s5621
          %5623 = dma.done %s5619, 128
        $region84: #{tpu_custom_call.1} parent=79 // pred_fallthru
          _
      $region80: #{tpu_custom_call.1} parent=5 // pred_fallthru
        _
    $region6: #{tpu_custom_call.1} parent=1 // loop_footer
      %s26 = sadd.s32 1, %s22
    $region7: #{tpu_custom_call.1} parent=1 // loop_footer_branch
      %21 = sbr.rel target = $region3
    $region8: #{tpu_custom_call.1} parent=1 // loop_exit
      _
    %5624 = vsyncpa [#allocation7], 1
    %s5625 = scalar_lea.sflag [#allocation7], 1
    %5626 = vsyncpa %s5625, 1

</llo_original>
